<compile_context>
chip_gen: v7x
topology: tpu7x:2x2x1
jax: 0.10.0
libtpu: 0.0.40
codegen_flags: <defaults>
</compile_context>

<pallas_src>
import functools

import jax
import jax.numpy as jnp
from jax import lax
from jax.experimental import pallas as pl
from jax.experimental.pallas import tpu as pltpu


def bottleneck_kernel(x_ref, w1_ref, w2_ref, w3_ref, b1_ref, b2_ref, b3_ref,
                      o_ref, pad_ref, *, H, W, P, PAD, B):
    HW = H * W

    # Per-step constants (hoisted out of the per-image loop).
    b1 = b1_ref[...]
    b2 = b2_ref[...]
    b3 = b3_ref[...]
    col = lax.broadcasted_iota(jnp.int32, (HW, 1), 0) % W   # w-coordinate per row
    ok_left = col >= 1                                      # valid when dw == -1
    ok_right = col <= W - 2                                 # valid when dw == +1

    # Zero the halo rows once per grid step (PAD is already the minimal
    # 8-aligned halo >= W+1 rows).  Do NOT gate on program_id: under megacore
    # each core has its own scratch.
    zero_halo = jnp.zeros((PAD, P), jnp.bfloat16)
    pad_ref[0:PAD, :] = zero_halo
    pad_ref[PAD + HW:PAD + HW + PAD, :] = zero_halo

    for b in range(B):                                      # static unroll, B small
        x_bf = x_ref[b]                                     # (HW, Cpad) bf16

        # ---- conv1 (1x1, BN1 folded) + bias + ReLU ----
        y1 = jnp.dot(x_bf, w1_ref[...], preferred_element_type=jnp.float32)
        y1 = jnp.maximum(y1 + b1, 0.0)                      # (HW, P) f32

        # ---- conv2 (3x3, stride=1, pad=1): 9 accumulated MXU dots from a
        #      bf16 halo-staged buffer (no im2col scratch) ----
        pad_ref[PAD:PAD + HW, :] = y1.astype(jnp.bfloat16)  # aligned interior store

        acc = None
        t = 0
        for dh in (-1, 0, 1):
            for dw in (-1, 0, 1):
                s = dh * W + dw
                patch = pad_ref[PAD + s:PAD + s + HW, :]    # (HW, P) bf16 shifted view
                if dw == -1:
                    patch = jnp.where(ok_left, patch, 0.0)  # select: no bf16 VALU needed
                elif dw == 1:
                    patch = jnp.where(ok_right, patch, 0.0)
                d = jnp.dot(patch, w2_ref[t * P:(t + 1) * P, :],
                            preferred_element_type=jnp.float32)
                acc = d if acc is None else acc + d
                t += 1
        y2 = jnp.maximum(acc + b2, 0.0)                     # (HW, P) f32

        # ---- conv3 (1x1) + bias + residual (f32) + ReLU, bf16 lane-dense store ----
        y3 = jnp.dot(y2.astype(jnp.bfloat16), w3_ref[...],
                     preferred_element_type=jnp.float32)    # (HW, Cpad)
        out = jnp.maximum(y3 + b3 + x_bf.astype(jnp.float32), 0.0)
        o_ref[b] = out.astype(jnp.bfloat16)


def bottleneck_forward(x_nchw, w1, w2_hwio, w3, s1, b1, s2, b2, s3, b3):
    """x_nchw: (N, Cin, H, W); w1: (Cin, P); w2_hwio: (3,3,P,P); w3: (P, Cout)."""
    N, Cin, H, W = x_nchw.shape
    P = w1.shape[1]
    Cout = w3.shape[1]
    assert Cin == Cout, "downsample=None requires inplanes == planes * 4"

    HW = H * W
    Cpad = max(128, ((Cin + 127) // 128) * 128)             # lane-dense channel width
    PAD = ((W + 1 + 7) // 8) * 8                            # halo rows (>= W+1, 8-aligned)

    # Images per grid step: amortize per-step overhead (~target 512-1024 rows)
    # while keeping grid length >= 2 so both v7x TensorCores stay busy.
    B = 1
    for cand in range(1, N + 1):
        if N % cand:
            continue
        if N >= 2 and N // cand < 2:
            continue
        if cand * HW > 1024:
            continue
        B = cand
    grid_n = N // B

    # NCHW -> (N, H*W, Cpad) bf16; padded channels are zero.
    x = jnp.transpose(x_nchw, (0, 2, 3, 1)).reshape(N, HW, Cin)
    x = jnp.pad(x, ((0, 0), (0, 0), (0, Cpad - Cin))).astype(jnp.bfloat16)

    # Fold BN scales into conv weights; matmul operands in bf16, biases in f32.
    w1f = jnp.pad(w1 * s1, ((0, Cpad - Cin), (0, 0))).astype(jnp.bfloat16)   # (Cpad, P)
    w2f = (w2_hwio.reshape(9 * P, P) * s2).astype(jnp.bfloat16)              # (9P, P)
    w3f = jnp.pad(w3 * s3, ((0, 0), (0, Cpad - Cout))).astype(jnp.bfloat16)  # (P, Cpad)
    b1f = b1.astype(jnp.float32)                                             # (1, P)
    b2f = b2.astype(jnp.float32)                                             # (1, P)
    b3f = jnp.pad(b3, ((0, 0), (0, Cpad - Cout))).astype(jnp.float32)        # (1, Cpad)

    # Explicit VMEM budget (important on v7x: 64 MiB physical, 32 MiB default).
    est = (4 * B * HW * Cpad * 2                         # x + out, double-buffered, bf16
           + 2 * (Cpad * P + 9 * P * P + P * Cpad) * 2   # weights (worst case 2 bufs)
           + 2 * (2 * P + Cpad) * 4                      # biases f32
           + (2 * PAD + HW) * P * 2)                     # halo-staged y1, bf16
    vmem_limit = int(min(64 * 1024 * 1024, max(16 * 1024 * 1024, 2 * est)))

    kern = functools.partial(bottleneck_kernel, H=H, W=W, P=P, PAD=PAD, B=B)

    def build(single_buffer_weights):
        def wspec(shape):
            # Constant index_map blocks never re-fetch -> single-buffer them.
            if single_buffer_weights:
                return pl.BlockSpec(shape, lambda n: (0, 0),
                                    pipeline_mode=pl.Buffered(1))
            return pl.BlockSpec(shape, lambda n: (0, 0))

        return pl.pallas_call(
            kern,
            out_shape=jax.ShapeDtypeStruct((N, HW, Cpad), jnp.bfloat16),
            grid_spec=pltpu.PrefetchScalarGridSpec(
                num_scalar_prefetch=0,
                grid=(grid_n,),
                in_specs=[
                    pl.BlockSpec((B, HW, Cpad), lambda n: (n, 0, 0)),
                    wspec((Cpad, P)),
                    wspec((9 * P, P)),
                    wspec((P, Cpad)),
                    wspec((1, P)),
                    wspec((1, P)),
                    wspec((1, Cpad)),
                ],
                out_specs=pl.BlockSpec((B, HW, Cpad), lambda n: (n, 0, 0)),
                scratch_shapes=[
                    pltpu.VMEM((2 * PAD + HW, P), jnp.bfloat16),   # halo-staged y1
                ],
            ),
            compiler_params=pltpu.CompilerParams(
                dimension_semantics=("parallel",),
                vmem_limit_bytes=vmem_limit),
        )

    try:
        out = jax.block_until_ready(build(True)(x, w1f, w2f, w3f, b1f, b2f, b3f))
    except Exception:
        # Fallback if pipeline_mode=Buffered(1) is unsupported in this JAX build.
        out = jax.block_until_ready(build(False)(x, w1f, w2f, w3f, b1f, b2f, b3f))

    out = out[:, :, :Cout].astype(jnp.float32).reshape(N, H, W, Cout)
    return jnp.transpose(out, (0, 3, 1, 2))                  # back to NCHW


def reference_nchw(x, w1_oihw, w2_oihw, w3_oihw, s1, b1, s2, b2, s3, b3):
    dn = ('NCHW', 'OIHW', 'NCHW')
    bn = lambda y, s, b: y * s.reshape(1, -1, 1, 1) + b.reshape(1, -1, 1, 1)
    y = lax.conv_general_dilated(x, w1_oihw, (1, 1), 'VALID', dimension_numbers=dn)
    y = jnp.maximum(bn(y, s1, b1), 0.0)
    y = lax.conv_general_dilated(y, w2_oihw, (1, 1), ((1, 1), (1, 1)),
                                 dimension_numbers=dn)
    y = jnp.maximum(bn(y, s2, b2), 0.0)
    y = lax.conv_general_dilated(y, w3_oihw, (1, 1), 'VALID', dimension_numbers=dn)
    y = bn(y, s3, b3)
    return jnp.maximum(y + x, 0.0)


def make_bn_fold(key, c, eps=1e-5):
    k1, k2, k3, k4 = jax.random.split(key, 4)
    gamma = 0.5 + jax.random.uniform(k1, (c,), jnp.float32)
    beta = 0.1 * jax.random.normal(k2, (c,), jnp.float32)
    mean = 0.1 * jax.random.normal(k3, (c,), jnp.float32)
    var = 0.5 + jax.random.uniform(k4, (c,), jnp.float32)
    scale = gamma / jnp.sqrt(var + eps)
    bias = beta - mean * scale
    return scale.reshape(1, c), bias.reshape(1, c)


if __name__ == "__main__":
    # Bottleneck(inplanes=16, planes=4, stride=1, downsample=None)
    N, Cin, H, W = 2, 16, 8, 8
    P = 4
    Cout = P * 4  # expansion = 4 -> 16 == Cin

    key = jax.random.PRNGKey(0)
    kx, kw1, kw2, kw3, kb1, kb2, kb3 = jax.random.split(key, 7)

    x = jax.random.normal(kx, (N, Cin, H, W), jnp.float32)

    w1 = 0.1 * jax.random.normal(kw1, (Cin, P), jnp.float32)        # (in, out)
    w2_hwio = 0.1 * jax.random.normal(kw2, (3, 3, P, P), jnp.float32)
    w3 = 0.1 * jax.random.normal(kw3, (P, Cout), jnp.float32)

    s1, b1 = make_bn_fold(kb1, P)
    s2, b2 = make_bn_fold(kb2, P)
    s3, b3 = make_bn_fold(kb3, Cout)

    out = bottleneck_forward(x, w1, w2_hwio, w3, s1, b1, s2, b2, s3, b3)
    out = jax.block_until_ready(out)

    # PyTorch-convention weights for the XLA f32 reference.
    w1_oihw = w1.T.reshape(P, Cin, 1, 1)
    w2_oihw = jnp.transpose(w2_hwio, (3, 2, 0, 1))
    w3_oihw = w3.T.reshape(Cout, P, 1, 1)
    ref = reference_nchw(x, w1_oihw, w2_oihw, w3_oihw,
                         s1[0], b1[0], s2[0], b2[0], s3[0], b3[0])

    # Tolerance reflects bf16 activation I/O + bf16 MXU with f32 accumulation.
    if not jnp.allclose(out, ref, atol=1e-1, rtol=1e-1):
        raise AssertionError("Pallas kernel output mismatches XLA reference")

    print("KERNEL_OK")
</pallas_src>

<mosaic_0001>
module attributes {stable_mosaic.version = 11 : i64} {
  func.func @bottleneck_kernel(%arg0: i32, %arg1: memref<1x64x128xbf16, #tpu.memory_space<vmem>>, %arg2: memref<128x4xbf16, #tpu.memory_space<vmem>>, %arg3: memref<36x4xbf16, #tpu.memory_space<vmem>>, %arg4: memref<4x128xbf16, #tpu.memory_space<vmem>>, %arg5: memref<1x4xf32, #tpu.memory_space<vmem>>, %arg6: memref<1x4xf32, #tpu.memory_space<vmem>>, %arg7: memref<1x128xf32, #tpu.memory_space<vmem>>, %arg8: memref<1x64x128xbf16, #tpu.memory_space<vmem>>, %arg9: memref<96x4xbf16, #tpu.memory_space<vmem>>) attributes {dimension_semantics = [#tpu.dimension_semantics<parallel>], iteration_bounds = array<i64: 2>, scalar_prefetch = 0 : i64, scratch_operands = 1 : i64, tpu.core_type = #tpu.core_type<tc>, window_params = [{transform_indices = @transform_0, window_bounds = array<i64: 1, 64, 128>}, {pipeline_mode = #tpu.pipeline_mode<synchronous>, transform_indices = @transform_1, window_bounds = array<i64: 128, 4>}, {pipeline_mode = #tpu.pipeline_mode<synchronous>, transform_indices = @transform_2, window_bounds = array<i64: 36, 4>}, {pipeline_mode = #tpu.pipeline_mode<synchronous>, transform_indices = @transform_3, window_bounds = array<i64: 4, 128>}, {pipeline_mode = #tpu.pipeline_mode<synchronous>, transform_indices = @transform_4, window_bounds = array<i64: 1, 4>}, {pipeline_mode = #tpu.pipeline_mode<synchronous>, transform_indices = @transform_5, window_bounds = array<i64: 1, 4>}, {pipeline_mode = #tpu.pipeline_mode<synchronous>, transform_indices = @transform_6, window_bounds = array<i64: 1, 128>}, {transform_indices = @transform_7, window_bounds = array<i64: 1, 64, 128>}]} {
    %c0 = arith.constant 0 : index
    %c0_0 = arith.constant 0 : index
    %0 = vector.load %arg5[%c0, %c0_0] : memref<1x4xf32, #tpu.memory_space<vmem>>, vector<1x4xf32>
    %c0_1 = arith.constant 0 : index
    %c0_2 = arith.constant 0 : index
    %1 = vector.load %arg6[%c0_1, %c0_2] : memref<1x4xf32, #tpu.memory_space<vmem>>, vector<1x4xf32>
    %c0_3 = arith.constant 0 : index
    %c0_4 = arith.constant 0 : index
    %2 = vector.load %arg7[%c0_3, %c0_4] : memref<1x128xf32, #tpu.memory_space<vmem>>, vector<1x128xf32>
    %3 = tpu.iota {dimensions = array<i32: 0>} : vector<64x1xi32>
    %c8_i32 = arith.constant 8 : i32
    %c0_i32 = arith.constant 0 : i32
    %4 = arith.cmpi eq, %c8_i32, %c0_i32 : i32
    %c1_i32 = arith.constant 1 : i32
    %5 = arith.select %4, %c1_i32, %c8_i32 : i32
    %6 = vector.broadcast %5 : i32 to vector<64x1xi32>
    %7 = arith.remsi %3, %6 : vector<64x1xi32>
    %c0_i32_5 = arith.constant 0 : i32
    %8 = vector.broadcast %c0_i32_5 : i32 to vector<64x1xi32>
    %9 = arith.cmpi ne, %7, %8 : vector<64x1xi32>
    %c0_i32_6 = arith.constant 0 : i32
    %10 = vector.broadcast %c0_i32_6 : i32 to vector<64x1xi32>
    %11 = arith.cmpi slt, %7, %10 : vector<64x1xi32>
    %c0_i32_7 = arith.constant 0 : i32
    %12 = arith.cmpi slt, %5, %c0_i32_7 : i32
    %13 = vector.broadcast %12 : i1 to vector<64x1xi1>
    %14 = vector.broadcast %13 : vector<64x1xi1> to vector<64x1xi1>
    %15 = arith.xori %11, %14 : vector<64x1xi1>
    %16 = arith.andi %15, %9 : vector<64x1xi1>
    %17 = vector.broadcast %5 : i32 to vector<64x1xi32>
    %18 = arith.addi %7, %17 : vector<64x1xi32>
    %19 = arith.select %16, %18, %7 : vector<64x1xi1>, vector<64x1xi32>
    %c1_i32_8 = arith.constant 1 : i32
    %20 = vector.broadcast %c1_i32_8 : i32 to vector<64x1xi32>
    %21 = arith.cmpi sge, %19, %20 : vector<64x1xi32>
    %c6_i32 = arith.constant 6 : i32
    %22 = vector.broadcast %c6_i32 : i32 to vector<64x1xi32>
    %23 = arith.cmpi sle, %19, %22 : vector<64x1xi32>
    %cst = arith.constant 0.000000e+00 : bf16
    %24 = vector.broadcast %cst : bf16 to vector<16x4xbf16>
    %c0_9 = arith.constant 0 : index
    %c0_10 = arith.constant 0 : index
    %25 = vector.load %arg9[%c0_9, %c0_10] : memref<96x4xbf16, #tpu.memory_space<vmem>>, vector<16x4xbf16>
    tpu.vector_store %arg9[%c0_9, %c0_10], %24 {strides = array<i32>} : memref<96x4xbf16, #tpu.memory_space<vmem>>, vector<16x4xbf16>,
    %c80 = arith.constant 80 : index
    %c0_11 = arith.constant 0 : index
    %26 = vector.load %arg9[%c80, %c0_11] : memref<96x4xbf16, #tpu.memory_space<vmem>>, vector<16x4xbf16>
    tpu.vector_store %arg9[%c80, %c0_11], %24 {strides = array<i32>} : memref<96x4xbf16, #tpu.memory_space<vmem>>, vector<16x4xbf16>,
    %c0_12 = arith.constant 0 : index
    %c0_13 = arith.constant 0 : index
    %c0_14 = arith.constant 0 : index
    %27 = vector.load %arg1[%c0_12, %c0_13, %c0_14] : memref<1x64x128xbf16, #tpu.memory_space<vmem>>, vector<1x64x128xbf16>
    %28 = vector.shape_cast %27 : vector<1x64x128xbf16> to vector<64x128xbf16>
    %c0_15 = arith.constant 0 : index
    %c0_16 = arith.constant 0 : index
    %29 = vector.load %arg2[%c0_15, %c0_16] : memref<128x4xbf16, #tpu.memory_space<vmem>>, vector<128x4xbf16>
    %cst_17 = arith.constant dense<0.000000e+00> : vector<64x4xf32>
    %30 = tpu.matmul %28, %29, %cst_17 {dimension_numbers = #tpu.dot_dimension_numbers<[1], [0], [0], [1], [0, 0, 1, 1], [], []>} : vector<64x128xbf16>, vector<128x4xbf16>, vector<64x4xf32> -> vector<64x4xf32>
    %31 = vector.broadcast %0 : vector<1x4xf32> to vector<64x4xf32>
    %32 = arith.addf %30, %31 : vector<64x4xf32>
    %cst_18 = arith.constant 0.000000e+00 : f32
    %33 = vector.broadcast %cst_18 : f32 to vector<64x4xf32>
    %34 = arith.maximumf %32, %33 : vector<64x4xf32>
    %35 = arith.truncf %34 : vector<64x4xf32> to vector<64x4xbf16>
    %c16 = arith.constant 16 : index
    %c0_19 = arith.constant 0 : index
    %36 = vector.load %arg9[%c16, %c0_19] : memref<96x4xbf16, #tpu.memory_space<vmem>>, vector<64x4xbf16>
    tpu.vector_store %arg9[%c16, %c0_19], %35 {strides = array<i32>} : memref<96x4xbf16, #tpu.memory_space<vmem>>, vector<64x4xbf16>,
    %c7 = arith.constant 7 : index
    %c0_20 = arith.constant 0 : index
    %37 = vector.load %arg9[%c7, %c0_20] : memref<96x4xbf16, #tpu.memory_space<vmem>>, vector<64x4xbf16>
    %cst_21 = arith.constant 0.000000e+00 : f32
    %38 = arith.truncf %cst_21 : f32 to bf16
    %39 = vector.shape_cast %21 : vector<64x1xi1> to vector<64x1xi1>
    %40 = vector.broadcast %39 : vector<64x1xi1> to vector<64x4xi1>
    %41 = vector.broadcast %38 : bf16 to vector<64x4xbf16>
    %42 = arith.select %40, %37, %41 : vector<64x4xi1>, vector<64x4xbf16>
    %c0_22 = arith.constant 0 : index
    %c0_23 = arith.constant 0 : index
    %43 = vector.load %arg3[%c0_22, %c0_23] : memref<36x4xbf16, #tpu.memory_space<vmem>>, vector<4x4xbf16>
    %cst_24 = arith.constant dense<0.000000e+00> : vector<64x4xf32>
    %44 = tpu.matmul %42, %43, %cst_24 {dimension_numbers = #tpu.dot_dimension_numbers<[1], [0], [0], [1], [0, 0, 1, 1], [], []>} : vector<64x4xbf16>, vector<4x4xbf16>, vector<64x4xf32> -> vector<64x4xf32>
    %c8 = arith.constant 8 : index
    %c0_25 = arith.constant 0 : index
    %45 = vector.load %arg9[%c8, %c0_25] : memref<96x4xbf16, #tpu.memory_space<vmem>>, vector<64x4xbf16>
    %c4 = arith.constant 4 : index
    %c0_26 = arith.constant 0 : index
    %46 = vector.load %arg3[%c4, %c0_26] : memref<36x4xbf16, #tpu.memory_space<vmem>>, vector<4x4xbf16>
    %cst_27 = arith.constant dense<0.000000e+00> : vector<64x4xf32>
    %47 = tpu.matmul %45, %46, %cst_27 {dimension_numbers = #tpu.dot_dimension_numbers<[1], [0], [0], [1], [0, 0, 1, 1], [], []>} : vector<64x4xbf16>, vector<4x4xbf16>, vector<64x4xf32> -> vector<64x4xf32>
    %48 = arith.addf %44, %47 : vector<64x4xf32>
    %c9 = arith.constant 9 : index
    %c0_28 = arith.constant 0 : index
    %49 = vector.load %arg9[%c9, %c0_28] : memref<96x4xbf16, #tpu.memory_space<vmem>>, vector<64x4xbf16>
    %cst_29 = arith.constant 0.000000e+00 : f32
    %50 = arith.truncf %cst_29 : f32 to bf16
    %51 = vector.shape_cast %23 : vector<64x1xi1> to vector<64x1xi1>
    %52 = vector.broadcast %51 : vector<64x1xi1> to vector<64x4xi1>
    %53 = vector.broadcast %50 : bf16 to vector<64x4xbf16>
    %54 = arith.select %52, %49, %53 : vector<64x4xi1>, vector<64x4xbf16>
    %c8_30 = arith.constant 8 : index
    %c0_31 = arith.constant 0 : index
    %55 = vector.load %arg3[%c8_30, %c0_31] : memref<36x4xbf16, #tpu.memory_space<vmem>>, vector<4x4xbf16>
    %cst_32 = arith.constant dense<0.000000e+00> : vector<64x4xf32>
    %56 = tpu.matmul %54, %55, %cst_32 {dimension_numbers = #tpu.dot_dimension_numbers<[1], [0], [0], [1], [0, 0, 1, 1], [], []>} : vector<64x4xbf16>, vector<4x4xbf16>, vector<64x4xf32> -> vector<64x4xf32>
    %57 = arith.addf %48, %56 : vector<64x4xf32>
    %c15 = arith.constant 15 : index
    %c0_33 = arith.constant 0 : index
    %58 = vector.load %arg9[%c15, %c0_33] : memref<96x4xbf16, #tpu.memory_space<vmem>>, vector<64x4xbf16>
    %cst_34 = arith.constant 0.000000e+00 : f32
    %59 = arith.truncf %cst_34 : f32 to bf16
    %60 = vector.shape_cast %21 : vector<64x1xi1> to vector<64x1xi1>
    %61 = vector.broadcast %60 : vector<64x1xi1> to vector<64x4xi1>
    %62 = vector.broadcast %59 : bf16 to vector<64x4xbf16>
    %63 = arith.select %61, %58, %62 : vector<64x4xi1>, vector<64x4xbf16>
    %c12 = arith.constant 12 : index
    %c0_35 = arith.constant 0 : index
    %64 = vector.load %arg3[%c12, %c0_35] : memref<36x4xbf16, #tpu.memory_space<vmem>>, vector<4x4xbf16>
    %cst_36 = arith.constant dense<0.000000e+00> : vector<64x4xf32>
    %65 = tpu.matmul %63, %64, %cst_36 {dimension_numbers = #tpu.dot_dimension_numbers<[1], [0], [0], [1], [0, 0, 1, 1], [], []>} : vector<64x4xbf16>, vector<4x4xbf16>, vector<64x4xf32> -> vector<64x4xf32>
    %66 = arith.addf %57, %65 : vector<64x4xf32>
    %c16_37 = arith.constant 16 : index
    %c0_38 = arith.constant 0 : index
    %67 = vector.load %arg9[%c16_37, %c0_38] : memref<96x4xbf16, #tpu.memory_space<vmem>>, vector<64x4xbf16>
    %c16_39 = arith.constant 16 : index
    %c0_40 = arith.constant 0 : index
    %68 = vector.load %arg3[%c16_39, %c0_40] : memref<36x4xbf16, #tpu.memory_space<vmem>>, vector<4x4xbf16>
    %cst_41 = arith.constant dense<0.000000e+00> : vector<64x4xf32>
    %69 = tpu.matmul %67, %68, %cst_41 {dimension_numbers = #tpu.dot_dimension_numbers<[1], [0], [0], [1], [0, 0, 1, 1], [], []>} : vector<64x4xbf16>, vector<4x4xbf16>, vector<64x4xf32> -> vector<64x4xf32>
    %70 = arith.addf %66, %69 : vector<64x4xf32>
    %c17 = arith.constant 17 : index
    %c0_42 = arith.constant 0 : index
    %71 = vector.load %arg9[%c17, %c0_42] : memref<96x4xbf16, #tpu.memory_space<vmem>>, vector<64x4xbf16>
    %cst_43 = arith.constant 0.000000e+00 : f32
    %72 = arith.truncf %cst_43 : f32 to bf16
    %73 = vector.shape_cast %23 : vector<64x1xi1> to vector<64x1xi1>
    %74 = vector.broadcast %73 : vector<64x1xi1> to vector<64x4xi1>
    %75 = vector.broadcast %72 : bf16 to vector<64x4xbf16>
    %76 = arith.select %74, %71, %75 : vector<64x4xi1>, vector<64x4xbf16>
    %c20 = arith.constant 20 : index
    %c0_44 = arith.constant 0 : index
    %77 = vector.load %arg3[%c20, %c0_44] : memref<36x4xbf16, #tpu.memory_space<vmem>>, vector<4x4xbf16>
    %cst_45 = arith.constant dense<0.000000e+00> : vector<64x4xf32>
    %78 = tpu.matmul %76, %77, %cst_45 {dimension_numbers = #tpu.dot_dimension_numbers<[1], [0], [0], [1], [0, 0, 1, 1], [], []>} : vector<64x4xbf16>, vector<4x4xbf16>, vector<64x4xf32> -> vector<64x4xf32>
    %79 = arith.addf %70, %78 : vector<64x4xf32>
    %c23 = arith.constant 23 : index
    %c0_46 = arith.constant 0 : index
    %80 = vector.load %arg9[%c23, %c0_46] : memref<96x4xbf16, #tpu.memory_space<vmem>>, vector<64x4xbf16>
    %cst_47 = arith.constant 0.000000e+00 : f32
    %81 = arith.truncf %cst_47 : f32 to bf16
    %82 = vector.shape_cast %21 : vector<64x1xi1> to vector<64x1xi1>
    %83 = vector.broadcast %82 : vector<64x1xi1> to vector<64x4xi1>
    %84 = vector.broadcast %81 : bf16 to vector<64x4xbf16>
    %85 = arith.select %83, %80, %84 : vector<64x4xi1>, vector<64x4xbf16>
    %c24 = arith.constant 24 : index
    %c0_48 = arith.constant 0 : index
    %86 = vector.load %arg3[%c24, %c0_48] : memref<36x4xbf16, #tpu.memory_space<vmem>>, vector<4x4xbf16>
    %cst_49 = arith.constant dense<0.000000e+00> : vector<64x4xf32>
    %87 = tpu.matmul %85, %86, %cst_49 {dimension_numbers = #tpu.dot_dimension_numbers<[1], [0], [0], [1], [0, 0, 1, 1], [], []>} : vector<64x4xbf16>, vector<4x4xbf16>, vector<64x4xf32> -> vector<64x4xf32>
    %88 = arith.addf %79, %87 : vector<64x4xf32>
    %c24_50 = arith.constant 24 : index
    %c0_51 = arith.constant 0 : index
    %89 = vector.load %arg9[%c24_50, %c0_51] : memref<96x4xbf16, #tpu.memory_space<vmem>>, vector<64x4xbf16>
    %c28 = arith.constant 28 : index
    %c0_52 = arith.constant 0 : index
    %90 = vector.load %arg3[%c28, %c0_52] : memref<36x4xbf16, #tpu.memory_space<vmem>>, vector<4x4xbf16>
    %cst_53 = arith.constant dense<0.000000e+00> : vector<64x4xf32>
    %91 = tpu.matmul %89, %90, %cst_53 {dimension_numbers = #tpu.dot_dimension_numbers<[1], [0], [0], [1], [0, 0, 1, 1], [], []>} : vector<64x4xbf16>, vector<4x4xbf16>, vector<64x4xf32> -> vector<64x4xf32>
    %92 = arith.addf %88, %91 : vector<64x4xf32>
    %c25 = arith.constant 25 : index
    %c0_54 = arith.constant 0 : index
    %93 = vector.load %arg9[%c25, %c0_54] : memref<96x4xbf16, #tpu.memory_space<vmem>>, vector<64x4xbf16>
    %cst_55 = arith.constant 0.000000e+00 : f32
    %94 = arith.truncf %cst_55 : f32 to bf16
    %95 = vector.shape_cast %23 : vector<64x1xi1> to vector<64x1xi1>
    %96 = vector.broadcast %95 : vector<64x1xi1> to vector<64x4xi1>
    %97 = vector.broadcast %94 : bf16 to vector<64x4xbf16>
    %98 = arith.select %96, %93, %97 : vector<64x4xi1>, vector<64x4xbf16>
    %c32 = arith.constant 32 : index
    %c0_56 = arith.constant 0 : index
    %99 = vector.load %arg3[%c32, %c0_56] : memref<36x4xbf16, #tpu.memory_space<vmem>>, vector<4x4xbf16>
    %cst_57 = arith.constant dense<0.000000e+00> : vector<64x4xf32>
    %100 = tpu.matmul %98, %99, %cst_57 {dimension_numbers = #tpu.dot_dimension_numbers<[1], [0], [0], [1], [0, 0, 1, 1], [], []>} : vector<64x4xbf16>, vector<4x4xbf16>, vector<64x4xf32> -> vector<64x4xf32>
    %101 = arith.addf %92, %100 : vector<64x4xf32>
    %102 = vector.broadcast %1 : vector<1x4xf32> to vector<64x4xf32>
    %103 = arith.addf %101, %102 : vector<64x4xf32>
    %cst_58 = arith.constant 0.000000e+00 : f32
    %104 = vector.broadcast %cst_58 : f32 to vector<64x4xf32>
    %105 = arith.maximumf %103, %104 : vector<64x4xf32>
    %106 = arith.truncf %105 : vector<64x4xf32> to vector<64x4xbf16>
    %c0_59 = arith.constant 0 : index
    %c0_60 = arith.constant 0 : index
    %107 = vector.load %arg4[%c0_59, %c0_60] : memref<4x128xbf16, #tpu.memory_space<vmem>>, vector<4x128xbf16>
    %cst_61 = arith.constant dense<0.000000e+00> : vector<64x128xf32>
    %108 = tpu.matmul %106, %107, %cst_61 {dimension_numbers = #tpu.dot_dimension_numbers<[1], [0], [0], [1], [0, 0, 1, 1], [], []>} : vector<64x4xbf16>, vector<4x128xbf16>, vector<64x128xf32> -> vector<64x128xf32>
    %109 = vector.broadcast %2 : vector<1x128xf32> to vector<64x128xf32>
    %110 = arith.addf %108, %109 : vector<64x128xf32>
    %111 = arith.extf %28 : vector<64x128xbf16> to vector<64x128xf32>
    %112 = arith.addf %110, %111 : vector<64x128xf32>
    %cst_62 = arith.constant 0.000000e+00 : f32
    %113 = vector.broadcast %cst_62 : f32 to vector<64x128xf32>
    %114 = arith.maximumf %112, %113 : vector<64x128xf32>
    %115 = arith.truncf %114 : vector<64x128xf32> to vector<64x128xbf16>
    %c0_63 = arith.constant 0 : index
    %c0_64 = arith.constant 0 : index
    %c0_65 = arith.constant 0 : index
    %116 = vector.load %arg8[%c0_63, %c0_64, %c0_65] : memref<1x64x128xbf16, #tpu.memory_space<vmem>>, vector<1x64x128xbf16>
    %117 = vector.shape_cast %116 : vector<1x64x128xbf16> to vector<64x128xbf16>
    %118 = vector.shape_cast %115 : vector<64x128xbf16> to vector<1x64x128xbf16>
    tpu.vector_store %arg8[%c0_63, %c0_64, %c0_65], %118 {strides = array<i32>} : memref<1x64x128xbf16, #tpu.memory_space<vmem>>, vector<1x64x128xbf16>,
    return
  }
  func.func @transform_0(%arg0: i32) -> (i32, i32, i32) {
    %c0_i32 = arith.constant 0 : i32
    %c0_i32_0 = arith.constant 0 : i32
    %c0_i32_1 = arith.constant 0 : i32
    return %arg0, %c0_i32, %c0_i32_0 : i32, i32, i32
  }
  func.func @transform_1(%arg0: i32) -> (i32, i32) {
    %c0_i32 = arith.constant 0 : i32
    %c0_i32_0 = arith.constant 0 : i32
    %c0_i32_1 = arith.constant 0 : i32
    return %c0_i32, %c0_i32_0 : i32, i32
  }
  func.func @transform_2(%arg0: i32) -> (i32, i32) {
    %c0_i32 = arith.constant 0 : i32
    %c0_i32_0 = arith.constant 0 : i32
    %c0_i32_1 = arith.constant 0 : i32
    return %c0_i32, %c0_i32_0 : i32, i32
  }
  func.func @transform_3(%arg0: i32) -> (i32, i32) {
    %c0_i32 = arith.constant 0 : i32
    %c0_i32_0 = arith.constant 0 : i32
    %c0_i32_1 = arith.constant 0 : i32
    return %c0_i32, %c0_i32_0 : i32, i32
  }
  func.func @transform_4(%arg0: i32) -> (i32, i32) {
    %c0_i32 = arith.constant 0 : i32
    %c0_i32_0 = arith.constant 0 : i32
    %c0_i32_1 = arith.constant 0 : i32
    return %c0_i32, %c0_i32_0 : i32, i32
  }
  func.func @transform_5(%arg0: i32) -> (i32, i32) {
    %c0_i32 = arith.constant 0 : i32
    %c0_i32_0 = arith.constant 0 : i32
    %c0_i32_1 = arith.constant 0 : i32
    return %c0_i32, %c0_i32_0 : i32, i32
  }
  func.func @transform_6(%arg0: i32) -> (i32, i32) {
    %c0_i32 = arith.constant 0 : i32
    %c0_i32_0 = arith.constant 0 : i32
    %c0_i32_1 = arith.constant 0 : i32
    return %c0_i32, %c0_i32_0 : i32, i32
  }
  func.func @transform_7(%arg0: i32) -> (i32, i32, i32) {
    %c0_i32 = arith.constant 0 : i32
    %c0_i32_0 = arith.constant 0 : i32
    %c0_i32_1 = arith.constant 0 : i32
    return %arg0, %c0_i32, %c0_i32_0 : i32, i32, i32
  }
}

module attributes {stable_mosaic.version = 11 : i64} {
  func.func @bottleneck_kernel(%arg0: i32, %arg1: memref<1x64x128xbf16, #tpu.memory_space<vmem>>, %arg2: memref<128x4xbf16, #tpu.memory_space<vmem>>, %arg3: memref<36x4xbf16, #tpu.memory_space<vmem>>, %arg4: memref<4x128xbf16, #tpu.memory_space<vmem>>, %arg5: memref<1x4xf32, #tpu.memory_space<vmem>>, %arg6: memref<1x4xf32, #tpu.memory_space<vmem>>, %arg7: memref<1x128xf32, #tpu.memory_space<vmem>>, %arg8: memref<1x64x128xbf16, #tpu.memory_space<vmem>>, %arg9: memref<96x4xbf16, #tpu.memory_space<vmem>>) attributes {dimension_semantics = [#tpu.dimension_semantics<parallel>], iteration_bounds = array<i64: 2>, scalar_prefetch = 0 : i64, scratch_operands = 1 : i64, tpu.core_type = #tpu.core_type<tc>, window_params = [{transform_indices = @transform_0, window_bounds = array<i64: 1, 64, 128>}, {pipeline_mode = #tpu.pipeline_mode<synchronous>, transform_indices = @transform_1, window_bounds = array<i64: 128, 4>}, {pipeline_mode = #tpu.pipeline_mode<synchronous>, transform_indices = @transform_2, window_bounds = array<i64: 36, 4>}, {pipeline_mode = #tpu.pipeline_mode<synchronous>, transform_indices = @transform_3, window_bounds = array<i64: 4, 128>}, {pipeline_mode = #tpu.pipeline_mode<synchronous>, transform_indices = @transform_4, window_bounds = array<i64: 1, 4>}, {pipeline_mode = #tpu.pipeline_mode<synchronous>, transform_indices = @transform_5, window_bounds = array<i64: 1, 4>}, {pipeline_mode = #tpu.pipeline_mode<synchronous>, transform_indices = @transform_6, window_bounds = array<i64: 1, 128>}, {transform_indices = @transform_7, window_bounds = array<i64: 1, 64, 128>}]} {
    %c0 = arith.constant 0 : index
    %c0_0 = arith.constant 0 : index
    %0 = vector.load %arg5[%c0, %c0_0] : memref<1x4xf32, #tpu.memory_space<vmem>>, vector<1x4xf32>
    %c0_1 = arith.constant 0 : index
    %c0_2 = arith.constant 0 : index
    %1 = vector.load %arg6[%c0_1, %c0_2] : memref<1x4xf32, #tpu.memory_space<vmem>>, vector<1x4xf32>
    %c0_3 = arith.constant 0 : index
    %c0_4 = arith.constant 0 : index
    %2 = vector.load %arg7[%c0_3, %c0_4] : memref<1x128xf32, #tpu.memory_space<vmem>>, vector<1x128xf32>
    %3 = tpu.iota {dimensions = array<i32: 0>} : vector<64x1xi32>
    %c8_i32 = arith.constant 8 : i32
    %c0_i32 = arith.constant 0 : i32
    %4 = arith.cmpi eq, %c8_i32, %c0_i32 : i32
    %c1_i32 = arith.constant 1 : i32
    %5 = arith.select %4, %c1_i32, %c8_i32 : i32
    %6 = vector.broadcast %5 : i32 to vector<64x1xi32>
    %7 = arith.remsi %3, %6 : vector<64x1xi32>
    %c0_i32_5 = arith.constant 0 : i32
    %8 = vector.broadcast %c0_i32_5 : i32 to vector<64x1xi32>
    %9 = arith.cmpi ne, %7, %8 : vector<64x1xi32>
    %c0_i32_6 = arith.constant 0 : i32
    %10 = vector.broadcast %c0_i32_6 : i32 to vector<64x1xi32>
    %11 = arith.cmpi slt, %7, %10 : vector<64x1xi32>
    %c0_i32_7 = arith.constant 0 : i32
    %12 = arith.cmpi slt, %5, %c0_i32_7 : i32
    %13 = vector.broadcast %12 : i1 to vector<64x1xi1>
    %14 = vector.broadcast %13 : vector<64x1xi1> to vector<64x1xi1>
    %15 = arith.xori %11, %14 : vector<64x1xi1>
    %16 = arith.andi %15, %9 : vector<64x1xi1>
    %17 = vector.broadcast %5 : i32 to vector<64x1xi32>
    %18 = arith.addi %7, %17 : vector<64x1xi32>
    %19 = arith.select %16, %18, %7 : vector<64x1xi1>, vector<64x1xi32>
    %c1_i32_8 = arith.constant 1 : i32
    %20 = vector.broadcast %c1_i32_8 : i32 to vector<64x1xi32>
    %21 = arith.cmpi sge, %19, %20 : vector<64x1xi32>
    %c6_i32 = arith.constant 6 : i32
    %22 = vector.broadcast %c6_i32 : i32 to vector<64x1xi32>
    %23 = arith.cmpi sle, %19, %22 : vector<64x1xi32>
    %cst = arith.constant 0.000000e+00 : bf16
    %24 = vector.broadcast %cst : bf16 to vector<16x4xbf16>
    %c0_9 = arith.constant 0 : index
    %c0_10 = arith.constant 0 : index
    %25 = vector.load %arg9[%c0_9, %c0_10] : memref<96x4xbf16, #tpu.memory_space<vmem>>, vector<16x4xbf16>
    tpu.vector_store %arg9[%c0_9, %c0_10], %24 {strides = array<i32>} : memref<96x4xbf16, #tpu.memory_space<vmem>>, vector<16x4xbf16>,
    %c80 = arith.constant 80 : index
    %c0_11 = arith.constant 0 : index
    %26 = vector.load %arg9[%c80, %c0_11] : memref<96x4xbf16, #tpu.memory_space<vmem>>, vector<16x4xbf16>
    tpu.vector_store %arg9[%c80, %c0_11], %24 {strides = array<i32>} : memref<96x4xbf16, #tpu.memory_space<vmem>>, vector<16x4xbf16>,
    %c0_12 = arith.constant 0 : index
    %c0_13 = arith.constant 0 : index
    %c0_14 = arith.constant 0 : index
    %27 = vector.load %arg1[%c0_12, %c0_13, %c0_14] : memref<1x64x128xbf16, #tpu.memory_space<vmem>>, vector<1x64x128xbf16>
    %28 = vector.shape_cast %27 : vector<1x64x128xbf16> to vector<64x128xbf16>
    %c0_15 = arith.constant 0 : index
    %c0_16 = arith.constant 0 : index
    %29 = vector.load %arg2[%c0_15, %c0_16] : memref<128x4xbf16, #tpu.memory_space<vmem>>, vector<128x4xbf16>
    %cst_17 = arith.constant dense<0.000000e+00> : vector<64x4xf32>
    %30 = tpu.matmul %28, %29, %cst_17 {dimension_numbers = #tpu.dot_dimension_numbers<[1], [0], [0], [1], [0, 0, 1, 1], [], []>} : vector<64x128xbf16>, vector<128x4xbf16>, vector<64x4xf32> -> vector<64x4xf32>
    %31 = vector.broadcast %0 : vector<1x4xf32> to vector<64x4xf32>
    %32 = arith.addf %30, %31 : vector<64x4xf32>
    %cst_18 = arith.constant 0.000000e+00 : f32
    %33 = vector.broadcast %cst_18 : f32 to vector<64x4xf32>
    %34 = arith.maximumf %32, %33 : vector<64x4xf32>
    %35 = arith.truncf %34 : vector<64x4xf32> to vector<64x4xbf16>
    %c16 = arith.constant 16 : index
    %c0_19 = arith.constant 0 : index
    %36 = vector.load %arg9[%c16, %c0_19] : memref<96x4xbf16, #tpu.memory_space<vmem>>, vector<64x4xbf16>
    tpu.vector_store %arg9[%c16, %c0_19], %35 {strides = array<i32>} : memref<96x4xbf16, #tpu.memory_space<vmem>>, vector<64x4xbf16>,
    %c7 = arith.constant 7 : index
    %c0_20 = arith.constant 0 : index
    %37 = vector.load %arg9[%c7, %c0_20] : memref<96x4xbf16, #tpu.memory_space<vmem>>, vector<64x4xbf16>
    %cst_21 = arith.constant 0.000000e+00 : f32
    %38 = arith.truncf %cst_21 : f32 to bf16
    %39 = vector.shape_cast %21 : vector<64x1xi1> to vector<64x1xi1>
    %40 = vector.broadcast %39 : vector<64x1xi1> to vector<64x4xi1>
    %41 = vector.broadcast %38 : bf16 to vector<64x4xbf16>
    %42 = arith.select %40, %37, %41 : vector<64x4xi1>, vector<64x4xbf16>
    %c0_22 = arith.constant 0 : index
    %c0_23 = arith.constant 0 : index
    %43 = vector.load %arg3[%c0_22, %c0_23] : memref<36x4xbf16, #tpu.memory_space<vmem>>, vector<4x4xbf16>
    %cst_24 = arith.constant dense<0.000000e+00> : vector<64x4xf32>
    %44 = tpu.matmul %42, %43, %cst_24 {dimension_numbers = #tpu.dot_dimension_numbers<[1], [0], [0], [1], [0, 0, 1, 1], [], []>} : vector<64x4xbf16>, vector<4x4xbf16>, vector<64x4xf32> -> vector<64x4xf32>
    %c8 = arith.constant 8 : index
    %c0_25 = arith.constant 0 : index
    %45 = vector.load %arg9[%c8, %c0_25] : memref<96x4xbf16, #tpu.memory_space<vmem>>, vector<64x4xbf16>
    %c4 = arith.constant 4 : index
    %c0_26 = arith.constant 0 : index
    %46 = vector.load %arg3[%c4, %c0_26] : memref<36x4xbf16, #tpu.memory_space<vmem>>, vector<4x4xbf16>
    %cst_27 = arith.constant dense<0.000000e+00> : vector<64x4xf32>
    %47 = tpu.matmul %45, %46, %cst_27 {dimension_numbers = #tpu.dot_dimension_numbers<[1], [0], [0], [1], [0, 0, 1, 1], [], []>} : vector<64x4xbf16>, vector<4x4xbf16>, vector<64x4xf32> -> vector<64x4xf32>
    %48 = arith.addf %44, %47 : vector<64x4xf32>
    %c9 = arith.constant 9 : index
    %c0_28 = arith.constant 0 : index
    %49 = vector.load %arg9[%c9, %c0_28] : memref<96x4xbf16, #tpu.memory_space<vmem>>, vector<64x4xbf16>
    %cst_29 = arith.constant 0.000000e+00 : f32
    %50 = arith.truncf %cst_29 : f32 to bf16
    %51 = vector.shape_cast %23 : vector<64x1xi1> to vector<64x1xi1>
    %52 = vector.broadcast %51 : vector<64x1xi1> to vector<64x4xi1>
    %53 = vector.broadcast %50 : bf16 to vector<64x4xbf16>
    %54 = arith.select %52, %49, %53 : vector<64x4xi1>, vector<64x4xbf16>
    %c8_30 = arith.constant 8 : index
    %c0_31 = arith.constant 0 : index
    %55 = vector.load %arg3[%c8_30, %c0_31] : memref<36x4xbf16, #tpu.memory_space<vmem>>, vector<4x4xbf16>
    %cst_32 = arith.constant dense<0.000000e+00> : vector<64x4xf32>
    %56 = tpu.matmul %54, %55, %cst_32 {dimension_numbers = #tpu.dot_dimension_numbers<[1], [0], [0], [1], [0, 0, 1, 1], [], []>} : vector<64x4xbf16>, vector<4x4xbf16>, vector<64x4xf32> -> vector<64x4xf32>
    %57 = arith.addf %48, %56 : vector<64x4xf32>
    %c15 = arith.constant 15 : index
    %c0_33 = arith.constant 0 : index
    %58 = vector.load %arg9[%c15, %c0_33] : memref<96x4xbf16, #tpu.memory_space<vmem>>, vector<64x4xbf16>
    %cst_34 = arith.constant 0.000000e+00 : f32
    %59 = arith.truncf %cst_34 : f32 to bf16
    %60 = vector.shape_cast %21 : vector<64x1xi1> to vector<64x1xi1>
    %61 = vector.broadcast %60 : vector<64x1xi1> to vector<64x4xi1>
    %62 = vector.broadcast %59 : bf16 to vector<64x4xbf16>
    %63 = arith.select %61, %58, %62 : vector<64x4xi1>, vector<64x4xbf16>
    %c12 = arith.constant 12 : index
    %c0_35 = arith.constant 0 : index
    %64 = vector.load %arg3[%c12, %c0_35] : memref<36x4xbf16, #tpu.memory_space<vmem>>, vector<4x4xbf16>
    %cst_36 = arith.constant dense<0.000000e+00> : vector<64x4xf32>
    %65 = tpu.matmul %63, %64, %cst_36 {dimension_numbers = #tpu.dot_dimension_numbers<[1], [0], [0], [1], [0, 0, 1, 1], [], []>} : vector<64x4xbf16>, vector<4x4xbf16>, vector<64x4xf32> -> vector<64x4xf32>
    %66 = arith.addf %57, %65 : vector<64x4xf32>
    %c16_37 = arith.constant 16 : index
    %c0_38 = arith.constant 0 : index
    %67 = vector.load %arg9[%c16_37, %c0_38] : memref<96x4xbf16, #tpu.memory_space<vmem>>, vector<64x4xbf16>
    %c16_39 = arith.constant 16 : index
    %c0_40 = arith.constant 0 : index
    %68 = vector.load %arg3[%c16_39, %c0_40] : memref<36x4xbf16, #tpu.memory_space<vmem>>, vector<4x4xbf16>
    %cst_41 = arith.constant dense<0.000000e+00> : vector<64x4xf32>
    %69 = tpu.matmul %67, %68, %cst_41 {dimension_numbers = #tpu.dot_dimension_numbers<[1], [0], [0], [1], [0, 0, 1, 1], [], []>} : vector<64x4xbf16>, vector<4x4xbf16>, vector<64x4xf32> -> vector<64x4xf32>
    %70 = arith.addf %66, %69 : vector<64x4xf32>
    %c17 = arith.constant 17 : index
    %c0_42 = arith.constant 0 : index
    %71 = vector.load %arg9[%c17, %c0_42] : memref<96x4xbf16, #tpu.memory_space<vmem>>, vector<64x4xbf16>
    %cst_43 = arith.constant 0.000000e+00 : f32
    %72 = arith.truncf %cst_43 : f32 to bf16
    %73 = vector.shape_cast %23 : vector<64x1xi1> to vector<64x1xi1>
    %74 = vector.broadcast %73 : vector<64x1xi1> to vector<64x4xi1>
    %75 = vector.broadcast %72 : bf16 to vector<64x4xbf16>
    %76 = arith.select %74, %71, %75 : vector<64x4xi1>, vector<64x4xbf16>
    %c20 = arith.constant 20 : index
    %c0_44 = arith.constant 0 : index
    %77 = vector.load %arg3[%c20, %c0_44] : memref<36x4xbf16, #tpu.memory_space<vmem>>, vector<4x4xbf16>
    %cst_45 = arith.constant dense<0.000000e+00> : vector<64x4xf32>
    %78 = tpu.matmul %76, %77, %cst_45 {dimension_numbers = #tpu.dot_dimension_numbers<[1], [0], [0], [1], [0, 0, 1, 1], [], []>} : vector<64x4xbf16>, vector<4x4xbf16>, vector<64x4xf32> -> vector<64x4xf32>
    %79 = arith.addf %70, %78 : vector<64x4xf32>
    %c23 = arith.constant 23 : index
    %c0_46 = arith.constant 0 : index
    %80 = vector.load %arg9[%c23, %c0_46] : memref<96x4xbf16, #tpu.memory_space<vmem>>, vector<64x4xbf16>
    %cst_47 = arith.constant 0.000000e+00 : f32
    %81 = arith.truncf %cst_47 : f32 to bf16
    %82 = vector.shape_cast %21 : vector<64x1xi1> to vector<64x1xi1>
    %83 = vector.broadcast %82 : vector<64x1xi1> to vector<64x4xi1>
    %84 = vector.broadcast %81 : bf16 to vector<64x4xbf16>
    %85 = arith.select %83, %80, %84 : vector<64x4xi1>, vector<64x4xbf16>
    %c24 = arith.constant 24 : index
    %c0_48 = arith.constant 0 : index
    %86 = vector.load %arg3[%c24, %c0_48] : memref<36x4xbf16, #tpu.memory_space<vmem>>, vector<4x4xbf16>
    %cst_49 = arith.constant dense<0.000000e+00> : vector<64x4xf32>
    %87 = tpu.matmul %85, %86, %cst_49 {dimension_numbers = #tpu.dot_dimension_numbers<[1], [0], [0], [1], [0, 0, 1, 1], [], []>} : vector<64x4xbf16>, vector<4x4xbf16>, vector<64x4xf32> -> vector<64x4xf32>
    %88 = arith.addf %79, %87 : vector<64x4xf32>
    %c24_50 = arith.constant 24 : index
    %c0_51 = arith.constant 0 : index
    %89 = vector.load %arg9[%c24_50, %c0_51] : memref<96x4xbf16, #tpu.memory_space<vmem>>, vector<64x4xbf16>
    %c28 = arith.constant 28 : index
    %c0_52 = arith.constant 0 : index
    %90 = vector.load %arg3[%c28, %c0_52] : memref<36x4xbf16, #tpu.memory_space<vmem>>, vector<4x4xbf16>
    %cst_53 = arith.constant dense<0.000000e+00> : vector<64x4xf32>
    %91 = tpu.matmul %89, %90, %cst_53 {dimension_numbers = #tpu.dot_dimension_numbers<[1], [0], [0], [1], [0, 0, 1, 1], [], []>} : vector<64x4xbf16>, vector<4x4xbf16>, vector<64x4xf32> -> vector<64x4xf32>
    %92 = arith.addf %88, %91 : vector<64x4xf32>
    %c25 = arith.constant 25 : index
    %c0_54 = arith.constant 0 : index
    %93 = vector.load %arg9[%c25, %c0_54] : memref<96x4xbf16, #tpu.memory_space<vmem>>, vector<64x4xbf16>
    %cst_55 = arith.constant 0.000000e+00 : f32
    %94 = arith.truncf %cst_55 : f32 to bf16
    %95 = vector.shape_cast %23 : vector<64x1xi1> to vector<64x1xi1>
    %96 = vector.broadcast %95 : vector<64x1xi1> to vector<64x4xi1>
    %97 = vector.broadcast %94 : bf16 to vector<64x4xbf16>
    %98 = arith.select %96, %93, %97 : vector<64x4xi1>, vector<64x4xbf16>
    %c32 = arith.constant 32 : index
    %c0_56 = arith.constant 0 : index
    %99 = vector.load %arg3[%c32, %c0_56] : memref<36x4xbf16, #tpu.memory_space<vmem>>, vector<4x4xbf16>
    %cst_57 = arith.constant dense<0.000000e+00> : vector<64x4xf32>
    %100 = tpu.matmul %98, %99, %cst_57 {dimension_numbers = #tpu.dot_dimension_numbers<[1], [0], [0], [1], [0, 0, 1, 1], [], []>} : vector<64x4xbf16>, vector<4x4xbf16>, vector<64x4xf32> -> vector<64x4xf32>
    %101 = arith.addf %92, %100 : vector<64x4xf32>
    %102 = vector.broadcast %1 : vector<1x4xf32> to vector<64x4xf32>
    %103 = arith.addf %101, %102 : vector<64x4xf32>
    %cst_58 = arith.constant 0.000000e+00 : f32
    %104 = vector.broadcast %cst_58 : f32 to vector<64x4xf32>
    %105 = arith.maximumf %103, %104 : vector<64x4xf32>
    %106 = arith.truncf %105 : vector<64x4xf32> to vector<64x4xbf16>
    %c0_59 = arith.constant 0 : index
    %c0_60 = arith.constant 0 : index
    %107 = vector.load %arg4[%c0_59, %c0_60] : memref<4x128xbf16, #tpu.memory_space<vmem>>, vector<4x128xbf16>
    %cst_61 = arith.constant dense<0.000000e+00> : vector<64x128xf32>
    %108 = tpu.matmul %106, %107, %cst_61 {dimension_numbers = #tpu.dot_dimension_numbers<[1], [0], [0], [1], [0, 0, 1, 1], [], []>} : vector<64x4xbf16>, vector<4x128xbf16>, vector<64x128xf32> -> vector<64x128xf32>
    %109 = vector.broadcast %2 : vector<1x128xf32> to vector<64x128xf32>
    %110 = arith.addf %108, %109 : vector<64x128xf32>
    %111 = arith.extf %28 : vector<64x128xbf16> to vector<64x128xf32>
    %112 = arith.addf %110, %111 : vector<64x128xf32>
    %cst_62 = arith.constant 0.000000e+00 : f32
    %113 = vector.broadcast %cst_62 : f32 to vector<64x128xf32>
    %114 = arith.maximumf %112, %113 : vector<64x128xf32>
    %115 = arith.truncf %114 : vector<64x128xf32> to vector<64x128xbf16>
    %c0_63 = arith.constant 0 : index
    %c0_64 = arith.constant 0 : index
    %c0_65 = arith.constant 0 : index
    %116 = vector.load %arg8[%c0_63, %c0_64, %c0_65] : memref<1x64x128xbf16, #tpu.memory_space<vmem>>, vector<1x64x128xbf16>
    %117 = vector.shape_cast %116 : vector<1x64x128xbf16> to vector<64x128xbf16>
    %118 = vector.shape_cast %115 : vector<64x128xbf16> to vector<1x64x128xbf16>
    tpu.vector_store %arg8[%c0_63, %c0_64, %c0_65], %118 {strides = array<i32>} : memref<1x64x128xbf16, #tpu.memory_space<vmem>>, vector<1x64x128xbf16>,
    return
  }
  func.func @transform_0(%arg0: i32) -> (i32, i32, i32) {
    %c0_i32 = arith.constant 0 : i32
    %c0_i32_0 = arith.constant 0 : i32
    %c0_i32_1 = arith.constant 0 : i32
    return %arg0, %c0_i32, %c0_i32_0 : i32, i32, i32
  }
  func.func @transform_1(%arg0: i32) -> (i32, i32) {
    %c0_i32 = arith.constant 0 : i32
    %c0_i32_0 = arith.constant 0 : i32
    %c0_i32_1 = arith.constant 0 : i32
    return %c0_i32, %c0_i32_0 : i32, i32
  }
  func.func @transform_2(%arg0: i32) -> (i32, i32) {
    %c0_i32 = arith.constant 0 : i32
    %c0_i32_0 = arith.constant 0 : i32
    %c0_i32_1 = arith.constant 0 : i32
    return %c0_i32, %c0_i32_0 : i32, i32
  }
  func.func @transform_3(%arg0: i32) -> (i32, i32) {
    %c0_i32 = arith.constant 0 : i32
    %c0_i32_0 = arith.constant 0 : i32
    %c0_i32_1 = arith.constant 0 : i32
    return %c0_i32, %c0_i32_0 : i32, i32
  }
  func.func @transform_4(%arg0: i32) -> (i32, i32) {
    %c0_i32 = arith.constant 0 : i32
    %c0_i32_0 = arith.constant 0 : i32
    %c0_i32_1 = arith.constant 0 : i32
    return %c0_i32, %c0_i32_0 : i32, i32
  }
  func.func @transform_5(%arg0: i32) -> (i32, i32) {
    %c0_i32 = arith.constant 0 : i32
    %c0_i32_0 = arith.constant 0 : i32
    %c0_i32_1 = arith.constant 0 : i32
    return %c0_i32, %c0_i32_0 : i32, i32
  }
  func.func @transform_6(%arg0: i32) -> (i32, i32) {
    %c0_i32 = arith.constant 0 : i32
    %c0_i32_0 = arith.constant 0 : i32
    %c0_i32_1 = arith.constant 0 : i32
    return %c0_i32, %c0_i32_0 : i32, i32
  }
  func.func @transform_7(%arg0: i32) -> (i32, i32, i32) {
    %c0_i32 = arith.constant 0 : i32
    %c0_i32_0 = arith.constant 0 : i32
    %c0_i32_1 = arith.constant 0 : i32
    return %arg0, %c0_i32, %c0_i32_0 : i32, i32, i32
  }
}

</mosaic_0001>

<llo_original>
// kernel: tpu_custom_call.1
$region0: #{tpu_custom_call.1}
  #allocation0 [shape = 'u32[]', space=smem, size = 0x4, offset = 0x4, fixed_abs, tag = 'smem constant byte address 0x4 - core index']
  #allocation1 [shape = 'u32[144,128]{1,0:T(1,128)}', space=vmem, size = 0x12000, scoped, tag = 'internal scratch']
  #allocation2 [shape = 'bf16[96,4]{1,0:T(16,128)(2,1)}', space=vmem, size = 0x6000, scoped, tag = 'scratch operand']
  %s0 = inlined_call_operand.vmem [shape: bf16[2,64,128], index: 0, kind: input, shape index: {}]
  %s1 = inlined_call_operand.vmem [shape: bf16[128,4], index: 1, kind: input, shape index: {}]
  %s2 = inlined_call_operand.vmem [shape: bf16[36,4], index: 2, kind: input, shape index: {}]
  %s3 = inlined_call_operand.vmem [shape: bf16[4,128], index: 3, kind: input, shape index: {}]
  %s4 = inlined_call_operand.vmem [shape: f32[1,4], index: 4, kind: input, shape index: {}]
  %s5 = inlined_call_operand.vmem [shape: f32[1,4], index: 5, kind: input, shape index: {}]
  %s6 = inlined_call_operand.vmem [shape: f32[1,128], index: 6, kind: input, shape index: {}]
  %s7 = inlined_call_operand.hbm [shape: bf16[2,64,128], index: 7, kind: output, shape index: {}]
  %s8 = sld [smem:[#allocation0]]
  $region61: #{tpu_custom_call.1} parent=0
    _
  %s10 = ssub.s32 1, %s8
  %s11 = scalar_select 0, %s10, %s8
  $region1: #{tpu_custom_call.1} parent=0
    #allocation3 [shape = 'u8[32768]{0}', space=vmem, size = 0x8000, scoped, tag = 'output window, operand 0']
    #allocation4 [shape = 's32[2]{0}', space=sflag, size = 0x8, scoped, tag = 'scoped memory for tpu_custom_call.1']
    %12 = vsyncpa [#allocation4], 0
    %s13 = scalar_lea.sflag [#allocation4], 1
    %14 = vsyncpa %s13, 0
    loop: start=0, step=1, limit=4
    $region2: #{tpu_custom_call.1} parent=1 // loop_pre_header
      _
    $region3: #{tpu_custom_call.1} parent=1 // loop_header
      %s16 = sphi 0, %s20
      %p17 = scmp.ge.s32.totalorder %s16, 4
      %s26 = sphi 0, %s28
      %s29 = sphi 0, %s26
      %s30 = sphi 0, %s29
      %s46 = sphi 0, %s30
      %s50 = sphi 0, %s50
      %s52 = sphi 0, %s50
      %s53 = sphi 0, %s52
      %s67 = sphi 0, %s53
      %s71 = sphi 0, %s71
      %s73 = sphi 0, %s71
      %s74 = sphi 0, %s73
      %s88 = sphi 0, %s74
      %s92 = sphi 0, %s92
      %s94 = sphi 0, %s92
      %s95 = sphi 0, %s94
      %s109 = sphi 0, %s95
      %s113 = sphi 0, %s113
      %s115 = sphi 0, %s113
      %s116 = sphi 0, %s115
      %s130 = sphi 0, %s116
      %s134 = sphi 0, %s134
      %s136 = sphi 0, %s134
      %s137 = sphi 0, %s136
      %s151 = sphi 0, %s137
      %s155 = sphi 0, %s155
      %s157 = sphi 0, %s155
      %s158 = sphi 0, %s157
      %s172 = sphi 0, %s158
      %s178 = sphi 0, %s180
      %s181 = sphi 0, %s178
      %s182 = sphi 0, %s181
      %s198 = sphi 0, %s182
    $region4: #{tpu_custom_call.1} parent=1 // loop_header_branch
      %19 = sbr.rel (%p17) target = $region8
    $region5: #{tpu_custom_call.1} parent=1 // loop_body
      %s21 = ssub.s32 %s16, 1
      %s22 = ssub.s32 %s16, 2
      %s23 = sadd.s32 %s16, 1
      %s24 = ssub.s32 %s16, %s23
      %p25 = scmp.eq.s32.totalorder %s24, 0
      %s27 = sadd.s32 %s26, 1
      %s28 = scalar_select %p25, %s26, %s27
      %p31 = pneg %p25
      %p32 = scmp.eq.s32.totalorder %s16, 1
      %p33 = por %p31, %p32
      %p34 = scmp.ne.s32.totalorder %s26, %s29
      %p35 = scmp.eq.s32.totalorder %s16, 0
      %p36 = por %p34, %p35
      %p37 = scmp.ne.s32.totalorder %s26, %s29
      %p38 = scmp.eq.s32.totalorder %s21, 1
      %p39 = por %p37, %p38
      %p40 = scmp.ne.s32.totalorder %s29, %s30
      %p41 = scmp.eq.s32.totalorder %s21, 0
      %p42 = por %p40, %p41
      %p43 = scmp.ne.s32.totalorder %s29, %s30
      %p44 = scmp.eq.s32.totalorder %s22, 1
      %p45 = por %p43, %p44
      %p47 = scmp.ne.s32.totalorder %s30, %s46
      %p48 = scmp.eq.s32.totalorder %s22, 0
      %p49 = por %p47, %p48
      %s51 = sadd.s32 %s50, 1
      %p54 = scmp.eq.s32.totalorder %s16, 1
      %p55 = scmp.ne.s32.totalorder %s50, %s52
      %p56 = scmp.eq.s32.totalorder %s16, 0
      %p57 = por %p55, %p56
      %p58 = scmp.ne.s32.totalorder %s50, %s52
      %p59 = scmp.eq.s32.totalorder %s21, 1
      %p60 = por %p58, %p59
      %p61 = scmp.ne.s32.totalorder %s52, %s53
      %p62 = scmp.eq.s32.totalorder %s21, 0
      %p63 = por %p61, %p62
      %p64 = scmp.ne.s32.totalorder %s52, %s53
      %p65 = scmp.eq.s32.totalorder %s22, 1
      %p66 = por %p64, %p65
      %p68 = scmp.ne.s32.totalorder %s53, %s67
      %p69 = scmp.eq.s32.totalorder %s22, 0
      %p70 = por %p68, %p69
      %s72 = sadd.s32 %s71, 1
      %p75 = scmp.eq.s32.totalorder %s16, 1
      %p76 = scmp.ne.s32.totalorder %s71, %s73
      %p77 = scmp.eq.s32.totalorder %s16, 0
      %p78 = por %p76, %p77
      %p79 = scmp.ne.s32.totalorder %s71, %s73
      %p80 = scmp.eq.s32.totalorder %s21, 1
      %p81 = por %p79, %p80
      %p82 = scmp.ne.s32.totalorder %s73, %s74
      %p83 = scmp.eq.s32.totalorder %s21, 0
      %p84 = por %p82, %p83
      %p85 = scmp.ne.s32.totalorder %s73, %s74
      %p86 = scmp.eq.s32.totalorder %s22, 1
      %p87 = por %p85, %p86
      %p89 = scmp.ne.s32.totalorder %s74, %s88
      %p90 = scmp.eq.s32.totalorder %s22, 0
      %p91 = por %p89, %p90
      %s93 = sadd.s32 %s92, 1
      %p96 = scmp.eq.s32.totalorder %s16, 1
      %p97 = scmp.ne.s32.totalorder %s92, %s94
      %p98 = scmp.eq.s32.totalorder %s16, 0
      %p99 = por %p97, %p98
      %p100 = scmp.ne.s32.totalorder %s92, %s94
      %p101 = scmp.eq.s32.totalorder %s21, 1
      %p102 = por %p100, %p101
      %p103 = scmp.ne.s32.totalorder %s94, %s95
      %p104 = scmp.eq.s32.totalorder %s21, 0
      %p105 = por %p103, %p104
      %p106 = scmp.ne.s32.totalorder %s94, %s95
      %p107 = scmp.eq.s32.totalorder %s22, 1
      %p108 = por %p106, %p107
      %p110 = scmp.ne.s32.totalorder %s95, %s109
      %p111 = scmp.eq.s32.totalorder %s22, 0
      %p112 = por %p110, %p111
      %s114 = sadd.s32 %s113, 1
      %p117 = scmp.eq.s32.totalorder %s16, 1
      %p118 = scmp.ne.s32.totalorder %s113, %s115
      %p119 = scmp.eq.s32.totalorder %s16, 0
      %p120 = por %p118, %p119
      %p121 = scmp.ne.s32.totalorder %s113, %s115
      %p122 = scmp.eq.s32.totalorder %s21, 1
      %p123 = por %p121, %p122
      %p124 = scmp.ne.s32.totalorder %s115, %s116
      %p125 = scmp.eq.s32.totalorder %s21, 0
      %p126 = por %p124, %p125
      %p127 = scmp.ne.s32.totalorder %s115, %s116
      %p128 = scmp.eq.s32.totalorder %s22, 1
      %p129 = por %p127, %p128
      %p131 = scmp.ne.s32.totalorder %s116, %s130
      %p132 = scmp.eq.s32.totalorder %s22, 0
      %p133 = por %p131, %p132
      %s135 = sadd.s32 %s134, 1
      %p138 = scmp.eq.s32.totalorder %s16, 1
      %p139 = scmp.ne.s32.totalorder %s134, %s136
      %p140 = scmp.eq.s32.totalorder %s16, 0
      %p141 = por %p139, %p140
      %p142 = scmp.ne.s32.totalorder %s134, %s136
      %p143 = scmp.eq.s32.totalorder %s21, 1
      %p144 = por %p142, %p143
      %p145 = scmp.ne.s32.totalorder %s136, %s137
      %p146 = scmp.eq.s32.totalorder %s21, 0
      %p147 = por %p145, %p146
      %p148 = scmp.ne.s32.totalorder %s136, %s137
      %p149 = scmp.eq.s32.totalorder %s22, 1
      %p150 = por %p148, %p149
      %p152 = scmp.ne.s32.totalorder %s137, %s151
      %p153 = scmp.eq.s32.totalorder %s22, 0
      %p154 = por %p152, %p153
      %s156 = sadd.s32 %s155, 1
      %p159 = scmp.eq.s32.totalorder %s16, 1
      %p160 = scmp.ne.s32.totalorder %s155, %s157
      %p161 = scmp.eq.s32.totalorder %s16, 0
      %p162 = por %p160, %p161
      %p163 = scmp.ne.s32.totalorder %s155, %s157
      %p164 = scmp.eq.s32.totalorder %s21, 1
      %p165 = por %p163, %p164
      %p166 = scmp.ne.s32.totalorder %s157, %s158
      %p167 = scmp.eq.s32.totalorder %s21, 0
      %p168 = por %p166, %p167
      %p169 = scmp.ne.s32.totalorder %s157, %s158
      %p170 = scmp.eq.s32.totalorder %s22, 1
      %p171 = por %p169, %p170
      %p173 = scmp.ne.s32.totalorder %s158, %s172
      %p174 = scmp.eq.s32.totalorder %s22, 0
      %p175 = por %p173, %p174
      %s176 = ssub.s32 %s16, %s23
      %p177 = scmp.eq.s32.totalorder %s176, 0
      %s179 = sadd.s32 %s178, 1
      %s180 = scalar_select %p177, %s178, %s179
      %p183 = pneg %p177
      %p184 = scmp.eq.s32.totalorder %s16, 1
      %p185 = por %p183, %p184
      %p186 = scmp.ne.s32.totalorder %s178, %s181
      %p187 = scmp.eq.s32.totalorder %s16, 0
      %p188 = por %p186, %p187
      %p189 = scmp.ne.s32.totalorder %s178, %s181
      %p190 = scmp.eq.s32.totalorder %s21, 1
      %p191 = por %p189, %p190
      %p192 = scmp.ne.s32.totalorder %s181, %s182
      %p193 = scmp.eq.s32.totalorder %s21, 0
      %p194 = por %p192, %p193
      %p195 = scmp.ne.s32.totalorder %s181, %s182
      %p196 = scmp.eq.s32.totalorder %s22, 1
      %p197 = por %p195, %p196
      %p199 = scmp.ne.s32.totalorder %s182, %s198
      %p200 = scmp.eq.s32.totalorder %s22, 0
      %p201 = por %p199, %p200
      %p202 = scmp.le.s32.totalorder 1, %s16
      %p203 = scmp.lt.s32.totalorder %s16, 3
      %p204 = pnand %p202, %p203
      %p205 = pneg %p204
      // Predicated region
      $region9: #{tpu_custom_call.1} parent=5 // pred_check
        _
      $region10: #{tpu_custom_call.1} parent=5 // pred_check_branch
        %207 = sbr.rel (%p204) target = $region12
      $region11: #{tpu_custom_call.1} parent=5 // pred_region
        %s208 = ssub.s32 %s16, 1
        // Predicated region
        $region13: #{tpu_custom_call.1} parent=11 // pred_check
          %p209 = pneg %p63
        $region14: #{tpu_custom_call.1} parent=11 // pred_check_branch
          %211 = sbr.rel (%p209) target = $region16
        $region15: #{tpu_custom_call.1} parent=11 // pred_region
          _
        $region16: #{tpu_custom_call.1} parent=11 // pred_fallthru
          _
        // Predicated region
        $region17: #{tpu_custom_call.1} parent=11 // pred_check
          %p212 = pneg %p84
        $region18: #{tpu_custom_call.1} parent=11 // pred_check_branch
          %214 = sbr.rel (%p212) target = $region20
        $region19: #{tpu_custom_call.1} parent=11 // pred_region
          _
        $region20: #{tpu_custom_call.1} parent=11 // pred_fallthru
          _
        // Predicated region
        $region21: #{tpu_custom_call.1} parent=11 // pred_check
          %p215 = pneg %p105
        $region22: #{tpu_custom_call.1} parent=11 // pred_check_branch
          %217 = sbr.rel (%p215) target = $region24
        $region23: #{tpu_custom_call.1} parent=11 // pred_region
          _
        $region24: #{tpu_custom_call.1} parent=11 // pred_fallthru
          _
        // Predicated region
        $region25: #{tpu_custom_call.1} parent=11 // pred_check
          %p218 = pneg %p126
        $region26: #{tpu_custom_call.1} parent=11 // pred_check_branch
          %220 = sbr.rel (%p218) target = $region28
        $region27: #{tpu_custom_call.1} parent=11 // pred_region
          _
        $region28: #{tpu_custom_call.1} parent=11 // pred_fallthru
          _
        // Predicated region
        $region29: #{tpu_custom_call.1} parent=11 // pred_check
          %p221 = pneg %p147
        $region30: #{tpu_custom_call.1} parent=11 // pred_check_branch
          %223 = sbr.rel (%p221) target = $region32
        $region31: #{tpu_custom_call.1} parent=11 // pred_region
          _
        $region32: #{tpu_custom_call.1} parent=11 // pred_fallthru
          _
        // Predicated region
        $region33: #{tpu_custom_call.1} parent=11 // pred_check
          %p224 = pneg %p168
        $region34: #{tpu_custom_call.1} parent=11 // pred_check_branch
          %226 = sbr.rel (%p224) target = $region36
        $region35: #{tpu_custom_call.1} parent=11 // pred_region
          _
        $region36: #{tpu_custom_call.1} parent=11 // pred_fallthru
          _
      $region12: #{tpu_custom_call.1} parent=5 // pred_fallthru
        _
      %p227 = scmp.lt.s32.totalorder %s16, 2
      // Predicated region
      $region37: #{tpu_custom_call.1} parent=5 // pred_check
        %p228 = pneg %p227
      $region38: #{tpu_custom_call.1} parent=5 // pred_check_branch
        %230 = sbr.rel (%p228) target = $region40
      $region39: #{tpu_custom_call.1} parent=5 // pred_region
        // Predicated region
        $region41: #{tpu_custom_call.1} parent=39 // pred_check
          %p231 = pneg %p36
        $region42: #{tpu_custom_call.1} parent=39 // pred_check_branch
          %233 = sbr.rel (%p231) target = $region44
        $region43: #{tpu_custom_call.1} parent=39 // pred_region
          %p234 = scmp.lt.s32.totalorder %s16, 1
          %s235 = scalar_select %p234, %s16, 1
          %s236 = smul.addr %s235, 8
          %s237 = smul.addr %s236, 4
          %s238 = scalar_lea.vmem %s0, %s237
        $region44: #{tpu_custom_call.1} parent=39 // pred_fallthru
          _
      $region40: #{tpu_custom_call.1} parent=5 // pred_fallthru
        _
      %p239 = scmp.le.s32.totalorder 1, %s16
      %p240 = scmp.lt.s32.totalorder %s16, 3
      %p241 = pnand %p239, %p240
      %p242 = pneg %p241
      // Predicated region
      $region45: #{tpu_custom_call.1} parent=5 // pred_check
        _
      $region46: #{tpu_custom_call.1} parent=5 // pred_check_branch
        %244 = sbr.rel (%p241) target = $region48
      $region47: #{tpu_custom_call.1} parent=5 // pred_region
        %s245 = ssub.s32 %s16, 1
        %p246 = scmp.lt.s32.totalorder %s21, 1
        %s247 = scalar_select %p246, %s21, 1
        %s248 = smul.addr %s247, 8
        %s249 = smul.addr %s248, 4
        %s250 = scalar_lea.vmem %s0, %s249
        %p251 = pneg %p42
        %p252 = pneg %p39
        %p253 = pneg %p63
        %p254 = pneg %p60
        %p255 = pneg %p84
        %p256 = pneg %p81
        %p257 = pneg %p105
        %p258 = pneg %p102
        %p259 = pneg %p126
        %p260 = pneg %p123
        %p261 = pneg %p147
        %p262 = pneg %p144
        %p263 = pneg %p168
        %p264 = pneg %p165
        %p265 = pneg %p194
        %p266 = pneg %p191
        %s267 = sand.u32 %s181, 1
        %s268 = scalar_lea.sflag [#allocation4], %s267
        %s269 = sand.u32 %s181, 1
        %s270 = smul.addr %s269, 32
        %s271 = scalar_lea.vmem [#allocation3], %s270
        %p272 = scmp.lt.s32.totalorder %s21, 1
        %s273 = scalar_select %p272, %s21, 1
        %s274 = smul.addr %s273, 8
        %s275 = smul.addr %s274, 4
        %s276 = scalar_lea.vmem %s0, %s275
        %v280 = vld [vmem:[%s4] sm:$0x1]
        %v281 = vld [vmem:[%s5] sm:$0x1]
        %v282 = vld [vmem:[%s6] sm:$0x1]
        %v283 = vlaneseq
        %v284 = vshrl.u32 %v283, 7
        %v285 = vadd.s32 %v284, 8
        %v286 = vadd.s32 %v284, 16
        %v287 = vadd.s32 %v284, 24
        %v288 = vadd.s32 %v284, 32
        %v289 = vadd.s32 %v284, 40
        %v290 = vadd.s32 %v284, 48
        %v291 = vadd.s32 %v284, 56
        %vm292 = vcmp.lt.s32.totalorder %v284, 0
        %v293 = vsub.s32 0, %v284
        %v294 = vsel %vm292, %v293, %v284
        %v295 = vshrl.u32 %v294, 3
        %v296 = vand.u32 %v294, 7
        %v297 = vsub.s32 0, %v296
        %v298 = vsel %vm292, %v297, %v296
        %vm299 = vcmp.lt.s32.totalorder %v285, 0
        %v300 = vsub.s32 0, %v285
        %v301 = vsel %vm299, %v300, %v285
        %v302 = vshrl.u32 %v301, 3
        %v303 = vand.u32 %v301, 7
        %v304 = vsub.s32 0, %v303
        %v305 = vsel %vm299, %v304, %v303
        %vm306 = vcmp.lt.s32.totalorder %v286, 0
        %v307 = vsub.s32 0, %v286
        %v308 = vsel %vm306, %v307, %v286
        %v309 = vshrl.u32 %v308, 3
        %v310 = vand.u32 %v308, 7
        %v311 = vsub.s32 0, %v310
        %v312 = vsel %vm306, %v311, %v310
        %vm313 = vcmp.lt.s32.totalorder %v287, 0
        %v314 = vsub.s32 0, %v287
        %v315 = vsel %vm313, %v314, %v287
        %v316 = vshrl.u32 %v315, 3
        %v317 = vand.u32 %v315, 7
        %v318 = vsub.s32 0, %v317
        %v319 = vsel %vm313, %v318, %v317
        %vm320 = vcmp.lt.s32.totalorder %v288, 0
        %v321 = vsub.s32 0, %v288
        %v322 = vsel %vm320, %v321, %v288
        %v323 = vshrl.u32 %v322, 3
        %v324 = vand.u32 %v322, 7
        %v325 = vsub.s32 0, %v324
        %v326 = vsel %vm320, %v325, %v324
        %vm327 = vcmp.lt.s32.totalorder %v289, 0
        %v328 = vsub.s32 0, %v289
        %v329 = vsel %vm327, %v328, %v289
        %v330 = vshrl.u32 %v329, 3
        %v331 = vand.u32 %v329, 7
        %v332 = vsub.s32 0, %v331
        %v333 = vsel %vm327, %v332, %v331
        %vm334 = vcmp.lt.s32.totalorder %v290, 0
        %v335 = vsub.s32 0, %v290
        %v336 = vsel %vm334, %v335, %v290
        %v337 = vshrl.u32 %v336, 3
        %v338 = vand.u32 %v336, 7
        %v339 = vsub.s32 0, %v338
        %v340 = vsel %vm334, %v339, %v338
        %vm341 = vcmp.lt.s32.totalorder %v291, 0
        %v342 = vsub.s32 0, %v291
        %v343 = vsel %vm341, %v342, %v291
        %v344 = vshrl.u32 %v343, 3
        %v345 = vand.u32 %v343, 7
        %v346 = vsub.s32 0, %v345
        %v347 = vsel %vm341, %v346, %v345
        %vm348 = vcmp.ne.s32.totalorder %v298, 0
        %vm349 = vcmp.ne.s32.totalorder %v305, 0
        %vm350 = vcmp.ne.s32.totalorder %v312, 0
        %vm351 = vcmp.ne.s32.totalorder %v319, 0
        %vm352 = vcmp.ne.s32.totalorder %v326, 0
        %vm353 = vcmp.ne.s32.totalorder %v333, 0
        %vm354 = vcmp.ne.s32.totalorder %v340, 0
        %vm355 = vcmp.ne.s32.totalorder %v347, 0
        %vm356 = vcmp.lt.s32.totalorder %v298, 0
        %vm357 = vcmp.lt.s32.totalorder %v305, 0
        %vm358 = vcmp.lt.s32.totalorder %v312, 0
        %vm359 = vcmp.lt.s32.totalorder %v319, 0
        %vm360 = vcmp.lt.s32.totalorder %v326, 0
        %vm361 = vcmp.lt.s32.totalorder %v333, 0
        %vm362 = vcmp.lt.s32.totalorder %v340, 0
        %vm363 = vcmp.lt.s32.totalorder %v347, 0
        %vm364 = vmand %vm356, %vm348
        %vm365 = vmand %vm357, %vm349
        %vm366 = vmand %vm358, %vm350
        %vm367 = vmand %vm359, %vm351
        %vm368 = vmand %vm360, %vm352
        %vm369 = vmand %vm361, %vm353
        %vm370 = vmand %vm362, %vm354
        %vm371 = vmand %vm363, %vm355
        %v372 = vadd.s32 %v298, 8
        %v373 = vadd.s32 %v305, 8
        %v374 = vadd.s32 %v312, 8
        %v375 = vadd.s32 %v319, 8
        %v376 = vadd.s32 %v326, 8
        %v377 = vadd.s32 %v333, 8
        %v378 = vadd.s32 %v340, 8
        %v379 = vadd.s32 %v347, 8
        %v380 = vsel %vm364, %v372, %v298
        %v381 = vsel %vm365, %v373, %v305
        %v382 = vsel %vm366, %v374, %v312
        %v383 = vsel %vm367, %v375, %v319
        %v384 = vsel %vm368, %v376, %v326
        %v385 = vsel %vm369, %v377, %v333
        %v386 = vsel %vm370, %v378, %v340
        %v387 = vsel %vm371, %v379, %v347
        %vm388 = vcmp.ge.s32.totalorder %v380, 1
        %vm389 = vcmp.ge.s32.totalorder %v381, 1
        %vm390 = vcmp.ge.s32.totalorder %v382, 1
        %vm391 = vcmp.ge.s32.totalorder %v383, 1
        %vm392 = vcmp.ge.s32.totalorder %v384, 1
        %vm393 = vcmp.ge.s32.totalorder %v385, 1
        %vm394 = vcmp.ge.s32.totalorder %v386, 1
        %vm395 = vcmp.ge.s32.totalorder %v387, 1
        %vm396 = vcmp.le.s32.totalorder %v380, 6
        %vm397 = vcmp.le.s32.totalorder %v381, 6
        %vm398 = vcmp.le.s32.totalorder %v382, 6
        %vm399 = vcmp.le.s32.totalorder %v383, 6
        %vm400 = vcmp.le.s32.totalorder %v384, 6
        %vm401 = vcmp.le.s32.totalorder %v385, 6
        %vm402 = vcmp.le.s32.totalorder %v386, 6
        %vm403 = vcmp.le.s32.totalorder %v387, 6
        %vm404 = vcmask 31744
        %405 = vst.msk [vmem:[#allocation2] sm:$0xff] %vm404, 0
        %406 = vst.msk [vmem:[#allocation2 + $0x28] sm:$0xff] %vm404, 0
        %v407 = vld [vmem:[%s276] sm:$0xf]
        %v408 = vld [vmem:[%s276 + $0x4] sm:$0xf]
        %v409 = vld [vmem:[%s276 + $0x8] sm:$0xf]
        %v410 = vld [vmem:[%s276 + $0xc] sm:$0xf]
        %v411 = vld [vmem:[%s276 + $0x10] sm:$0xf]
        %v412 = vld [vmem:[%s276 + $0x14] sm:$0xf]
        %v413 = vld [vmem:[%s276 + $0x18] sm:$0xf]
        %v414 = vld [vmem:[%s276 + $0x1c] sm:$0xf]
        %v415 = vld [vmem:[%s1] sm:$0xf]
        %v416 = vld [vmem:[%s1 + $0x4] sm:$0xf]
        %v417 = vld [vmem:[%s1 + $0x8] sm:$0xf]
        %v418 = vld [vmem:[%s1 + $0xc] sm:$0xf]
        %v419 = vld [vmem:[%s1 + $0x10] sm:$0xf]
        %v420 = vld [vmem:[%s1 + $0x14] sm:$0xf]
        %v421 = vld [vmem:[%s1 + $0x18] sm:$0xf]
        %v422 = vld [vmem:[%s1 + $0x1c] sm:$0xf]
        %v423 = vld [vmem:[%s1 + $0x20] sm:$0xf]
        %v424 = vld [vmem:[%s1 + $0x24] sm:$0xf]
        %v425 = vld [vmem:[%s1 + $0x28] sm:$0xf]
        %v426 = vld [vmem:[%s1 + $0x2c] sm:$0xf]
        %v427 = vld [vmem:[%s1 + $0x30] sm:$0xf]
        %v428 = vld [vmem:[%s1 + $0x34] sm:$0xf]
        %v429 = vld [vmem:[%s1 + $0x38] sm:$0xf]
        %v430 = vld [vmem:[%s1 + $0x3c] sm:$0xf]
        %v432 = vlaneseq
        %v433 = vshrl.u32 %v432, 7
        %v434 = vsub.s32 0, %v433
        %v435 = vrot.slane %v280, %v434
        %v445 = vunpack.c.l.b16 %v407
        %v446 = vunpack.c.l.b16 %v408
        %v447 = vunpack.c.l.b16 %v409
        %v448 = vunpack.c.l.b16 %v410
        %v449 = vunpack.c.l.b16 %v411
        %v450 = vunpack.c.l.b16 %v412
        %v451 = vunpack.c.l.b16 %v413
        %v452 = vunpack.c.l.b16 %v414
        %v453 = vpack.c.b16 %v446, %v445
        %v454 = vpack.c.b16 %v448, %v447
        %v455 = vpack.c.b16 %v450, %v449
        %v456 = vpack.c.b16 %v452, %v451
        %v477 = vunpack.c.l.b16 %v415
        %v478 = vunpack.c.l.b16 %v416
        %v479 = vunpack.c.l.b16 %v417
        %v480 = vunpack.c.l.b16 %v418
        %v481 = vunpack.c.l.b16 %v419
        %v482 = vunpack.c.l.b16 %v420
        %v483 = vunpack.c.l.b16 %v421
        %v484 = vunpack.c.l.b16 %v422
        %v485 = vunpack.c.l.b16 %v423
        %v486 = vunpack.c.l.b16 %v424
        %v487 = vunpack.c.l.b16 %v425
        %v488 = vunpack.c.l.b16 %v426
        %v489 = vunpack.c.l.b16 %v427
        %v490 = vunpack.c.l.b16 %v428
        %v491 = vunpack.c.l.b16 %v429
        %v492 = vunpack.c.l.b16 %v430
        %v493 = vpack.c.b16 %v478, %v477
        %v494 = vpack.c.b16 %v480, %v479
        %v495 = vpack.c.b16 %v482, %v481
        %v496 = vpack.c.b16 %v484, %v483
        %v497 = vpack.c.b16 %v486, %v485
        %v498 = vpack.c.b16 %v488, %v487
        %v499 = vpack.c.b16 %v490, %v489
        %v500 = vpack.c.b16 %v492, %v491
        %509 = vmatprep.subr.bf16.mxu0 0
        %510 = vmatpush1.bf16.msra.mxu0 %v493
        %511 = vmatprep.subr.bf16.mxu0 0
        %512 = vmatpush1.bf16.msra.mxu0 %v494
        %513 = vmatprep.subr.bf16.mxu0 0
        %514 = vmatpush1.bf16.msra.mxu0 %v495
        %515 = vmatprep.subr.bf16.mxu0 0
        %516 = vmatpush1.bf16.msra.mxu0 %v496
        %517 = vmatprep.subr.bf16.mxu0 0
        %518 = vmatpush1.bf16.msra.mxu0 %v497
        %519 = vmatprep.subr.bf16.mxu0 0
        %520 = vmatpush1.bf16.msra.mxu0 %v498
        %521 = vmatprep.subr.bf16.mxu0 0
        %522 = vmatpush1.bf16.msra.mxu0 %v499
        %523 = vmatprep.subr.bf16.mxu0 0
        %524 = vmatpush1.bf16.msra.mxu0 %v500
        %525 = vmatprep.subr.bf16.mxu0 0
        %526 = vmatpush1.bf16.msra.mxu0 0
        %527 = vmatprep.subr.bf16.mxu0 0
        %528 = vmatpush1.bf16.msra.mxu0 0
        %529 = vmatprep.subr.bf16.mxu0 0
        %530 = vmatpush1.bf16.msra.mxu0 0
        %531 = vmatprep.subr.bf16.mxu0 0
        %532 = vmatpush1.bf16.msra.mxu0 0
        %533 = vmatprep.subr.bf16.mxu0 0
        %534 = vmatpush1.bf16.msra.mxu0 0
        %535 = vmatprep.subr.bf16.mxu0 0
        %536 = vmatpush1.bf16.msra.mxu0 0
        %537 = vmatprep.subr.bf16.mxu0 0
        %538 = vmatpush1.bf16.msra.mxu0 0
        %539 = vmatprep.subr.bf16.mxu0 0
        %540 = vmatpush1.bf16.msra.mxu0 0
        %541 = vmatprep.mubr.bf16.mxu0 0
        %542 = vmatmul.mubr.bf16.gmra.mrb[0].mxu0 %v453
        %v543 = vpop.f32.mrb[0].mxu0
        %v544 = vadd.f32 %v435, %v543
        %v545 = vpop.f32.mrb[0].mxu0
        %v546 = vpop.f32.mrb[0].mxu0
        %v547 = vadd.f32 %v435, %v546
        %v548 = vpop.f32.mrb[0].mxu0
        %549 = vmatprep.mubr.bf16.mxu0 0
        %550 = vmatmul.mubr.bf16.gmra.mrb[0].mxu0 %v454
        %v551 = vpop.f32.mrb[0].mxu0
        %v552 = vadd.f32 %v435, %v551
        %v553 = vpop.f32.mrb[0].mxu0
        %v554 = vpop.f32.mrb[0].mxu0
        %v555 = vadd.f32 %v435, %v554
        %v556 = vpop.f32.mrb[0].mxu0
        %557 = vmatprep.mubr.bf16.mxu0 0
        %558 = vmatmul.mubr.bf16.gmra.mrb[0].mxu0 %v455
        %v559 = vpop.f32.mrb[0].mxu0
        %v560 = vadd.f32 %v435, %v559
        %v561 = vpop.f32.mrb[0].mxu0
        %v562 = vpop.f32.mrb[0].mxu0
        %v563 = vadd.f32 %v435, %v562
        %v564 = vpop.f32.mrb[0].mxu0
        %565 = vmatprep.mubr.bf16.mxu0 0
        %566 = vmatmul.mubr.bf16.gmra.mrb[0].mxu0 %v456
        %v567 = vpop.f32.mrb[0].mxu0
        %v568 = vadd.f32 %v435, %v567
        %v569 = vpop.f32.mrb[0].mxu0
        %v570 = vpop.f32.mrb[0].mxu0
        %v571 = vadd.f32 %v435, %v570
        %v572 = vpop.f32.mrb[0].mxu0
        %573 = vdwg.mxu0
        %v574 = vmax.f32 %v544, 0.0
        %v575 = vmax.f32 %v547, 0.0
        %v576 = vmax.f32 %v552, 0.0
        %v577 = vmax.f32 %v555, 0.0
        %v578 = vmax.f32 %v560, 0.0
        %v579 = vmax.f32 %v563, 0.0
        %v580 = vmax.f32 %v568, 0.0
        %v581 = vmax.f32 %v571, 0.0
        %v582 = vpack.c.bf16 %v575, %v574
        %v583 = vpack.c.bf16 %v577, %v576
        %v584 = vpack.c.bf16 %v579, %v578
        %v585 = vpack.c.bf16 %v581, %v580
        %586 = vst.msk [vmem:[#allocation2 + $0x8] sm:$0xff] %vm404, %v582
        %587 = vst.msk [vmem:[#allocation2 + $0x10] sm:$0xff] %vm404, %v583
        %588 = vst.msk [vmem:[#allocation2 + $0x18] sm:$0xff] %vm404, %v584
        %589 = vst.msk [vmem:[#allocation2 + $0x20] sm:$0xff] %vm404, %v585
        %v590 = vld [vmem:[#allocation2] sm:$0xf8]
        %v591 = vld [vmem:[#allocation2 + $0x8] sm:$0xff]
        %v592 = vld [vmem:[#allocation2 + $0x10] sm:$0xff]
        %v593 = vld [vmem:[#allocation2 + $0x18] sm:$0xff]
        %v594 = vld [vmem:[#allocation2 + $0x20] sm:$0xf]
        %v595 = vsel %vm388, 1, 0
        %v596 = vsel %vm389, 1, 0
        %v597 = vsel %vm390, 1, 0
        %v598 = vsel %vm391, 1, 0
        %v599 = vsel %vm392, 1, 0
        %v600 = vsel %vm393, 1, 0
        %v601 = vsel %vm394, 1, 0
        %v602 = vsel %vm395, 1, 0
        %vm603 = vcmp.eq.s32.totalorder %v595, 1
        %vm604 = vcmp.eq.s32.totalorder %v596, 1
        %vm605 = vcmp.eq.s32.totalorder %v597, 1
        %vm606 = vcmp.eq.s32.totalorder %v598, 1
        %vm607 = vcmp.eq.s32.totalorder %v599, 1
        %vm608 = vcmp.eq.s32.totalorder %v600, 1
        %vm609 = vcmp.eq.s32.totalorder %v601, 1
        %vm610 = vcmp.eq.s32.totalorder %v602, 1
        %vm611 = vmpackc.low %vm603, %vm603
        %vm612 = vmpackc.low %vm604, %vm604
        %vm613 = vmpackc.low %vm605, %vm605
        %vm614 = vmpackc.low %vm606, %vm606
        %vm615 = vmpackc.low %vm607, %vm607
        %vm616 = vmpackc.low %vm608, %vm608
        %vm617 = vmpackc.low %vm609, %vm609
        %vm618 = vmpackc.low %vm610, %vm610
        %v619 = vsel %vm611, 65537, 0
        %v620 = vsel %vm612, 65537, 0
        %v621 = vsel %vm613, 65537, 0
        %v622 = vsel %vm614, 65537, 0
        %v623 = vsel %vm615, 65537, 0
        %v624 = vsel %vm616, 65537, 0
        %v625 = vsel %vm617, 65537, 0
        %v626 = vsel %vm618, 65537, 0
        %v627 = vunpack.c.l.b16 %v619
        %v628 = vunpack.c.l.b16 %v620
        %v629 = vunpack.c.l.b16 %v621
        %v630 = vunpack.c.l.b16 %v622
        %v631 = vunpack.c.l.b16 %v623
        %v632 = vunpack.c.l.b16 %v624
        %v633 = vunpack.c.l.b16 %v625
        %v634 = vunpack.c.l.b16 %v626
        %v635 = vpack.c.b16 %v628, %v627
        %v636 = vpack.c.b16 %v630, %v629
        %v637 = vpack.c.b16 %v632, %v631
        %v638 = vpack.c.b16 %v634, %v633
        %vm639 = vsmask.f32 3328
        %v641 = vshrl.u32 %v635, 16
        %v643 = vrot.slane %v641, 4
        %v644 = vshll.u32 %v635, 16
        %v646 = vrot.slane %v644, 5
        %v647 = vor.u32 %v643, %v646
        %v649 = vshrl.u32 %v636, 16
        %v651 = vrot.slane %v649, 4
        %v652 = vshll.u32 %v636, 16
        %v654 = vrot.slane %v652, 5
        %v655 = vor.u32 %v651, %v654
        %v656 = vsel %vm639, %v647, %v655
        %v658 = vshrl.u32 %v637, 16
        %v660 = vrot.slane %v658, 4
        %v661 = vshll.u32 %v637, 16
        %v663 = vrot.slane %v661, 5
        %v664 = vor.u32 %v660, %v663
        %v665 = vsel %vm639, %v655, %v664
        %v667 = vshrl.u32 %v638, 16
        %v669 = vrot.slane %v667, 4
        %v670 = vshll.u32 %v638, 16
        %v672 = vrot.slane %v670, 5
        %v673 = vor.u32 %v669, %v672
        %v674 = vsel %vm639, %v664, %v673
        %vm675 = vcmp.ne.s16.totalorder %v647, 0
        %vm676 = vcmp.ne.s16.totalorder %v656, 0
        %vm677 = vcmp.ne.s16.totalorder %v665, 0
        %vm678 = vcmp.ne.s16.totalorder %v674, 0
        %vm679 = vcmp.ne.s16.totalorder %v673, 0
        %v680 = vsel %vm675, %v590, 0
        %v681 = vsel %vm676, %v591, 0
        %v682 = vsel %vm677, %v592, 0
        %v683 = vsel %vm678, %v593, 0
        %v684 = vsel %vm679, %v594, 0
        %v685 = vld [vmem:[%s2] sm:$0x3]
        %v686 = vld [vmem:[#allocation2] sm:$0xf0]
        %v687 = vld [vmem:[%s2] sm:$0xc]
        %vm693 = vcmask 1043456
        %v694 = vrot.slane %v686, 4
        %v695 = vrot.slane %v591, 4
        %v696 = vsel %vm693, %v694, %v695
        %v697 = vrot.slane %v592, 4
        %v698 = vsel %vm693, %v695, %v697
        %v699 = vrot.slane %v593, 4
        %v700 = vsel %vm693, %v697, %v699
        %v701 = vrot.slane %v594, 4
        %v702 = vsel %vm693, %v699, %v701
        %v704 = vunpack.c.l.b16 %v687
        %v705 = vpack.c.b16 %v704, %v704
        %v706 = vrot.slane %v705, 2
        %v708 = vsel %vm404, %v696, 0
        %v711 = vsel %vm404, %v698, 0
        %v714 = vsel %vm404, %v700, 0
        %v717 = vsel %vm404, %v702, 0
        %vm719 = vcmask 1041408
        %v721 = vsel %vm719, %v706, 0
        %723 = vmatprep.subr.bf16.mxu0 0
        %724 = vmatpush1.bf16.msra.mxu0 %v721
        %725 = vmatprep.subr.bf16.mxu0 0
        %726 = vmatpush1.bf16.msra.mxu0 0
        %727 = vmatprep.subr.bf16.mxu0 0
        %728 = vmatpush1.bf16.msra.mxu0 0
        %729 = vmatprep.subr.bf16.mxu0 0
        %730 = vmatpush1.bf16.msra.mxu0 0
        %731 = vmatprep.subr.bf16.mxu0 0
        %732 = vmatpush1.bf16.msra.mxu0 0
        %733 = vmatprep.subr.bf16.mxu0 0
        %734 = vmatpush1.bf16.msra.mxu0 0
        %735 = vmatprep.subr.bf16.mxu0 0
        %736 = vmatpush1.bf16.msra.mxu0 0
        %737 = vmatprep.subr.bf16.mxu0 0
        %738 = vmatpush1.bf16.msra.mxu0 0
        %739 = vmatprep.subr.bf16.mxu0 0
        %740 = vmatpush1.bf16.msra.mxu0 0
        %741 = vmatprep.subr.bf16.mxu0 0
        %742 = vmatpush1.bf16.msra.mxu0 0
        %743 = vmatprep.subr.bf16.mxu0 0
        %744 = vmatpush1.bf16.msra.mxu0 0
        %745 = vmatprep.subr.bf16.mxu0 0
        %746 = vmatpush1.bf16.msra.mxu0 0
        %747 = vmatprep.subr.bf16.mxu0 0
        %748 = vmatpush1.bf16.msra.mxu0 0
        %749 = vmatprep.subr.bf16.mxu0 0
        %750 = vmatpush1.bf16.msra.mxu0 0
        %751 = vmatprep.subr.bf16.mxu0 0
        %752 = vmatpush1.bf16.msra.mxu0 0
        %753 = vmatprep.subr.bf16.mxu0 0
        %754 = vmatpush1.bf16.msra.mxu0 0
        %755 = vmatprep.mubr.bf16.mxu0 0
        %756 = vmatmul.mubr.bf16.gmra.mrb[0].mxu0 %v708
        %v757 = vpop.f32.mrb[0].mxu0
        %v758 = vadd.f32 0.0, %v757
        %v759 = vpop.f32.mrb[0].mxu0
        %v760 = vpop.f32.mrb[0].mxu0
        %v761 = vadd.f32 0.0, %v760
        %v762 = vpop.f32.mrb[0].mxu0
        %763 = vmatprep.mubr.bf16.mxu0 0
        %764 = vmatmul.mubr.bf16.gmra.mrb[0].mxu0 %v711
        %v765 = vpop.f32.mrb[0].mxu0
        %v766 = vadd.f32 0.0, %v765
        %v767 = vpop.f32.mrb[0].mxu0
        %v768 = vpop.f32.mrb[0].mxu0
        %v769 = vadd.f32 0.0, %v768
        %v770 = vpop.f32.mrb[0].mxu0
        %771 = vmatprep.mubr.bf16.mxu0 0
        %772 = vmatmul.mubr.bf16.gmra.mrb[0].mxu0 %v714
        %v773 = vpop.f32.mrb[0].mxu0
        %v774 = vadd.f32 0.0, %v773
        %v775 = vpop.f32.mrb[0].mxu0
        %v776 = vpop.f32.mrb[0].mxu0
        %v777 = vadd.f32 0.0, %v776
        %v778 = vpop.f32.mrb[0].mxu0
        %779 = vmatprep.mubr.bf16.mxu0 0
        %780 = vmatmul.mubr.bf16.gmra.mrb[0].mxu0 %v717
        %v781 = vpop.f32.mrb[0].mxu0
        %v782 = vadd.f32 0.0, %v781
        %v783 = vpop.f32.mrb[0].mxu0
        %v784 = vpop.f32.mrb[0].mxu0
        %v785 = vadd.f32 0.0, %v784
        %v786 = vpop.f32.mrb[0].mxu0
        %787 = vdwg.mxu0
        %vm788 = vsmask.f32 4352
        %v790 = vshrl.u32 %v680, 16
        %v792 = vrot.slane %v790, 3
        %v793 = vshll.u32 %v680, 16
        %v795 = vrot.slane %v793, 4
        %v796 = vor.u32 %v792, %v795
        %v798 = vshrl.u32 %v681, 16
        %v800 = vrot.slane %v798, 3
        %v801 = vshll.u32 %v681, 16
        %v803 = vrot.slane %v801, 4
        %v804 = vor.u32 %v800, %v803
        %v805 = vsel %vm788, %v796, %v804
        %v807 = vshrl.u32 %v682, 16
        %v809 = vrot.slane %v807, 3
        %v810 = vshll.u32 %v682, 16
        %v812 = vrot.slane %v810, 4
        %v813 = vor.u32 %v809, %v812
        %v814 = vsel %vm788, %v804, %v813
        %v816 = vshrl.u32 %v683, 16
        %v818 = vrot.slane %v816, 3
        %v819 = vshll.u32 %v683, 16
        %v821 = vrot.slane %v819, 4
        %v822 = vor.u32 %v818, %v821
        %v823 = vsel %vm788, %v813, %v822
        %v825 = vshrl.u32 %v684, 16
        %v827 = vrot.slane %v825, 3
        %v828 = vshll.u32 %v684, 16
        %v830 = vrot.slane %v828, 4
        %v831 = vor.u32 %v827, %v830
        %v832 = vsel %vm788, %v822, %v831
        %v834 = vsel %vm404, %v805, 0
        %v837 = vsel %vm404, %v814, 0
        %v840 = vsel %vm404, %v823, 0
        %v843 = vsel %vm404, %v832, 0
        %v846 = vsel %vm719, %v685, 0
        %848 = vmatprep.subr.bf16.mxu0 0
        %849 = vmatpush1.bf16.msra.mxu0 %v846
        %850 = vmatprep.subr.bf16.mxu0 0
        %851 = vmatpush1.bf16.msra.mxu0 0
        %852 = vmatprep.subr.bf16.mxu0 0
        %853 = vmatpush1.bf16.msra.mxu0 0
        %854 = vmatprep.subr.bf16.mxu0 0
        %855 = vmatpush1.bf16.msra.mxu0 0
        %856 = vmatprep.subr.bf16.mxu0 0
        %857 = vmatpush1.bf16.msra.mxu0 0
        %858 = vmatprep.subr.bf16.mxu0 0
        %859 = vmatpush1.bf16.msra.mxu0 0
        %860 = vmatprep.subr.bf16.mxu0 0
        %861 = vmatpush1.bf16.msra.mxu0 0
        %862 = vmatprep.subr.bf16.mxu0 0
        %863 = vmatpush1.bf16.msra.mxu0 0
        %864 = vmatprep.subr.bf16.mxu0 0
        %865 = vmatpush1.bf16.msra.mxu0 0
        %866 = vmatprep.subr.bf16.mxu0 0
        %867 = vmatpush1.bf16.msra.mxu0 0
        %868 = vmatprep.subr.bf16.mxu0 0
        %869 = vmatpush1.bf16.msra.mxu0 0
        %870 = vmatprep.subr.bf16.mxu0 0
        %871 = vmatpush1.bf16.msra.mxu0 0
        %872 = vmatprep.subr.bf16.mxu0 0
        %873 = vmatpush1.bf16.msra.mxu0 0
        %874 = vmatprep.subr.bf16.mxu0 0
        %875 = vmatpush1.bf16.msra.mxu0 0
        %876 = vmatprep.subr.bf16.mxu0 0
        %877 = vmatpush1.bf16.msra.mxu0 0
        %878 = vmatprep.subr.bf16.mxu0 0
        %879 = vmatpush1.bf16.msra.mxu0 0
        %880 = vmatprep.mubr.bf16.mxu0 0
        %881 = vmatmul.mubr.bf16.gmra.mrb[0].mxu0 %v834
        %v882 = vpop.f32.mrb[0].mxu0
        %v883 = vadd.f32 %v758, %v882
        %v884 = vpop.f32.mrb[0].mxu0
        %v885 = vpop.f32.mrb[0].mxu0
        %v886 = vadd.f32 %v761, %v885
        %v887 = vpop.f32.mrb[0].mxu0
        %888 = vmatprep.mubr.bf16.mxu0 0
        %889 = vmatmul.mubr.bf16.gmra.mrb[0].mxu0 %v837
        %v890 = vpop.f32.mrb[0].mxu0
        %v891 = vadd.f32 %v766, %v890
        %v892 = vpop.f32.mrb[0].mxu0
        %v893 = vpop.f32.mrb[0].mxu0
        %v894 = vadd.f32 %v769, %v893
        %v895 = vpop.f32.mrb[0].mxu0
        %896 = vmatprep.mubr.bf16.mxu0 0
        %897 = vmatmul.mubr.bf16.gmra.mrb[0].mxu0 %v840
        %v898 = vpop.f32.mrb[0].mxu0
        %v899 = vadd.f32 %v774, %v898
        %v900 = vpop.f32.mrb[0].mxu0
        %v901 = vpop.f32.mrb[0].mxu0
        %v902 = vadd.f32 %v777, %v901
        %v903 = vpop.f32.mrb[0].mxu0
        %904 = vmatprep.mubr.bf16.mxu0 0
        %905 = vmatmul.mubr.bf16.gmra.mrb[0].mxu0 %v843
        %v906 = vpop.f32.mrb[0].mxu0
        %v907 = vadd.f32 %v782, %v906
        %v908 = vpop.f32.mrb[0].mxu0
        %v909 = vpop.f32.mrb[0].mxu0
        %v910 = vadd.f32 %v785, %v909
        %v911 = vpop.f32.mrb[0].mxu0
        %912 = vdwg.mxu0
        %v913 = vld [vmem:[#allocation2 + $0x20] sm:$0x1f]
        %v914 = vsel %vm396, 1, 0
        %v915 = vsel %vm397, 1, 0
        %v916 = vsel %vm398, 1, 0
        %v917 = vsel %vm399, 1, 0
        %v918 = vsel %vm400, 1, 0
        %v919 = vsel %vm401, 1, 0
        %v920 = vsel %vm402, 1, 0
        %v921 = vsel %vm403, 1, 0
        %vm922 = vcmp.eq.s32.totalorder %v914, 1
        %vm923 = vcmp.eq.s32.totalorder %v915, 1
        %vm924 = vcmp.eq.s32.totalorder %v916, 1
        %vm925 = vcmp.eq.s32.totalorder %v917, 1
        %vm926 = vcmp.eq.s32.totalorder %v918, 1
        %vm927 = vcmp.eq.s32.totalorder %v919, 1
        %vm928 = vcmp.eq.s32.totalorder %v920, 1
        %vm929 = vcmp.eq.s32.totalorder %v921, 1
        %vm930 = vmpackc.low %vm922, %vm922
        %vm931 = vmpackc.low %vm923, %vm923
        %vm932 = vmpackc.low %vm924, %vm924
        %vm933 = vmpackc.low %vm925, %vm925
        %vm934 = vmpackc.low %vm926, %vm926
        %vm935 = vmpackc.low %vm927, %vm927
        %vm936 = vmpackc.low %vm928, %vm928
        %vm937 = vmpackc.low %vm929, %vm929
        %v938 = vsel %vm930, 65537, 0
        %v939 = vsel %vm931, 65537, 0
        %v940 = vsel %vm932, 65537, 0
        %v941 = vsel %vm933, 65537, 0
        %v942 = vsel %vm934, 65537, 0
        %v943 = vsel %vm935, 65537, 0
        %v944 = vsel %vm936, 65537, 0
        %v945 = vsel %vm937, 65537, 0
        %v946 = vunpack.c.l.b16 %v938
        %v947 = vunpack.c.l.b16 %v939
        %v948 = vunpack.c.l.b16 %v940
        %v949 = vunpack.c.l.b16 %v941
        %v950 = vunpack.c.l.b16 %v942
        %v951 = vunpack.c.l.b16 %v943
        %v952 = vunpack.c.l.b16 %v944
        %v953 = vunpack.c.l.b16 %v945
        %v954 = vpack.c.b16 %v947, %v946
        %v955 = vpack.c.b16 %v949, %v948
        %v956 = vpack.c.b16 %v951, %v950
        %v957 = vpack.c.b16 %v953, %v952
        %v959 = vshrl.u32 %v954, 16
        %v961 = vrot.slane %v959, 3
        %v962 = vshll.u32 %v954, 16
        %v964 = vrot.slane %v962, 4
        %v965 = vor.u32 %v961, %v964
        %v967 = vshrl.u32 %v955, 16
        %v969 = vrot.slane %v967, 3
        %v970 = vshll.u32 %v955, 16
        %v972 = vrot.slane %v970, 4
        %v973 = vor.u32 %v969, %v972
        %v974 = vsel %vm788, %v965, %v973
        %v976 = vshrl.u32 %v956, 16
        %v978 = vrot.slane %v976, 3
        %v979 = vshll.u32 %v956, 16
        %v981 = vrot.slane %v979, 4
        %v982 = vor.u32 %v978, %v981
        %v983 = vsel %vm788, %v973, %v982
        %v985 = vshrl.u32 %v957, 16
        %v987 = vrot.slane %v985, 3
        %v988 = vshll.u32 %v957, 16
        %v990 = vrot.slane %v988, 4
        %v991 = vor.u32 %v987, %v990
        %v992 = vsel %vm788, %v982, %v991
        %vm993 = vcmp.ne.s16.totalorder %v965, 0
        %vm994 = vcmp.ne.s16.totalorder %v974, 0
        %vm995 = vcmp.ne.s16.totalorder %v983, 0
        %vm996 = vcmp.ne.s16.totalorder %v992, 0
        %vm997 = vcmp.ne.s16.totalorder %v991, 0
        %v998 = vsel %vm993, %v686, 0
        %v999 = vsel %vm994, %v591, 0
        %v1000 = vsel %vm995, %v592, 0
        %v1001 = vsel %vm996, %v593, 0
        %v1002 = vsel %vm997, %v913, 0
        %v1003 = vld [vmem:[%s2 + $0x4] sm:$0x3]
        %v1005 = vshrl.u32 %v998, 16
        %v1007 = vrot.slane %v1005, 4
        %v1008 = vshll.u32 %v998, 16
        %v1010 = vrot.slane %v1008, 5
        %v1011 = vor.u32 %v1007, %v1010
        %v1013 = vshrl.u32 %v999, 16
        %v1015 = vrot.slane %v1013, 4
        %v1016 = vshll.u32 %v999, 16
        %v1018 = vrot.slane %v1016, 5
        %v1019 = vor.u32 %v1015, %v1018
        %v1020 = vsel %vm639, %v1011, %v1019
        %v1022 = vshrl.u32 %v1000, 16
        %v1024 = vrot.slane %v1022, 4
        %v1025 = vshll.u32 %v1000, 16
        %v1027 = vrot.slane %v1025, 5
        %v1028 = vor.u32 %v1024, %v1027
        %v1029 = vsel %vm639, %v1019, %v1028
        %v1031 = vshrl.u32 %v1001, 16
        %v1033 = vrot.slane %v1031, 4
        %v1034 = vshll.u32 %v1001, 16
        %v1036 = vrot.slane %v1034, 5
        %v1037 = vor.u32 %v1033, %v1036
        %v1038 = vsel %vm639, %v1028, %v1037
        %v1040 = vshrl.u32 %v1002, 16
        %v1042 = vrot.slane %v1040, 4
        %v1043 = vshll.u32 %v1002, 16
        %v1045 = vrot.slane %v1043, 5
        %v1046 = vor.u32 %v1042, %v1045
        %v1047 = vsel %vm639, %v1037, %v1046
        %v1049 = vsel %vm404, %v1020, 0
        %v1052 = vsel %vm404, %v1029, 0
        %v1055 = vsel %vm404, %v1038, 0
        %v1058 = vsel %vm404, %v1047, 0
        %v1061 = vsel %vm719, %v1003, 0
        %1063 = vmatprep.subr.bf16.mxu0 0
        %1064 = vmatpush1.bf16.msra.mxu0 %v1061
        %1065 = vmatprep.subr.bf16.mxu0 0
        %1066 = vmatpush1.bf16.msra.mxu0 0
        %1067 = vmatprep.subr.bf16.mxu0 0
        %1068 = vmatpush1.bf16.msra.mxu0 0
        %1069 = vmatprep.subr.bf16.mxu0 0
        %1070 = vmatpush1.bf16.msra.mxu0 0
        %1071 = vmatprep.subr.bf16.mxu0 0
        %1072 = vmatpush1.bf16.msra.mxu0 0
        %1073 = vmatprep.subr.bf16.mxu0 0
        %1074 = vmatpush1.bf16.msra.mxu0 0
        %1075 = vmatprep.subr.bf16.mxu0 0
        %1076 = vmatpush1.bf16.msra.mxu0 0
        %1077 = vmatprep.subr.bf16.mxu0 0
        %1078 = vmatpush1.bf16.msra.mxu0 0
        %1079 = vmatprep.subr.bf16.mxu0 0
        %1080 = vmatpush1.bf16.msra.mxu0 0
        %1081 = vmatprep.subr.bf16.mxu0 0
        %1082 = vmatpush1.bf16.msra.mxu0 0
        %1083 = vmatprep.subr.bf16.mxu0 0
        %1084 = vmatpush1.bf16.msra.mxu0 0
        %1085 = vmatprep.subr.bf16.mxu0 0
        %1086 = vmatpush1.bf16.msra.mxu0 0
        %1087 = vmatprep.subr.bf16.mxu0 0
        %1088 = vmatpush1.bf16.msra.mxu0 0
        %1089 = vmatprep.subr.bf16.mxu0 0
        %1090 = vmatpush1.bf16.msra.mxu0 0
        %1091 = vmatprep.subr.bf16.mxu0 0
        %1092 = vmatpush1.bf16.msra.mxu0 0
        %1093 = vmatprep.subr.bf16.mxu0 0
        %1094 = vmatpush1.bf16.msra.mxu0 0
        %1095 = vmatprep.mubr.bf16.mxu0 0
        %1096 = vmatmul.mubr.bf16.gmra.mrb[0].mxu0 %v1049
        %v1097 = vpop.f32.mrb[0].mxu0
        %v1098 = vadd.f32 0.0, %v1097
        %v1099 = vpop.f32.mrb[0].mxu0
        %v1100 = vpop.f32.mrb[0].mxu0
        %v1101 = vadd.f32 0.0, %v1100
        %v1102 = vpop.f32.mrb[0].mxu0
        %1103 = vmatprep.mubr.bf16.mxu0 0
        %1104 = vmatmul.mubr.bf16.gmra.mrb[0].mxu0 %v1052
        %v1105 = vpop.f32.mrb[0].mxu0
        %v1106 = vadd.f32 0.0, %v1105
        %v1107 = vpop.f32.mrb[0].mxu0
        %v1108 = vpop.f32.mrb[0].mxu0
        %v1109 = vadd.f32 0.0, %v1108
        %v1110 = vpop.f32.mrb[0].mxu0
        %1111 = vmatprep.mubr.bf16.mxu0 0
        %1112 = vmatmul.mubr.bf16.gmra.mrb[0].mxu0 %v1055
        %v1113 = vpop.f32.mrb[0].mxu0
        %v1114 = vadd.f32 0.0, %v1113
        %v1115 = vpop.f32.mrb[0].mxu0
        %v1116 = vpop.f32.mrb[0].mxu0
        %v1117 = vadd.f32 0.0, %v1116
        %v1118 = vpop.f32.mrb[0].mxu0
        %1119 = vmatprep.mubr.bf16.mxu0 0
        %1120 = vmatmul.mubr.bf16.gmra.mrb[0].mxu0 %v1058
        %v1121 = vpop.f32.mrb[0].mxu0
        %v1122 = vadd.f32 0.0, %v1121
        %v1123 = vpop.f32.mrb[0].mxu0
        %v1124 = vpop.f32.mrb[0].mxu0
        %v1125 = vadd.f32 0.0, %v1124
        %v1126 = vpop.f32.mrb[0].mxu0
        %1127 = vdwg.mxu0
        %v1128 = vadd.f32 %v883, %v1098
        %v1129 = vadd.f32 %v886, %v1101
        %v1130 = vadd.f32 %v891, %v1106
        %v1131 = vadd.f32 %v894, %v1109
        %v1132 = vadd.f32 %v899, %v1114
        %v1133 = vadd.f32 %v902, %v1117
        %v1134 = vadd.f32 %v907, %v1122
        %v1135 = vadd.f32 %v910, %v1125
        %v1136 = vld [vmem:[#allocation2] sm:$0x80]
        %v1137 = vld [vmem:[#allocation2 + $0x20] sm:$0xff]
        %vm1138 = vsmask.f32 7424
        %v1139 = vrot.slane %v644, 1
        %v1140 = vor.u32 %v641, %v1139
        %v1141 = vrot.slane %v652, 1
        %v1142 = vsel %vm1138, %v1140, %v1141
        %v1143 = vor.u32 %v649, %v1141
        %v1144 = vrot.slane %v661, 1
        %v1145 = vsel %vm1138, %v1143, %v1144
        %v1146 = vor.u32 %v658, %v1144
        %v1147 = vrot.slane %v670, 1
        %v1148 = vsel %vm1138, %v1146, %v1147
        %v1149 = vor.u32 %v667, %v1147
        %vm1150 = vcmp.ne.s16.totalorder %v1139, 0
        %vm1151 = vcmp.ne.s16.totalorder %v1142, 0
        %vm1152 = vcmp.ne.s16.totalorder %v1145, 0
        %vm1153 = vcmp.ne.s16.totalorder %v1148, 0
        %vm1154 = vcmp.ne.s16.totalorder %v1149, 0
        %v1155 = vsel %vm1150, %v1136, 0
        %v1156 = vsel %vm1151, %v591, 0
        %v1157 = vsel %vm1152, %v592, 0
        %v1158 = vsel %vm1153, %v593, 0
        %v1159 = vsel %vm1154, %v1137, 0
        %v1160 = vld [vmem:[%s2 + $0x4] sm:$0xc]
        %vm1161 = vsmask.f32 256
        %v1163 = vshrl.u32 %v1155, 16
        %v1165 = vrot.slane %v1163, 7
        %v1167 = vshrl.u32 %v1156, 16
        %v1169 = vrot.slane %v1167, 7
        %v1170 = vshll.u32 %v1156, 16
        %v1172 = vor.u32 %v1169, %v1170
        %v1173 = vsel %vm1161, %v1165, %v1172
        %v1175 = vshrl.u32 %v1157, 16
        %v1177 = vrot.slane %v1175, 7
        %v1178 = vshll.u32 %v1157, 16
        %v1180 = vor.u32 %v1177, %v1178
        %v1181 = vsel %vm1161, %v1169, %v1180
        %v1183 = vshrl.u32 %v1158, 16
        %v1185 = vrot.slane %v1183, 7
        %v1186 = vshll.u32 %v1158, 16
        %v1188 = vor.u32 %v1185, %v1186
        %v1189 = vsel %vm1161, %v1177, %v1188
        %v1191 = vshrl.u32 %v1159, 16
        %v1193 = vrot.slane %v1191, 7
        %v1194 = vshll.u32 %v1159, 16
        %v1196 = vor.u32 %v1193, %v1194
        %v1197 = vsel %vm1161, %v1185, %v1196
        %v1199 = vunpack.c.l.b16 %v1160
        %v1200 = vpack.c.b16 %v1199, %v1199
        %v1201 = vrot.slane %v1200, 2
        %v1203 = vsel %vm404, %v1173, 0
        %v1206 = vsel %vm404, %v1181, 0
        %v1209 = vsel %vm404, %v1189, 0
        %v1212 = vsel %vm404, %v1197, 0
        %v1215 = vsel %vm719, %v1201, 0
        %1217 = vmatprep.subr.bf16.mxu0 0
        %1218 = vmatpush1.bf16.msra.mxu0 %v1215
        %1219 = vmatprep.subr.bf16.mxu0 0
        %1220 = vmatpush1.bf16.msra.mxu0 0
        %1221 = vmatprep.subr.bf16.mxu0 0
        %1222 = vmatpush1.bf16.msra.mxu0 0
        %1223 = vmatprep.subr.bf16.mxu0 0
        %1224 = vmatpush1.bf16.msra.mxu0 0
        %1225 = vmatprep.subr.bf16.mxu0 0
        %1226 = vmatpush1.bf16.msra.mxu0 0
        %1227 = vmatprep.subr.bf16.mxu0 0
        %1228 = vmatpush1.bf16.msra.mxu0 0
        %1229 = vmatprep.subr.bf16.mxu0 0
        %1230 = vmatpush1.bf16.msra.mxu0 0
        %1231 = vmatprep.subr.bf16.mxu0 0
        %1232 = vmatpush1.bf16.msra.mxu0 0
        %1233 = vmatprep.subr.bf16.mxu0 0
        %1234 = vmatpush1.bf16.msra.mxu0 0
        %1235 = vmatprep.subr.bf16.mxu0 0
        %1236 = vmatpush1.bf16.msra.mxu0 0
        %1237 = vmatprep.subr.bf16.mxu0 0
        %1238 = vmatpush1.bf16.msra.mxu0 0
        %1239 = vmatprep.subr.bf16.mxu0 0
        %1240 = vmatpush1.bf16.msra.mxu0 0
        %1241 = vmatprep.subr.bf16.mxu0 0
        %1242 = vmatpush1.bf16.msra.mxu0 0
        %1243 = vmatprep.subr.bf16.mxu0 0
        %1244 = vmatpush1.bf16.msra.mxu0 0
        %1245 = vmatprep.subr.bf16.mxu0 0
        %1246 = vmatpush1.bf16.msra.mxu0 0
        %1247 = vmatprep.subr.bf16.mxu0 0
        %1248 = vmatpush1.bf16.msra.mxu0 0
        %1249 = vmatprep.mubr.bf16.mxu0 0
        %1250 = vmatmul.mubr.bf16.gmra.mrb[0].mxu0 %v1203
        %v1251 = vpop.f32.mrb[0].mxu0
        %v1252 = vadd.f32 0.0, %v1251
        %v1253 = vpop.f32.mrb[0].mxu0
        %v1254 = vpop.f32.mrb[0].mxu0
        %v1255 = vadd.f32 0.0, %v1254
        %v1256 = vpop.f32.mrb[0].mxu0
        %1257 = vmatprep.mubr.bf16.mxu0 0
        %1258 = vmatmul.mubr.bf16.gmra.mrb[0].mxu0 %v1206
        %v1259 = vpop.f32.mrb[0].mxu0
        %v1260 = vadd.f32 0.0, %v1259
        %v1261 = vpop.f32.mrb[0].mxu0
        %v1262 = vpop.f32.mrb[0].mxu0
        %v1263 = vadd.f32 0.0, %v1262
        %v1264 = vpop.f32.mrb[0].mxu0
        %1265 = vmatprep.mubr.bf16.mxu0 0
        %1266 = vmatmul.mubr.bf16.gmra.mrb[0].mxu0 %v1209
        %v1267 = vpop.f32.mrb[0].mxu0
        %v1268 = vadd.f32 0.0, %v1267
        %v1269 = vpop.f32.mrb[0].mxu0
        %v1270 = vpop.f32.mrb[0].mxu0
        %v1271 = vadd.f32 0.0, %v1270
        %v1272 = vpop.f32.mrb[0].mxu0
        %1273 = vmatprep.mubr.bf16.mxu0 0
        %1274 = vmatmul.mubr.bf16.gmra.mrb[0].mxu0 %v1212
        %v1275 = vpop.f32.mrb[0].mxu0
        %v1276 = vadd.f32 0.0, %v1275
        %v1277 = vpop.f32.mrb[0].mxu0
        %v1278 = vpop.f32.mrb[0].mxu0
        %v1279 = vadd.f32 0.0, %v1278
        %v1280 = vpop.f32.mrb[0].mxu0
        %1281 = vdwg.mxu0
        %v1282 = vadd.f32 %v1128, %v1252
        %v1283 = vadd.f32 %v1129, %v1255
        %v1284 = vadd.f32 %v1130, %v1260
        %v1285 = vadd.f32 %v1131, %v1263
        %v1286 = vadd.f32 %v1132, %v1268
        %v1287 = vadd.f32 %v1133, %v1271
        %v1288 = vadd.f32 %v1134, %v1276
        %v1289 = vadd.f32 %v1135, %v1279
        %v1290 = vld [vmem:[%s2 + $0x8] sm:$0x3]
        %v1292 = vsel %vm404, %v591, 0
        %v1295 = vsel %vm404, %v592, 0
        %v1298 = vsel %vm404, %v593, 0
        %v1301 = vsel %vm404, %v1137, 0
        %v1304 = vsel %vm719, %v1290, 0
        %1306 = vmatprep.subr.bf16.mxu0 0
        %1307 = vmatpush1.bf16.msra.mxu0 %v1304
        %1308 = vmatprep.subr.bf16.mxu0 0
        %1309 = vmatpush1.bf16.msra.mxu0 0
        %1310 = vmatprep.subr.bf16.mxu0 0
        %1311 = vmatpush1.bf16.msra.mxu0 0
        %1312 = vmatprep.subr.bf16.mxu0 0
        %1313 = vmatpush1.bf16.msra.mxu0 0
        %1314 = vmatprep.subr.bf16.mxu0 0
        %1315 = vmatpush1.bf16.msra.mxu0 0
        %1316 = vmatprep.subr.bf16.mxu0 0
        %1317 = vmatpush1.bf16.msra.mxu0 0
        %1318 = vmatprep.subr.bf16.mxu0 0
        %1319 = vmatpush1.bf16.msra.mxu0 0
        %1320 = vmatprep.subr.bf16.mxu0 0
        %1321 = vmatpush1.bf16.msra.mxu0 0
        %1322 = vmatprep.subr.bf16.mxu0 0
        %1323 = vmatpush1.bf16.msra.mxu0 0
        %1324 = vmatprep.subr.bf16.mxu0 0
        %1325 = vmatpush1.bf16.msra.mxu0 0
        %1326 = vmatprep.subr.bf16.mxu0 0
        %1327 = vmatpush1.bf16.msra.mxu0 0
        %1328 = vmatprep.subr.bf16.mxu0 0
        %1329 = vmatpush1.bf16.msra.mxu0 0
        %1330 = vmatprep.subr.bf16.mxu0 0
        %1331 = vmatpush1.bf16.msra.mxu0 0
        %1332 = vmatprep.subr.bf16.mxu0 0
        %1333 = vmatpush1.bf16.msra.mxu0 0
        %1334 = vmatprep.subr.bf16.mxu0 0
        %1335 = vmatpush1.bf16.msra.mxu0 0
        %1336 = vmatprep.subr.bf16.mxu0 0
        %1337 = vmatpush1.bf16.msra.mxu0 0
        %1338 = vmatprep.mubr.bf16.mxu0 0
        %1339 = vmatmul.mubr.bf16.gmra.mrb[0].mxu0 %v1292
        %v1340 = vpop.f32.mrb[0].mxu0
        %v1341 = vadd.f32 0.0, %v1340
        %v1342 = vpop.f32.mrb[0].mxu0
        %v1343 = vpop.f32.mrb[0].mxu0
        %v1344 = vadd.f32 0.0, %v1343
        %v1345 = vpop.f32.mrb[0].mxu0
        %1346 = vmatprep.mubr.bf16.mxu0 0
        %1347 = vmatmul.mubr.bf16.gmra.mrb[0].mxu0 %v1295
        %v1348 = vpop.f32.mrb[0].mxu0
        %v1349 = vadd.f32 0.0, %v1348
        %v1350 = vpop.f32.mrb[0].mxu0
        %v1351 = vpop.f32.mrb[0].mxu0
        %v1352 = vadd.f32 0.0, %v1351
        %v1353 = vpop.f32.mrb[0].mxu0
        %1354 = vmatprep.mubr.bf16.mxu0 0
        %1355 = vmatmul.mubr.bf16.gmra.mrb[0].mxu0 %v1298
        %v1356 = vpop.f32.mrb[0].mxu0
        %v1357 = vadd.f32 0.0, %v1356
        %v1358 = vpop.f32.mrb[0].mxu0
        %v1359 = vpop.f32.mrb[0].mxu0
        %v1360 = vadd.f32 0.0, %v1359
        %v1361 = vpop.f32.mrb[0].mxu0
        %1362 = vmatprep.mubr.bf16.mxu0 0
        %1363 = vmatmul.mubr.bf16.gmra.mrb[0].mxu0 %v1301
        %v1364 = vpop.f32.mrb[0].mxu0
        %v1365 = vadd.f32 0.0, %v1364
        %v1366 = vpop.f32.mrb[0].mxu0
        %v1367 = vpop.f32.mrb[0].mxu0
        %v1368 = vadd.f32 0.0, %v1367
        %v1369 = vpop.f32.mrb[0].mxu0
        %1370 = vdwg.mxu0
        %v1371 = vadd.f32 %v1282, %v1341
        %v1372 = vadd.f32 %v1283, %v1344
        %v1373 = vadd.f32 %v1284, %v1349
        %v1374 = vadd.f32 %v1285, %v1352
        %v1375 = vadd.f32 %v1286, %v1357
        %v1376 = vadd.f32 %v1287, %v1360
        %v1377 = vadd.f32 %v1288, %v1365
        %v1378 = vadd.f32 %v1289, %v1368
        %v1379 = vld [vmem:[#allocation2 + $0x8] sm:$0xff]
        %v1380 = vld [vmem:[#allocation2 + $0x10] sm:$0xff]
        %v1381 = vld [vmem:[#allocation2 + $0x18] sm:$0xff]
        %v1382 = vld [vmem:[#allocation2 + $0x20] sm:$0xff]
        %v1383 = vld [vmem:[#allocation2 + $0x28] sm:$0x1]
        %v1384 = vrot.slane %v959, 7
        %v1385 = vor.u32 %v1384, %v962
        %v1386 = vrot.slane %v967, 7
        %v1387 = vor.u32 %v1386, %v970
        %v1388 = vsel %vm1161, %v1384, %v1387
        %v1389 = vrot.slane %v976, 7
        %v1390 = vor.u32 %v1389, %v979
        %v1391 = vsel %vm1161, %v1386, %v1390
        %v1392 = vrot.slane %v985, 7
        %v1393 = vor.u32 %v1392, %v988
        %v1394 = vsel %vm1161, %v1389, %v1393
        %vm1395 = vcmp.ne.s16.totalorder %v1385, 0
        %vm1396 = vcmp.ne.s16.totalorder %v1388, 0
        %vm1397 = vcmp.ne.s16.totalorder %v1391, 0
        %vm1398 = vcmp.ne.s16.totalorder %v1394, 0
        %vm1399 = vcmp.ne.s16.totalorder %v1392, 0
        %v1400 = vsel %vm1395, %v1379, 0
        %v1401 = vsel %vm1396, %v1380, 0
        %v1402 = vsel %vm1397, %v1381, 0
        %v1403 = vsel %vm1398, %v1382, 0
        %v1404 = vsel %vm1399, %v1383, 0
        %v1405 = vld [vmem:[%s2 + $0x8] sm:$0xc]
        %v1407 = vshrl.u32 %v1400, 16
        %v1409 = vshll.u32 %v1400, 16
        %v1411 = vrot.slane %v1409, 1
        %v1412 = vor.u32 %v1407, %v1411
        %v1414 = vshll.u32 %v1401, 16
        %v1416 = vrot.slane %v1414, 1
        %v1417 = vsel %vm1138, %v1412, %v1416
        %v1418 = vshrl.u32 %v1401, 16
        %v1420 = vor.u32 %v1418, %v1416
        %v1422 = vshll.u32 %v1402, 16
        %v1424 = vrot.slane %v1422, 1
        %v1425 = vsel %vm1138, %v1420, %v1424
        %v1426 = vshrl.u32 %v1402, 16
        %v1428 = vor.u32 %v1426, %v1424
        %v1430 = vshll.u32 %v1403, 16
        %v1432 = vrot.slane %v1430, 1
        %v1433 = vsel %vm1138, %v1428, %v1432
        %v1434 = vshrl.u32 %v1403, 16
        %v1436 = vor.u32 %v1434, %v1432
        %v1438 = vshll.u32 %v1404, 16
        %v1440 = vrot.slane %v1438, 1
        %v1441 = vsel %vm1138, %v1436, %v1440
        %v1443 = vunpack.c.l.b16 %v1405
        %v1444 = vpack.c.b16 %v1443, %v1443
        %v1445 = vrot.slane %v1444, 2
        %v1447 = vsel %vm404, %v1417, 0
        %v1450 = vsel %vm404, %v1425, 0
        %v1453 = vsel %vm404, %v1433, 0
        %v1456 = vsel %vm404, %v1441, 0
        %v1459 = vsel %vm719, %v1445, 0
        %1461 = vmatprep.subr.bf16.mxu0 0
        %1462 = vmatpush1.bf16.msra.mxu0 %v1459
        %1463 = vmatprep.subr.bf16.mxu0 0
        %1464 = vmatpush1.bf16.msra.mxu0 0
        %1465 = vmatprep.subr.bf16.mxu0 0
        %1466 = vmatpush1.bf16.msra.mxu0 0
        %1467 = vmatprep.subr.bf16.mxu0 0
        %1468 = vmatpush1.bf16.msra.mxu0 0
        %1469 = vmatprep.subr.bf16.mxu0 0
        %1470 = vmatpush1.bf16.msra.mxu0 0
        %1471 = vmatprep.subr.bf16.mxu0 0
        %1472 = vmatpush1.bf16.msra.mxu0 0
        %1473 = vmatprep.subr.bf16.mxu0 0
        %1474 = vmatpush1.bf16.msra.mxu0 0
        %1475 = vmatprep.subr.bf16.mxu0 0
        %1476 = vmatpush1.bf16.msra.mxu0 0
        %1477 = vmatprep.subr.bf16.mxu0 0
        %1478 = vmatpush1.bf16.msra.mxu0 0
        %1479 = vmatprep.subr.bf16.mxu0 0
        %1480 = vmatpush1.bf16.msra.mxu0 0
        %1481 = vmatprep.subr.bf16.mxu0 0
        %1482 = vmatpush1.bf16.msra.mxu0 0
        %1483 = vmatprep.subr.bf16.mxu0 0
        %1484 = vmatpush1.bf16.msra.mxu0 0
        %1485 = vmatprep.subr.bf16.mxu0 0
        %1486 = vmatpush1.bf16.msra.mxu0 0
        %1487 = vmatprep.subr.bf16.mxu0 0
        %1488 = vmatpush1.bf16.msra.mxu0 0
        %1489 = vmatprep.subr.bf16.mxu0 0
        %1490 = vmatpush1.bf16.msra.mxu0 0
        %1491 = vmatprep.subr.bf16.mxu0 0
        %1492 = vmatpush1.bf16.msra.mxu0 0
        %1493 = vmatprep.mubr.bf16.mxu0 0
        %1494 = vmatmul.mubr.bf16.gmra.mrb[0].mxu0 %v1447
        %v1495 = vpop.f32.mrb[0].mxu0
        %v1496 = vadd.f32 0.0, %v1495
        %v1497 = vpop.f32.mrb[0].mxu0
        %v1498 = vpop.f32.mrb[0].mxu0
        %v1499 = vadd.f32 0.0, %v1498
        %v1500 = vpop.f32.mrb[0].mxu0
        %1501 = vmatprep.mubr.bf16.mxu0 0
        %1502 = vmatmul.mubr.bf16.gmra.mrb[0].mxu0 %v1450
        %v1503 = vpop.f32.mrb[0].mxu0
        %v1504 = vadd.f32 0.0, %v1503
        %v1505 = vpop.f32.mrb[0].mxu0
        %v1506 = vpop.f32.mrb[0].mxu0
        %v1507 = vadd.f32 0.0, %v1506
        %v1508 = vpop.f32.mrb[0].mxu0
        %1509 = vmatprep.mubr.bf16.mxu0 0
        %1510 = vmatmul.mubr.bf16.gmra.mrb[0].mxu0 %v1453
        %v1511 = vpop.f32.mrb[0].mxu0
        %v1512 = vadd.f32 0.0, %v1511
        %v1513 = vpop.f32.mrb[0].mxu0
        %v1514 = vpop.f32.mrb[0].mxu0
        %v1515 = vadd.f32 0.0, %v1514
        %v1516 = vpop.f32.mrb[0].mxu0
        %1517 = vmatprep.mubr.bf16.mxu0 0
        %1518 = vmatmul.mubr.bf16.gmra.mrb[0].mxu0 %v1456
        %v1519 = vpop.f32.mrb[0].mxu0
        %v1520 = vadd.f32 0.0, %v1519
        %v1521 = vpop.f32.mrb[0].mxu0
        %v1522 = vpop.f32.mrb[0].mxu0
        %v1523 = vadd.f32 0.0, %v1522
        %v1524 = vpop.f32.mrb[0].mxu0
        %1525 = vdwg.mxu0
        %v1526 = vadd.f32 %v1371, %v1496
        %v1527 = vadd.f32 %v1372, %v1499
        %v1528 = vadd.f32 %v1373, %v1504
        %v1529 = vadd.f32 %v1374, %v1507
        %v1530 = vadd.f32 %v1375, %v1512
        %v1531 = vadd.f32 %v1376, %v1515
        %v1532 = vadd.f32 %v1377, %v1520
        %v1533 = vadd.f32 %v1378, %v1523
        %v1534 = vld [vmem:[#allocation2 + $0x8] sm:$0xf8]
        %v1535 = vld [vmem:[#allocation2 + $0x28] sm:$0xf]
        %v1536 = vsel %vm675, %v1534, 0
        %v1537 = vsel %vm676, %v1380, 0
        %v1538 = vsel %vm677, %v1381, 0
        %v1539 = vsel %vm678, %v1382, 0
        %v1540 = vsel %vm679, %v1535, 0
        %v1541 = vld [vmem:[%s2 + $0xc] sm:$0x3]
        %v1543 = vshrl.u32 %v1536, 16
        %v1545 = vrot.slane %v1543, 3
        %v1546 = vshll.u32 %v1536, 16
        %v1548 = vrot.slane %v1546, 4
        %v1549 = vor.u32 %v1545, %v1548
        %v1551 = vshrl.u32 %v1537, 16
        %v1553 = vrot.slane %v1551, 3
        %v1554 = vshll.u32 %v1537, 16
        %v1556 = vrot.slane %v1554, 4
        %v1557 = vor.u32 %v1553, %v1556
        %v1558 = vsel %vm788, %v1549, %v1557
        %v1560 = vshrl.u32 %v1538, 16
        %v1562 = vrot.slane %v1560, 3
        %v1563 = vshll.u32 %v1538, 16
        %v1565 = vrot.slane %v1563, 4
        %v1566 = vor.u32 %v1562, %v1565
        %v1567 = vsel %vm788, %v1557, %v1566
        %v1569 = vshrl.u32 %v1539, 16
        %v1571 = vrot.slane %v1569, 3
        %v1572 = vshll.u32 %v1539, 16
        %v1574 = vrot.slane %v1572, 4
        %v1575 = vor.u32 %v1571, %v1574
        %v1576 = vsel %vm788, %v1566, %v1575
        %v1578 = vshrl.u32 %v1540, 16
        %v1580 = vrot.slane %v1578, 3
        %v1581 = vshll.u32 %v1540, 16
        %v1583 = vrot.slane %v1581, 4
        %v1584 = vor.u32 %v1580, %v1583
        %v1585 = vsel %vm788, %v1575, %v1584
        %v1587 = vsel %vm404, %v1558, 0
        %v1590 = vsel %vm404, %v1567, 0
        %v1593 = vsel %vm404, %v1576, 0
        %v1596 = vsel %vm404, %v1585, 0
        %v1599 = vsel %vm719, %v1541, 0
        %1601 = vmatprep.subr.bf16.mxu0 0
        %1602 = vmatpush1.bf16.msra.mxu0 %v1599
        %1603 = vmatprep.subr.bf16.mxu0 0
        %1604 = vmatpush1.bf16.msra.mxu0 0
        %1605 = vmatprep.subr.bf16.mxu0 0
        %1606 = vmatpush1.bf16.msra.mxu0 0
        %1607 = vmatprep.subr.bf16.mxu0 0
        %1608 = vmatpush1.bf16.msra.mxu0 0
        %1609 = vmatprep.subr.bf16.mxu0 0
        %1610 = vmatpush1.bf16.msra.mxu0 0
        %1611 = vmatprep.subr.bf16.mxu0 0
        %1612 = vmatpush1.bf16.msra.mxu0 0
        %1613 = vmatprep.subr.bf16.mxu0 0
        %1614 = vmatpush1.bf16.msra.mxu0 0
        %1615 = vmatprep.subr.bf16.mxu0 0
        %1616 = vmatpush1.bf16.msra.mxu0 0
        %1617 = vmatprep.subr.bf16.mxu0 0
        %1618 = vmatpush1.bf16.msra.mxu0 0
        %1619 = vmatprep.subr.bf16.mxu0 0
        %1620 = vmatpush1.bf16.msra.mxu0 0
        %1621 = vmatprep.subr.bf16.mxu0 0
        %1622 = vmatpush1.bf16.msra.mxu0 0
        %1623 = vmatprep.subr.bf16.mxu0 0
        %1624 = vmatpush1.bf16.msra.mxu0 0
        %1625 = vmatprep.subr.bf16.mxu0 0
        %1626 = vmatpush1.bf16.msra.mxu0 0
        %1627 = vmatprep.subr.bf16.mxu0 0
        %1628 = vmatpush1.bf16.msra.mxu0 0
        %1629 = vmatprep.subr.bf16.mxu0 0
        %1630 = vmatpush1.bf16.msra.mxu0 0
        %1631 = vmatprep.subr.bf16.mxu0 0
        %1632 = vmatpush1.bf16.msra.mxu0 0
        %1633 = vmatprep.mubr.bf16.mxu0 0
        %1634 = vmatmul.mubr.bf16.gmra.mrb[0].mxu0 %v1587
        %v1635 = vpop.f32.mrb[0].mxu0
        %v1636 = vadd.f32 0.0, %v1635
        %v1637 = vpop.f32.mrb[0].mxu0
        %v1638 = vpop.f32.mrb[0].mxu0
        %v1639 = vadd.f32 0.0, %v1638
        %v1640 = vpop.f32.mrb[0].mxu0
        %1641 = vmatprep.mubr.bf16.mxu0 0
        %1642 = vmatmul.mubr.bf16.gmra.mrb[0].mxu0 %v1590
        %v1643 = vpop.f32.mrb[0].mxu0
        %v1644 = vadd.f32 0.0, %v1643
        %v1645 = vpop.f32.mrb[0].mxu0
        %v1646 = vpop.f32.mrb[0].mxu0
        %v1647 = vadd.f32 0.0, %v1646
        %v1648 = vpop.f32.mrb[0].mxu0
        %1649 = vmatprep.mubr.bf16.mxu0 0
        %1650 = vmatmul.mubr.bf16.gmra.mrb[0].mxu0 %v1593
        %v1651 = vpop.f32.mrb[0].mxu0
        %v1652 = vadd.f32 0.0, %v1651
        %v1653 = vpop.f32.mrb[0].mxu0
        %v1654 = vpop.f32.mrb[0].mxu0
        %v1655 = vadd.f32 0.0, %v1654
        %v1656 = vpop.f32.mrb[0].mxu0
        %1657 = vmatprep.mubr.bf16.mxu0 0
        %1658 = vmatmul.mubr.bf16.gmra.mrb[0].mxu0 %v1596
        %v1659 = vpop.f32.mrb[0].mxu0
        %v1660 = vadd.f32 0.0, %v1659
        %v1661 = vpop.f32.mrb[0].mxu0
        %v1662 = vpop.f32.mrb[0].mxu0
        %v1663 = vadd.f32 0.0, %v1662
        %v1664 = vpop.f32.mrb[0].mxu0
        %1665 = vdwg.mxu0
        %v1666 = vadd.f32 %v1526, %v1636
        %v1667 = vadd.f32 %v1527, %v1639
        %v1668 = vadd.f32 %v1528, %v1644
        %v1669 = vadd.f32 %v1529, %v1647
        %v1670 = vadd.f32 %v1530, %v1652
        %v1671 = vadd.f32 %v1531, %v1655
        %v1672 = vadd.f32 %v1532, %v1660
        %v1673 = vadd.f32 %v1533, %v1663
        %v1674 = vld [vmem:[#allocation2 + $0x8] sm:$0xf0]
        %v1675 = vld [vmem:[%s2 + $0xc] sm:$0xc]
        %v1681 = vrot.slane %v1674, 4
        %v1682 = vrot.slane %v1380, 4
        %v1683 = vsel %vm693, %v1681, %v1682
        %v1684 = vrot.slane %v1381, 4
        %v1685 = vsel %vm693, %v1682, %v1684
        %v1686 = vrot.slane %v1382, 4
        %v1687 = vsel %vm693, %v1684, %v1686
        %v1688 = vrot.slane %v1535, 4
        %v1689 = vsel %vm693, %v1686, %v1688
        %v1691 = vunpack.c.l.b16 %v1675
        %v1692 = vpack.c.b16 %v1691, %v1691
        %v1693 = vrot.slane %v1692, 2
        %v1695 = vsel %vm404, %v1683, 0
        %v1698 = vsel %vm404, %v1685, 0
        %v1701 = vsel %vm404, %v1687, 0
        %v1704 = vsel %vm404, %v1689, 0
        %v1707 = vsel %vm719, %v1693, 0
        %1709 = vmatprep.subr.bf16.mxu0 0
        %1710 = vmatpush1.bf16.msra.mxu0 %v1707
        %1711 = vmatprep.subr.bf16.mxu0 0
        %1712 = vmatpush1.bf16.msra.mxu0 0
        %1713 = vmatprep.subr.bf16.mxu0 0
        %1714 = vmatpush1.bf16.msra.mxu0 0
        %1715 = vmatprep.subr.bf16.mxu0 0
        %1716 = vmatpush1.bf16.msra.mxu0 0
        %1717 = vmatprep.subr.bf16.mxu0 0
        %1718 = vmatpush1.bf16.msra.mxu0 0
        %1719 = vmatprep.subr.bf16.mxu0 0
        %1720 = vmatpush1.bf16.msra.mxu0 0
        %1721 = vmatprep.subr.bf16.mxu0 0
        %1722 = vmatpush1.bf16.msra.mxu0 0
        %1723 = vmatprep.subr.bf16.mxu0 0
        %1724 = vmatpush1.bf16.msra.mxu0 0
        %1725 = vmatprep.subr.bf16.mxu0 0
        %1726 = vmatpush1.bf16.msra.mxu0 0
        %1727 = vmatprep.subr.bf16.mxu0 0
        %1728 = vmatpush1.bf16.msra.mxu0 0
        %1729 = vmatprep.subr.bf16.mxu0 0
        %1730 = vmatpush1.bf16.msra.mxu0 0
        %1731 = vmatprep.subr.bf16.mxu0 0
        %1732 = vmatpush1.bf16.msra.mxu0 0
        %1733 = vmatprep.subr.bf16.mxu0 0
        %1734 = vmatpush1.bf16.msra.mxu0 0
        %1735 = vmatprep.subr.bf16.mxu0 0
        %1736 = vmatpush1.bf16.msra.mxu0 0
        %1737 = vmatprep.subr.bf16.mxu0 0
        %1738 = vmatpush1.bf16.msra.mxu0 0
        %1739 = vmatprep.subr.bf16.mxu0 0
        %1740 = vmatpush1.bf16.msra.mxu0 0
        %1741 = vmatprep.mubr.bf16.mxu0 0
        %1742 = vmatmul.mubr.bf16.gmra.mrb[0].mxu0 %v1695
        %v1743 = vpop.f32.mrb[0].mxu0
        %v1744 = vadd.f32 0.0, %v1743
        %v1745 = vpop.f32.mrb[0].mxu0
        %v1746 = vpop.f32.mrb[0].mxu0
        %v1747 = vadd.f32 0.0, %v1746
        %v1748 = vpop.f32.mrb[0].mxu0
        %1749 = vmatprep.mubr.bf16.mxu0 0
        %1750 = vmatmul.mubr.bf16.gmra.mrb[0].mxu0 %v1698
        %v1751 = vpop.f32.mrb[0].mxu0
        %v1752 = vadd.f32 0.0, %v1751
        %v1753 = vpop.f32.mrb[0].mxu0
        %v1754 = vpop.f32.mrb[0].mxu0
        %v1755 = vadd.f32 0.0, %v1754
        %v1756 = vpop.f32.mrb[0].mxu0
        %1757 = vmatprep.mubr.bf16.mxu0 0
        %1758 = vmatmul.mubr.bf16.gmra.mrb[0].mxu0 %v1701
        %v1759 = vpop.f32.mrb[0].mxu0
        %v1760 = vadd.f32 0.0, %v1759
        %v1761 = vpop.f32.mrb[0].mxu0
        %v1762 = vpop.f32.mrb[0].mxu0
        %v1763 = vadd.f32 0.0, %v1762
        %v1764 = vpop.f32.mrb[0].mxu0
        %1765 = vmatprep.mubr.bf16.mxu0 0
        %1766 = vmatmul.mubr.bf16.gmra.mrb[0].mxu0 %v1704
        %v1767 = vpop.f32.mrb[0].mxu0
        %v1768 = vadd.f32 0.0, %v1767
        %v1769 = vpop.f32.mrb[0].mxu0
        %v1770 = vpop.f32.mrb[0].mxu0
        %v1771 = vadd.f32 0.0, %v1770
        %v1772 = vpop.f32.mrb[0].mxu0
        %1773 = vdwg.mxu0
        %v1774 = vadd.f32 %v1666, %v1744
        %v1775 = vadd.f32 %v1667, %v1747
        %v1776 = vadd.f32 %v1668, %v1752
        %v1777 = vadd.f32 %v1669, %v1755
        %v1778 = vadd.f32 %v1670, %v1760
        %v1779 = vadd.f32 %v1671, %v1763
        %v1780 = vadd.f32 %v1672, %v1768
        %v1781 = vadd.f32 %v1673, %v1771
        %v1782 = vld [vmem:[#allocation2 + $0x28] sm:$0x1f]
        %v1783 = vsel %vm993, %v1674, 0
        %v1784 = vsel %vm994, %v1380, 0
        %v1785 = vsel %vm995, %v1381, 0
        %v1786 = vsel %vm996, %v1382, 0
        %v1787 = vsel %vm997, %v1782, 0
        %v1788 = vld [vmem:[%s2 + $0x10] sm:$0x3]
        %v1790 = vshrl.u32 %v1783, 16
        %v1792 = vrot.slane %v1790, 4
        %v1793 = vshll.u32 %v1783, 16
        %v1795 = vrot.slane %v1793, 5
        %v1796 = vor.u32 %v1792, %v1795
        %v1798 = vshrl.u32 %v1784, 16
        %v1800 = vrot.slane %v1798, 4
        %v1801 = vshll.u32 %v1784, 16
        %v1803 = vrot.slane %v1801, 5
        %v1804 = vor.u32 %v1800, %v1803
        %v1805 = vsel %vm639, %v1796, %v1804
        %v1807 = vshrl.u32 %v1785, 16
        %v1809 = vrot.slane %v1807, 4
        %v1810 = vshll.u32 %v1785, 16
        %v1812 = vrot.slane %v1810, 5
        %v1813 = vor.u32 %v1809, %v1812
        %v1814 = vsel %vm639, %v1804, %v1813
        %v1816 = vshrl.u32 %v1786, 16
        %v1818 = vrot.slane %v1816, 4
        %v1819 = vshll.u32 %v1786, 16
        %v1821 = vrot.slane %v1819, 5
        %v1822 = vor.u32 %v1818, %v1821
        %v1823 = vsel %vm639, %v1813, %v1822
        %v1825 = vshrl.u32 %v1787, 16
        %v1827 = vrot.slane %v1825, 4
        %v1828 = vshll.u32 %v1787, 16
        %v1830 = vrot.slane %v1828, 5
        %v1831 = vor.u32 %v1827, %v1830
        %v1832 = vsel %vm639, %v1822, %v1831
        %v1834 = vsel %vm404, %v1805, 0
        %v1837 = vsel %vm404, %v1814, 0
        %v1840 = vsel %vm404, %v1823, 0
        %v1843 = vsel %vm404, %v1832, 0
        %v1846 = vsel %vm719, %v1788, 0
        %1848 = vmatprep.subr.bf16.mxu0 0
        %1849 = vmatpush1.bf16.msra.mxu0 %v1846
        %1850 = vmatprep.subr.bf16.mxu0 0
        %1851 = vmatpush1.bf16.msra.mxu0 0
        %1852 = vmatprep.subr.bf16.mxu0 0
        %1853 = vmatpush1.bf16.msra.mxu0 0
        %1854 = vmatprep.subr.bf16.mxu0 0
        %1855 = vmatpush1.bf16.msra.mxu0 0
        %1856 = vmatprep.subr.bf16.mxu0 0
        %1857 = vmatpush1.bf16.msra.mxu0 0
        %1858 = vmatprep.subr.bf16.mxu0 0
        %1859 = vmatpush1.bf16.msra.mxu0 0
        %1860 = vmatprep.subr.bf16.mxu0 0
        %1861 = vmatpush1.bf16.msra.mxu0 0
        %1862 = vmatprep.subr.bf16.mxu0 0
        %1863 = vmatpush1.bf16.msra.mxu0 0
        %1864 = vmatprep.subr.bf16.mxu0 0
        %1865 = vmatpush1.bf16.msra.mxu0 0
        %1866 = vmatprep.subr.bf16.mxu0 0
        %1867 = vmatpush1.bf16.msra.mxu0 0
        %1868 = vmatprep.subr.bf16.mxu0 0
        %1869 = vmatpush1.bf16.msra.mxu0 0
        %1870 = vmatprep.subr.bf16.mxu0 0
        %1871 = vmatpush1.bf16.msra.mxu0 0
        %1872 = vmatprep.subr.bf16.mxu0 0
        %1873 = vmatpush1.bf16.msra.mxu0 0
        %1874 = vmatprep.subr.bf16.mxu0 0
        %1875 = vmatpush1.bf16.msra.mxu0 0
        %1876 = vmatprep.subr.bf16.mxu0 0
        %1877 = vmatpush1.bf16.msra.mxu0 0
        %1878 = vmatprep.subr.bf16.mxu0 0
        %1879 = vmatpush1.bf16.msra.mxu0 0
        %1880 = vmatprep.mubr.bf16.mxu0 0
        %1881 = vmatmul.mubr.bf16.gmra.mrb[0].mxu0 %v1834
        %v1882 = vpop.f32.mrb[0].mxu0
        %v1883 = vadd.f32 0.0, %v1882
        %v1884 = vpop.f32.mrb[0].mxu0
        %v1885 = vpop.f32.mrb[0].mxu0
        %v1886 = vadd.f32 0.0, %v1885
        %v1887 = vpop.f32.mrb[0].mxu0
        %1888 = vmatprep.mubr.bf16.mxu0 0
        %1889 = vmatmul.mubr.bf16.gmra.mrb[0].mxu0 %v1837
        %v1890 = vpop.f32.mrb[0].mxu0
        %v1891 = vadd.f32 0.0, %v1890
        %v1892 = vpop.f32.mrb[0].mxu0
        %v1893 = vpop.f32.mrb[0].mxu0
        %v1894 = vadd.f32 0.0, %v1893
        %v1895 = vpop.f32.mrb[0].mxu0
        %1896 = vmatprep.mubr.bf16.mxu0 0
        %1897 = vmatmul.mubr.bf16.gmra.mrb[0].mxu0 %v1840
        %v1898 = vpop.f32.mrb[0].mxu0
        %v1899 = vadd.f32 0.0, %v1898
        %v1900 = vpop.f32.mrb[0].mxu0
        %v1901 = vpop.f32.mrb[0].mxu0
        %v1902 = vadd.f32 0.0, %v1901
        %v1903 = vpop.f32.mrb[0].mxu0
        %1904 = vmatprep.mubr.bf16.mxu0 0
        %1905 = vmatmul.mubr.bf16.gmra.mrb[0].mxu0 %v1843
        %v1906 = vpop.f32.mrb[0].mxu0
        %v1907 = vadd.f32 0.0, %v1906
        %v1908 = vpop.f32.mrb[0].mxu0
        %v1909 = vpop.f32.mrb[0].mxu0
        %v1910 = vadd.f32 0.0, %v1909
        %v1911 = vpop.f32.mrb[0].mxu0
        %1912 = vdwg.mxu0
        %v1913 = vadd.f32 %v1774, %v1883
        %v1914 = vadd.f32 %v1775, %v1886
        %v1915 = vadd.f32 %v1776, %v1891
        %v1916 = vadd.f32 %v1777, %v1894
        %v1917 = vadd.f32 %v1778, %v1899
        %v1918 = vadd.f32 %v1779, %v1902
        %v1919 = vadd.f32 %v1780, %v1907
        %v1920 = vadd.f32 %v1781, %v1910
        %v1922 = vlaneseq
        %v1923 = vshrl.u32 %v1922, 7
        %v1924 = vsub.s32 0, %v1923
        %v1925 = vrot.slane %v281, %v1924
        %v1927 = vadd.f32 %v1913, %v1925
        %v1928 = vadd.f32 %v1914, %v1925
        %v1929 = vadd.f32 %v1915, %v1925
        %v1930 = vadd.f32 %v1916, %v1925
        %v1931 = vadd.f32 %v1917, %v1925
        %v1932 = vadd.f32 %v1918, %v1925
        %v1933 = vadd.f32 %v1919, %v1925
        %v1934 = vadd.f32 %v1920, %v1925
        %v1935 = vmax.f32 %v1927, 0.0
        %v1936 = vmax.f32 %v1928, 0.0
        %v1937 = vmax.f32 %v1929, 0.0
        %v1938 = vmax.f32 %v1930, 0.0
        %v1939 = vmax.f32 %v1931, 0.0
        %v1940 = vmax.f32 %v1932, 0.0
        %v1941 = vmax.f32 %v1933, 0.0
        %v1942 = vmax.f32 %v1934, 0.0
        %v1943 = vpack.c.bf16 %v1936, %v1935
        %v1944 = vpack.c.bf16 %v1938, %v1937
        %v1945 = vpack.c.bf16 %v1940, %v1939
        %v1946 = vpack.c.bf16 %v1942, %v1941
        %v1947 = vld [vmem:[%s3] sm:$0x3]
        %v1949 = vlaneseq
        %v1950 = vshrl.u32 %v1949, 7
        %v1951 = vsub.s32 0, %v1950
        %v1952 = vrot.slane %v282, %v1951
        %v1955 = vsel %vm404, %v1943, 0
        %v1958 = vsel %vm404, %v1944, 0
        %v1961 = vsel %vm404, %v1945, 0
        %v1964 = vsel %vm404, %v1946, 0
        %v1967 = vsel %vm719, %v1947, 0
        %1969 = vmatprep.subr.bf16.mxu0 0
        %1970 = vmatpush1.bf16.msra.mxu0 %v1967
        %1971 = vmatprep.subr.bf16.mxu0 0
        %1972 = vmatpush1.bf16.msra.mxu0 0
        %1973 = vmatprep.subr.bf16.mxu0 0
        %1974 = vmatpush1.bf16.msra.mxu0 0
        %1975 = vmatprep.subr.bf16.mxu0 0
        %1976 = vmatpush1.bf16.msra.mxu0 0
        %1977 = vmatprep.subr.bf16.mxu0 0
        %1978 = vmatpush1.bf16.msra.mxu0 0
        %1979 = vmatprep.subr.bf16.mxu0 0
        %1980 = vmatpush1.bf16.msra.mxu0 0
        %1981 = vmatprep.subr.bf16.mxu0 0
        %1982 = vmatpush1.bf16.msra.mxu0 0
        %1983 = vmatprep.subr.bf16.mxu0 0
        %1984 = vmatpush1.bf16.msra.mxu0 0
        %1985 = vmatprep.subr.bf16.mxu0 0
        %1986 = vmatpush1.bf16.msra.mxu0 0
        %1987 = vmatprep.subr.bf16.mxu0 0
        %1988 = vmatpush1.bf16.msra.mxu0 0
        %1989 = vmatprep.subr.bf16.mxu0 0
        %1990 = vmatpush1.bf16.msra.mxu0 0
        %1991 = vmatprep.subr.bf16.mxu0 0
        %1992 = vmatpush1.bf16.msra.mxu0 0
        %1993 = vmatprep.subr.bf16.mxu0 0
        %1994 = vmatpush1.bf16.msra.mxu0 0
        %1995 = vmatprep.subr.bf16.mxu0 0
        %1996 = vmatpush1.bf16.msra.mxu0 0
        %1997 = vmatprep.subr.bf16.mxu0 0
        %1998 = vmatpush1.bf16.msra.mxu0 0
        %1999 = vmatprep.subr.bf16.mxu0 0
        %2000 = vmatpush1.bf16.msra.mxu0 0
        %2001 = vmatprep.mubr.bf16.mxu0 0
        %2002 = vmatmul.mubr.bf16.gmra.mrb[0].mxu0 %v1955
        %v2003 = vpop.f32.mrb[0].mxu0
        %v2004 = vadd.f32 %v1952, %v2003
        %v2005 = vpop.f32.mrb[0].mxu0
        %v2006 = vpop.f32.mrb[0].mxu0
        %v2007 = vadd.f32 %v1952, %v2006
        %v2008 = vpop.f32.mrb[0].mxu0
        %2009 = vmatprep.mubr.bf16.mxu0 0
        %2010 = vmatmul.mubr.bf16.gmra.mrb[0].mxu0 %v1958
        %v2011 = vpop.f32.mrb[0].mxu0
        %v2012 = vadd.f32 %v1952, %v2011
        %v2013 = vpop.f32.mrb[0].mxu0
        %v2014 = vpop.f32.mrb[0].mxu0
        %v2015 = vadd.f32 %v1952, %v2014
        %v2016 = vpop.f32.mrb[0].mxu0
        %2017 = vmatprep.mubr.bf16.mxu0 0
        %2018 = vmatmul.mubr.bf16.gmra.mrb[0].mxu0 %v1961
        %v2019 = vpop.f32.mrb[0].mxu0
        %v2020 = vadd.f32 %v1952, %v2019
        %v2021 = vpop.f32.mrb[0].mxu0
        %v2022 = vpop.f32.mrb[0].mxu0
        %v2023 = vadd.f32 %v1952, %v2022
        %v2024 = vpop.f32.mrb[0].mxu0
        %2025 = vmatprep.mubr.bf16.mxu0 0
        %2026 = vmatmul.mubr.bf16.gmra.mrb[0].mxu0 %v1964
        %v2027 = vpop.f32.mrb[0].mxu0
        %v2028 = vadd.f32 %v1952, %v2027
        %v2029 = vpop.f32.mrb[0].mxu0
        %v2030 = vpop.f32.mrb[0].mxu0
        %v2031 = vadd.f32 %v1952, %v2030
        %v2032 = vpop.f32.mrb[0].mxu0
        %2033 = vdwg.mxu0
        %v2034 = vunpack.c.l.bf16 %v407
        %v2035 = vunpack.c.l.bf16 %v408
        %v2036 = vunpack.c.l.bf16 %v409
        %v2037 = vunpack.c.l.bf16 %v410
        %v2038 = vunpack.c.l.bf16 %v411
        %v2039 = vunpack.c.l.bf16 %v412
        %v2040 = vunpack.c.l.bf16 %v413
        %v2041 = vunpack.c.l.bf16 %v414
        %v2042 = vadd.f32 %v2004, %v2034
        %v2043 = vadd.f32 %v2007, %v2035
        %v2044 = vadd.f32 %v2012, %v2036
        %v2045 = vadd.f32 %v2015, %v2037
        %v2046 = vadd.f32 %v2020, %v2038
        %v2047 = vadd.f32 %v2023, %v2039
        %v2048 = vadd.f32 %v2028, %v2040
        %v2049 = vadd.f32 %v2031, %v2041
        %v2050 = vmax.f32 %v2042, 0.0
        %v2051 = vmax.f32 %v2043, 0.0
        %v2052 = vmax.f32 %v2044, 0.0
        %v2053 = vmax.f32 %v2045, 0.0
        %v2054 = vmax.f32 %v2046, 0.0
        %v2055 = vmax.f32 %v2047, 0.0
        %v2056 = vmax.f32 %v2048, 0.0
        %v2057 = vmax.f32 %v2049, 0.0
        %v2058 = vpack.c.bf16 %v2051, %v2050
        %v2059 = vpack.c.bf16 %v2053, %v2052
        %v2060 = vpack.c.bf16 %v2055, %v2054
        %v2061 = vpack.c.bf16 %v2057, %v2056
        %v2066 = vunpack.c.l.b16 %v2058
        %v2067 = vunpack.c.h.b16 %v2058
        %v2068 = vunpack.c.l.b16 %v2059
        %v2069 = vunpack.c.h.b16 %v2059
        %v2070 = vunpack.c.l.b16 %v2060
        %v2071 = vunpack.c.h.b16 %v2060
        %v2072 = vunpack.c.l.b16 %v2061
        %v2073 = vunpack.c.h.b16 %v2061
        %v2074 = vpack.c.b16 %v2066, %v2066
        %v2075 = vpack.c.b16 %v2067, %v2067
        %v2076 = vpack.c.b16 %v2068, %v2068
        %v2077 = vpack.c.b16 %v2069, %v2069
        %v2078 = vpack.c.b16 %v2070, %v2070
        %v2079 = vpack.c.b16 %v2071, %v2071
        %v2080 = vpack.c.b16 %v2072, %v2072
        %v2081 = vpack.c.b16 %v2073, %v2073
        %2090 = vst [vmem:[%s271] sm:$0xf] %v2074
        %2091 = vst [vmem:[%s271 + $0x4] sm:$0xf] %v2075
        %2092 = vst [vmem:[%s271 + $0x8] sm:$0xf] %v2076
        %2093 = vst [vmem:[%s271 + $0xc] sm:$0xf] %v2077
        %2094 = vst [vmem:[%s271 + $0x10] sm:$0xf] %v2078
        %2095 = vst [vmem:[%s271 + $0x14] sm:$0xf] %v2079
        %2096 = vst [vmem:[%s271 + $0x18] sm:$0xf] %v2080
        %2097 = vst [vmem:[%s271 + $0x1c] sm:$0xf] %v2081
        %s2098 = sand.u32 %s181, 1
        %s2099 = scalar_lea.sflag [#allocation4], %s2098
        %s2100 = sand.u32 %s181, 1
        %s2101 = smul.addr %s2100, 32
        %s2102 = scalar_lea.vmem [#allocation3], %s2101
        // Predicated region
        $region49: #{tpu_custom_call.1} parent=47 // pred_check
          %p2103 = pneg %p191
        $region50: #{tpu_custom_call.1} parent=47 // pred_check_branch
          %2105 = sbr.rel (%p2103) target = $region52
        $region51: #{tpu_custom_call.1} parent=47 // pred_region
          %s2107 = ssub.s32 512, 512
          %2108 = vsyncadd %s2099, %s2107
          %s2109 = smul.addr %s21, 8
          %s2110 = smul.addr %s2109, 64
          %s2111 = scalar_lea.hbm %s7, %s2110
          %s2112 = sshll.u32 %s2102, 4
          %s2113 = int_to_ptr.vmem [resolvable:$true] %s2112
          %2118 = dma.vmem_to_hbm [thread:$0]  %s2113, 512, %s2111, %s2099, 64, 64, 4
        $region52: #{tpu_custom_call.1} parent=47 // pred_fallthru
          _
      $region48: #{tpu_custom_call.1} parent=5 // pred_fallthru
        _
      %p2119 = scmp.le.s32.totalorder 2, %s16
      // Predicated region
      $region53: #{tpu_custom_call.1} parent=5 // pred_check
        %p2120 = pneg %p2119
      $region54: #{tpu_custom_call.1} parent=5 // pred_check_branch
        %2122 = sbr.rel (%p2120) target = $region56
      $region55: #{tpu_custom_call.1} parent=5 // pred_region
        %s2123 = ssub.s32 %s16, 2
        // Predicated region
        $region57: #{tpu_custom_call.1} parent=55 // pred_check
          %p2124 = pneg %p197
        $region58: #{tpu_custom_call.1} parent=55 // pred_check_branch
          %2126 = sbr.rel (%p2124) target = $region60
        $region59: #{tpu_custom_call.1} parent=55 // pred_region
          %s2127 = sand.u32 %s182, 1
          %s2128 = scalar_lea.sflag [#allocation4], %s2127
          %s2129 = sand.u32 %s182, 1
          %s2130 = smul.addr %s2129, 32
          %s2131 = scalar_lea.vmem [#allocation3], %s2130
          %2132 = dma.done %s2128, 512
        $region60: #{tpu_custom_call.1} parent=55 // pred_fallthru
          _
      $region56: #{tpu_custom_call.1} parent=5 // pred_fallthru
        _
    $region6: #{tpu_custom_call.1} parent=1 // loop_footer
      %s20 = sadd.s32 1, %s16
    $region7: #{tpu_custom_call.1} parent=1 // loop_footer_branch
      %15 = sbr.rel target = $region3
    $region8: #{tpu_custom_call.1} parent=1 // loop_exit
      _
    %2133 = vsyncpa [#allocation4], 1
    %s2134 = scalar_lea.sflag [#allocation4], 1
    %2135 = vsyncpa %s2134, 1

// kernel: tpu_custom_call.1
$region0: #{tpu_custom_call.1}
  #allocation0 [shape = 'u32[]', space=smem, size = 0x4, offset = 0x4, fixed_abs, tag = 'smem constant byte address 0x4 - core index']
  #allocation1 [shape = 'u32[144,128]{1,0:T(1,128)}', space=vmem, size = 0x12000, scoped, tag = 'internal scratch']
  #allocation2 [shape = 'bf16[96,4]{1,0:T(16,128)(2,1)}', space=vmem, size = 0x6000, scoped, tag = 'scratch operand']
  %s0 = inlined_call_operand.vmem [shape: bf16[2,64,128], index: 0, kind: input, shape index: {}]
  %s1 = inlined_call_operand.vmem [shape: bf16[128,4], index: 1, kind: input, shape index: {}]
  %s2 = inlined_call_operand.vmem [shape: bf16[36,4], index: 2, kind: input, shape index: {}]
  %s3 = inlined_call_operand.vmem [shape: bf16[4,128], index: 3, kind: input, shape index: {}]
  %s4 = inlined_call_operand.vmem [shape: f32[1,4], index: 4, kind: input, shape index: {}]
  %s5 = inlined_call_operand.vmem [shape: f32[1,4], index: 5, kind: input, shape index: {}]
  %s6 = inlined_call_operand.vmem [shape: f32[1,128], index: 6, kind: input, shape index: {}]
  %s7 = inlined_call_operand.hbm [shape: bf16[2,64,128], index: 7, kind: output, shape index: {}]
  %s8 = sld [smem:[#allocation0]]
  $region61: #{tpu_custom_call.1} parent=0
    _
  %s10 = ssub.s32 1, %s8
  %s11 = scalar_select 0, %s10, %s8
  $region1: #{tpu_custom_call.1} parent=0
    #allocation3 [shape = 'u8[32768]{0}', space=vmem, size = 0x8000, scoped, tag = 'output window, operand 0']
    #allocation4 [shape = 's32[2]{0}', space=sflag, size = 0x8, scoped, tag = 'scoped memory for tpu_custom_call.1']
    %12 = vsyncpa [#allocation4], 0
    %s13 = scalar_lea.sflag [#allocation4], 1
    %14 = vsyncpa %s13, 0
    loop: start=0, step=1, limit=4
    $region2: #{tpu_custom_call.1} parent=1 // loop_pre_header
      _
    $region3: #{tpu_custom_call.1} parent=1 // loop_header
      %s16 = sphi 0, %s20
      %p17 = scmp.ge.s32.totalorder %s16, 4
      %s26 = sphi 0, %s28
      %s29 = sphi 0, %s26
      %s30 = sphi 0, %s29
      %s46 = sphi 0, %s30
      %s50 = sphi 0, %s50
      %s52 = sphi 0, %s50
      %s53 = sphi 0, %s52
      %s67 = sphi 0, %s53
      %s71 = sphi 0, %s71
      %s73 = sphi 0, %s71
      %s74 = sphi 0, %s73
      %s88 = sphi 0, %s74
      %s92 = sphi 0, %s92
      %s94 = sphi 0, %s92
      %s95 = sphi 0, %s94
      %s109 = sphi 0, %s95
      %s113 = sphi 0, %s113
      %s115 = sphi 0, %s113
      %s116 = sphi 0, %s115
      %s130 = sphi 0, %s116
      %s134 = sphi 0, %s134
      %s136 = sphi 0, %s134
      %s137 = sphi 0, %s136
      %s151 = sphi 0, %s137
      %s155 = sphi 0, %s155
      %s157 = sphi 0, %s155
      %s158 = sphi 0, %s157
      %s172 = sphi 0, %s158
      %s178 = sphi 0, %s180
      %s181 = sphi 0, %s178
      %s182 = sphi 0, %s181
      %s198 = sphi 0, %s182
    $region4: #{tpu_custom_call.1} parent=1 // loop_header_branch
      %19 = sbr.rel (%p17) target = $region8
    $region5: #{tpu_custom_call.1} parent=1 // loop_body
      %s21 = ssub.s32 %s16, 1
      %s22 = ssub.s32 %s16, 2
      %s23 = sadd.s32 %s16, 1
      %s24 = ssub.s32 %s16, %s23
      %p25 = scmp.eq.s32.totalorder %s24, 0
      %s27 = sadd.s32 %s26, 1
      %s28 = scalar_select %p25, %s26, %s27
      %p31 = pneg %p25
      %p32 = scmp.eq.s32.totalorder %s16, 1
      %p33 = por %p31, %p32
      %p34 = scmp.ne.s32.totalorder %s26, %s29
      %p35 = scmp.eq.s32.totalorder %s16, 0
      %p36 = por %p34, %p35
      %p37 = scmp.ne.s32.totalorder %s26, %s29
      %p38 = scmp.eq.s32.totalorder %s21, 1
      %p39 = por %p37, %p38
      %p40 = scmp.ne.s32.totalorder %s29, %s30
      %p41 = scmp.eq.s32.totalorder %s21, 0
      %p42 = por %p40, %p41
      %p43 = scmp.ne.s32.totalorder %s29, %s30
      %p44 = scmp.eq.s32.totalorder %s22, 1
      %p45 = por %p43, %p44
      %p47 = scmp.ne.s32.totalorder %s30, %s46
      %p48 = scmp.eq.s32.totalorder %s22, 0
      %p49 = por %p47, %p48
      %s51 = sadd.s32 %s50, 1
      %p54 = scmp.eq.s32.totalorder %s16, 1
      %p55 = scmp.ne.s32.totalorder %s50, %s52
      %p56 = scmp.eq.s32.totalorder %s16, 0
      %p57 = por %p55, %p56
      %p58 = scmp.ne.s32.totalorder %s50, %s52
      %p59 = scmp.eq.s32.totalorder %s21, 1
      %p60 = por %p58, %p59
      %p61 = scmp.ne.s32.totalorder %s52, %s53
      %p62 = scmp.eq.s32.totalorder %s21, 0
      %p63 = por %p61, %p62
      %p64 = scmp.ne.s32.totalorder %s52, %s53
      %p65 = scmp.eq.s32.totalorder %s22, 1
      %p66 = por %p64, %p65
      %p68 = scmp.ne.s32.totalorder %s53, %s67
      %p69 = scmp.eq.s32.totalorder %s22, 0
      %p70 = por %p68, %p69
      %s72 = sadd.s32 %s71, 1
      %p75 = scmp.eq.s32.totalorder %s16, 1
      %p76 = scmp.ne.s32.totalorder %s71, %s73
      %p77 = scmp.eq.s32.totalorder %s16, 0
      %p78 = por %p76, %p77
      %p79 = scmp.ne.s32.totalorder %s71, %s73
      %p80 = scmp.eq.s32.totalorder %s21, 1
      %p81 = por %p79, %p80
      %p82 = scmp.ne.s32.totalorder %s73, %s74
      %p83 = scmp.eq.s32.totalorder %s21, 0
      %p84 = por %p82, %p83
      %p85 = scmp.ne.s32.totalorder %s73, %s74
      %p86 = scmp.eq.s32.totalorder %s22, 1
      %p87 = por %p85, %p86
      %p89 = scmp.ne.s32.totalorder %s74, %s88
      %p90 = scmp.eq.s32.totalorder %s22, 0
      %p91 = por %p89, %p90
      %s93 = sadd.s32 %s92, 1
      %p96 = scmp.eq.s32.totalorder %s16, 1
      %p97 = scmp.ne.s32.totalorder %s92, %s94
      %p98 = scmp.eq.s32.totalorder %s16, 0
      %p99 = por %p97, %p98
      %p100 = scmp.ne.s32.totalorder %s92, %s94
      %p101 = scmp.eq.s32.totalorder %s21, 1
      %p102 = por %p100, %p101
      %p103 = scmp.ne.s32.totalorder %s94, %s95
      %p104 = scmp.eq.s32.totalorder %s21, 0
      %p105 = por %p103, %p104
      %p106 = scmp.ne.s32.totalorder %s94, %s95
      %p107 = scmp.eq.s32.totalorder %s22, 1
      %p108 = por %p106, %p107
      %p110 = scmp.ne.s32.totalorder %s95, %s109
      %p111 = scmp.eq.s32.totalorder %s22, 0
      %p112 = por %p110, %p111
      %s114 = sadd.s32 %s113, 1
      %p117 = scmp.eq.s32.totalorder %s16, 1
      %p118 = scmp.ne.s32.totalorder %s113, %s115
      %p119 = scmp.eq.s32.totalorder %s16, 0
      %p120 = por %p118, %p119
      %p121 = scmp.ne.s32.totalorder %s113, %s115
      %p122 = scmp.eq.s32.totalorder %s21, 1
      %p123 = por %p121, %p122
      %p124 = scmp.ne.s32.totalorder %s115, %s116
      %p125 = scmp.eq.s32.totalorder %s21, 0
      %p126 = por %p124, %p125
      %p127 = scmp.ne.s32.totalorder %s115, %s116
      %p128 = scmp.eq.s32.totalorder %s22, 1
      %p129 = por %p127, %p128
      %p131 = scmp.ne.s32.totalorder %s116, %s130
      %p132 = scmp.eq.s32.totalorder %s22, 0
      %p133 = por %p131, %p132
      %s135 = sadd.s32 %s134, 1
      %p138 = scmp.eq.s32.totalorder %s16, 1
      %p139 = scmp.ne.s32.totalorder %s134, %s136
      %p140 = scmp.eq.s32.totalorder %s16, 0
      %p141 = por %p139, %p140
      %p142 = scmp.ne.s32.totalorder %s134, %s136
      %p143 = scmp.eq.s32.totalorder %s21, 1
      %p144 = por %p142, %p143
      %p145 = scmp.ne.s32.totalorder %s136, %s137
      %p146 = scmp.eq.s32.totalorder %s21, 0
      %p147 = por %p145, %p146
      %p148 = scmp.ne.s32.totalorder %s136, %s137
      %p149 = scmp.eq.s32.totalorder %s22, 1
      %p150 = por %p148, %p149
      %p152 = scmp.ne.s32.totalorder %s137, %s151
      %p153 = scmp.eq.s32.totalorder %s22, 0
      %p154 = por %p152, %p153
      %s156 = sadd.s32 %s155, 1
      %p159 = scmp.eq.s32.totalorder %s16, 1
      %p160 = scmp.ne.s32.totalorder %s155, %s157
      %p161 = scmp.eq.s32.totalorder %s16, 0
      %p162 = por %p160, %p161
      %p163 = scmp.ne.s32.totalorder %s155, %s157
      %p164 = scmp.eq.s32.totalorder %s21, 1
      %p165 = por %p163, %p164
      %p166 = scmp.ne.s32.totalorder %s157, %s158
      %p167 = scmp.eq.s32.totalorder %s21, 0
      %p168 = por %p166, %p167
      %p169 = scmp.ne.s32.totalorder %s157, %s158
      %p170 = scmp.eq.s32.totalorder %s22, 1
      %p171 = por %p169, %p170
      %p173 = scmp.ne.s32.totalorder %s158, %s172
      %p174 = scmp.eq.s32.totalorder %s22, 0
      %p175 = por %p173, %p174
      %s176 = ssub.s32 %s16, %s23
      %p177 = scmp.eq.s32.totalorder %s176, 0
      %s179 = sadd.s32 %s178, 1
      %s180 = scalar_select %p177, %s178, %s179
      %p183 = pneg %p177
      %p184 = scmp.eq.s32.totalorder %s16, 1
      %p185 = por %p183, %p184
      %p186 = scmp.ne.s32.totalorder %s178, %s181
      %p187 = scmp.eq.s32.totalorder %s16, 0
      %p188 = por %p186, %p187
      %p189 = scmp.ne.s32.totalorder %s178, %s181
      %p190 = scmp.eq.s32.totalorder %s21, 1
      %p191 = por %p189, %p190
      %p192 = scmp.ne.s32.totalorder %s181, %s182
      %p193 = scmp.eq.s32.totalorder %s21, 0
      %p194 = por %p192, %p193
      %p195 = scmp.ne.s32.totalorder %s181, %s182
      %p196 = scmp.eq.s32.totalorder %s22, 1
      %p197 = por %p195, %p196
      %p199 = scmp.ne.s32.totalorder %s182, %s198
      %p200 = scmp.eq.s32.totalorder %s22, 0
      %p201 = por %p199, %p200
      %p202 = scmp.le.s32.totalorder 1, %s16
      %p203 = scmp.lt.s32.totalorder %s16, 3
      %p204 = pnand %p202, %p203
      %p205 = pneg %p204
      // Predicated region
      $region9: #{tpu_custom_call.1} parent=5 // pred_check
        _
      $region10: #{tpu_custom_call.1} parent=5 // pred_check_branch
        %207 = sbr.rel (%p204) target = $region12
      $region11: #{tpu_custom_call.1} parent=5 // pred_region
        %s208 = ssub.s32 %s16, 1
        // Predicated region
        $region13: #{tpu_custom_call.1} parent=11 // pred_check
          %p209 = pneg %p63
        $region14: #{tpu_custom_call.1} parent=11 // pred_check_branch
          %211 = sbr.rel (%p209) target = $region16
        $region15: #{tpu_custom_call.1} parent=11 // pred_region
          _
        $region16: #{tpu_custom_call.1} parent=11 // pred_fallthru
          _
        // Predicated region
        $region17: #{tpu_custom_call.1} parent=11 // pred_check
          %p212 = pneg %p84
        $region18: #{tpu_custom_call.1} parent=11 // pred_check_branch
          %214 = sbr.rel (%p212) target = $region20
        $region19: #{tpu_custom_call.1} parent=11 // pred_region
          _
        $region20: #{tpu_custom_call.1} parent=11 // pred_fallthru
          _
        // Predicated region
        $region21: #{tpu_custom_call.1} parent=11 // pred_check
          %p215 = pneg %p105
        $region22: #{tpu_custom_call.1} parent=11 // pred_check_branch
          %217 = sbr.rel (%p215) target = $region24
        $region23: #{tpu_custom_call.1} parent=11 // pred_region
          _
        $region24: #{tpu_custom_call.1} parent=11 // pred_fallthru
          _
        // Predicated region
        $region25: #{tpu_custom_call.1} parent=11 // pred_check
          %p218 = pneg %p126
        $region26: #{tpu_custom_call.1} parent=11 // pred_check_branch
          %220 = sbr.rel (%p218) target = $region28
        $region27: #{tpu_custom_call.1} parent=11 // pred_region
          _
        $region28: #{tpu_custom_call.1} parent=11 // pred_fallthru
          _
        // Predicated region
        $region29: #{tpu_custom_call.1} parent=11 // pred_check
          %p221 = pneg %p147
        $region30: #{tpu_custom_call.1} parent=11 // pred_check_branch
          %223 = sbr.rel (%p221) target = $region32
        $region31: #{tpu_custom_call.1} parent=11 // pred_region
          _
        $region32: #{tpu_custom_call.1} parent=11 // pred_fallthru
          _
        // Predicated region
        $region33: #{tpu_custom_call.1} parent=11 // pred_check
          %p224 = pneg %p168
        $region34: #{tpu_custom_call.1} parent=11 // pred_check_branch
          %226 = sbr.rel (%p224) target = $region36
        $region35: #{tpu_custom_call.1} parent=11 // pred_region
          _
        $region36: #{tpu_custom_call.1} parent=11 // pred_fallthru
          _
      $region12: #{tpu_custom_call.1} parent=5 // pred_fallthru
        _
      %p227 = scmp.lt.s32.totalorder %s16, 2
      // Predicated region
      $region37: #{tpu_custom_call.1} parent=5 // pred_check
        %p228 = pneg %p227
      $region38: #{tpu_custom_call.1} parent=5 // pred_check_branch
        %230 = sbr.rel (%p228) target = $region40
      $region39: #{tpu_custom_call.1} parent=5 // pred_region
        // Predicated region
        $region41: #{tpu_custom_call.1} parent=39 // pred_check
          %p231 = pneg %p36
        $region42: #{tpu_custom_call.1} parent=39 // pred_check_branch
          %233 = sbr.rel (%p231) target = $region44
        $region43: #{tpu_custom_call.1} parent=39 // pred_region
          %p234 = scmp.lt.s32.totalorder %s16, 1
          %s235 = scalar_select %p234, %s16, 1
          %s236 = smul.addr %s235, 8
          %s237 = smul.addr %s236, 4
          %s238 = scalar_lea.vmem %s0, %s237
        $region44: #{tpu_custom_call.1} parent=39 // pred_fallthru
          _
      $region40: #{tpu_custom_call.1} parent=5 // pred_fallthru
        _
      %p239 = scmp.le.s32.totalorder 1, %s16
      %p240 = scmp.lt.s32.totalorder %s16, 3
      %p241 = pnand %p239, %p240
      %p242 = pneg %p241
      // Predicated region
      $region45: #{tpu_custom_call.1} parent=5 // pred_check
        _
      $region46: #{tpu_custom_call.1} parent=5 // pred_check_branch
        %244 = sbr.rel (%p241) target = $region48
      $region47: #{tpu_custom_call.1} parent=5 // pred_region
        %s245 = ssub.s32 %s16, 1
        %p246 = scmp.lt.s32.totalorder %s21, 1
        %s247 = scalar_select %p246, %s21, 1
        %s248 = smul.addr %s247, 8
        %s249 = smul.addr %s248, 4
        %s250 = scalar_lea.vmem %s0, %s249
        %p251 = pneg %p42
        %p252 = pneg %p39
        %p253 = pneg %p63
        %p254 = pneg %p60
        %p255 = pneg %p84
        %p256 = pneg %p81
        %p257 = pneg %p105
        %p258 = pneg %p102
        %p259 = pneg %p126
        %p260 = pneg %p123
        %p261 = pneg %p147
        %p262 = pneg %p144
        %p263 = pneg %p168
        %p264 = pneg %p165
        %p265 = pneg %p194
        %p266 = pneg %p191
        %s267 = sand.u32 %s181, 1
        %s268 = scalar_lea.sflag [#allocation4], %s267
        %s269 = sand.u32 %s181, 1
        %s270 = smul.addr %s269, 32
        %s271 = scalar_lea.vmem [#allocation3], %s270
        %p272 = scmp.lt.s32.totalorder %s21, 1
        %s273 = scalar_select %p272, %s21, 1
        %s274 = smul.addr %s273, 8
        %s275 = smul.addr %s274, 4
        %s276 = scalar_lea.vmem %s0, %s275
        %v280 = vld [vmem:[%s4] sm:$0x1]
        %v281 = vld [vmem:[%s5] sm:$0x1]
        %v282 = vld [vmem:[%s6] sm:$0x1]
        %v283 = vlaneseq
        %v284 = vshrl.u32 %v283, 7
        %v285 = vadd.s32 %v284, 8
        %v286 = vadd.s32 %v284, 16
        %v287 = vadd.s32 %v284, 24
        %v288 = vadd.s32 %v284, 32
        %v289 = vadd.s32 %v284, 40
        %v290 = vadd.s32 %v284, 48
        %v291 = vadd.s32 %v284, 56
        %vm292 = vcmp.lt.s32.totalorder %v284, 0
        %v293 = vsub.s32 0, %v284
        %v294 = vsel %vm292, %v293, %v284
        %v295 = vshrl.u32 %v294, 3
        %v296 = vand.u32 %v294, 7
        %v297 = vsub.s32 0, %v296
        %v298 = vsel %vm292, %v297, %v296
        %vm299 = vcmp.lt.s32.totalorder %v285, 0
        %v300 = vsub.s32 0, %v285
        %v301 = vsel %vm299, %v300, %v285
        %v302 = vshrl.u32 %v301, 3
        %v303 = vand.u32 %v301, 7
        %v304 = vsub.s32 0, %v303
        %v305 = vsel %vm299, %v304, %v303
        %vm306 = vcmp.lt.s32.totalorder %v286, 0
        %v307 = vsub.s32 0, %v286
        %v308 = vsel %vm306, %v307, %v286
        %v309 = vshrl.u32 %v308, 3
        %v310 = vand.u32 %v308, 7
        %v311 = vsub.s32 0, %v310
        %v312 = vsel %vm306, %v311, %v310
        %vm313 = vcmp.lt.s32.totalorder %v287, 0
        %v314 = vsub.s32 0, %v287
        %v315 = vsel %vm313, %v314, %v287
        %v316 = vshrl.u32 %v315, 3
        %v317 = vand.u32 %v315, 7
        %v318 = vsub.s32 0, %v317
        %v319 = vsel %vm313, %v318, %v317
        %vm320 = vcmp.lt.s32.totalorder %v288, 0
        %v321 = vsub.s32 0, %v288
        %v322 = vsel %vm320, %v321, %v288
        %v323 = vshrl.u32 %v322, 3
        %v324 = vand.u32 %v322, 7
        %v325 = vsub.s32 0, %v324
        %v326 = vsel %vm320, %v325, %v324
        %vm327 = vcmp.lt.s32.totalorder %v289, 0
        %v328 = vsub.s32 0, %v289
        %v329 = vsel %vm327, %v328, %v289
        %v330 = vshrl.u32 %v329, 3
        %v331 = vand.u32 %v329, 7
        %v332 = vsub.s32 0, %v331
        %v333 = vsel %vm327, %v332, %v331
        %vm334 = vcmp.lt.s32.totalorder %v290, 0
        %v335 = vsub.s32 0, %v290
        %v336 = vsel %vm334, %v335, %v290
        %v337 = vshrl.u32 %v336, 3
        %v338 = vand.u32 %v336, 7
        %v339 = vsub.s32 0, %v338
        %v340 = vsel %vm334, %v339, %v338
        %vm341 = vcmp.lt.s32.totalorder %v291, 0
        %v342 = vsub.s32 0, %v291
        %v343 = vsel %vm341, %v342, %v291
        %v344 = vshrl.u32 %v343, 3
        %v345 = vand.u32 %v343, 7
        %v346 = vsub.s32 0, %v345
        %v347 = vsel %vm341, %v346, %v345
        %vm348 = vcmp.ne.s32.totalorder %v298, 0
        %vm349 = vcmp.ne.s32.totalorder %v305, 0
        %vm350 = vcmp.ne.s32.totalorder %v312, 0
        %vm351 = vcmp.ne.s32.totalorder %v319, 0
        %vm352 = vcmp.ne.s32.totalorder %v326, 0
        %vm353 = vcmp.ne.s32.totalorder %v333, 0
        %vm354 = vcmp.ne.s32.totalorder %v340, 0
        %vm355 = vcmp.ne.s32.totalorder %v347, 0
        %vm356 = vcmp.lt.s32.totalorder %v298, 0
        %vm357 = vcmp.lt.s32.totalorder %v305, 0
        %vm358 = vcmp.lt.s32.totalorder %v312, 0
        %vm359 = vcmp.lt.s32.totalorder %v319, 0
        %vm360 = vcmp.lt.s32.totalorder %v326, 0
        %vm361 = vcmp.lt.s32.totalorder %v333, 0
        %vm362 = vcmp.lt.s32.totalorder %v340, 0
        %vm363 = vcmp.lt.s32.totalorder %v347, 0
        %vm364 = vmand %vm356, %vm348
        %vm365 = vmand %vm357, %vm349
        %vm366 = vmand %vm358, %vm350
        %vm367 = vmand %vm359, %vm351
        %vm368 = vmand %vm360, %vm352
        %vm369 = vmand %vm361, %vm353
        %vm370 = vmand %vm362, %vm354
        %vm371 = vmand %vm363, %vm355
        %v372 = vadd.s32 %v298, 8
        %v373 = vadd.s32 %v305, 8
        %v374 = vadd.s32 %v312, 8
        %v375 = vadd.s32 %v319, 8
        %v376 = vadd.s32 %v326, 8
        %v377 = vadd.s32 %v333, 8
        %v378 = vadd.s32 %v340, 8
        %v379 = vadd.s32 %v347, 8
        %v380 = vsel %vm364, %v372, %v298
        %v381 = vsel %vm365, %v373, %v305
        %v382 = vsel %vm366, %v374, %v312
        %v383 = vsel %vm367, %v375, %v319
        %v384 = vsel %vm368, %v376, %v326
        %v385 = vsel %vm369, %v377, %v333
        %v386 = vsel %vm370, %v378, %v340
        %v387 = vsel %vm371, %v379, %v347
        %vm388 = vcmp.ge.s32.totalorder %v380, 1
        %vm389 = vcmp.ge.s32.totalorder %v381, 1
        %vm390 = vcmp.ge.s32.totalorder %v382, 1
        %vm391 = vcmp.ge.s32.totalorder %v383, 1
        %vm392 = vcmp.ge.s32.totalorder %v384, 1
        %vm393 = vcmp.ge.s32.totalorder %v385, 1
        %vm394 = vcmp.ge.s32.totalorder %v386, 1
        %vm395 = vcmp.ge.s32.totalorder %v387, 1
        %vm396 = vcmp.le.s32.totalorder %v380, 6
        %vm397 = vcmp.le.s32.totalorder %v381, 6
        %vm398 = vcmp.le.s32.totalorder %v382, 6
        %vm399 = vcmp.le.s32.totalorder %v383, 6
        %vm400 = vcmp.le.s32.totalorder %v384, 6
        %vm401 = vcmp.le.s32.totalorder %v385, 6
        %vm402 = vcmp.le.s32.totalorder %v386, 6
        %vm403 = vcmp.le.s32.totalorder %v387, 6
        %vm404 = vcmask 31744
        %405 = vst.msk [vmem:[#allocation2] sm:$0xff] %vm404, 0
        %406 = vst.msk [vmem:[#allocation2 + $0x28] sm:$0xff] %vm404, 0
        %v407 = vld [vmem:[%s276] sm:$0xf]
        %v408 = vld [vmem:[%s276 + $0x4] sm:$0xf]
        %v409 = vld [vmem:[%s276 + $0x8] sm:$0xf]
        %v410 = vld [vmem:[%s276 + $0xc] sm:$0xf]
        %v411 = vld [vmem:[%s276 + $0x10] sm:$0xf]
        %v412 = vld [vmem:[%s276 + $0x14] sm:$0xf]
        %v413 = vld [vmem:[%s276 + $0x18] sm:$0xf]
        %v414 = vld [vmem:[%s276 + $0x1c] sm:$0xf]
        %v415 = vld [vmem:[%s1] sm:$0xf]
        %v416 = vld [vmem:[%s1 + $0x4] sm:$0xf]
        %v417 = vld [vmem:[%s1 + $0x8] sm:$0xf]
        %v418 = vld [vmem:[%s1 + $0xc] sm:$0xf]
        %v419 = vld [vmem:[%s1 + $0x10] sm:$0xf]
        %v420 = vld [vmem:[%s1 + $0x14] sm:$0xf]
        %v421 = vld [vmem:[%s1 + $0x18] sm:$0xf]
        %v422 = vld [vmem:[%s1 + $0x1c] sm:$0xf]
        %v423 = vld [vmem:[%s1 + $0x20] sm:$0xf]
        %v424 = vld [vmem:[%s1 + $0x24] sm:$0xf]
        %v425 = vld [vmem:[%s1 + $0x28] sm:$0xf]
        %v426 = vld [vmem:[%s1 + $0x2c] sm:$0xf]
        %v427 = vld [vmem:[%s1 + $0x30] sm:$0xf]
        %v428 = vld [vmem:[%s1 + $0x34] sm:$0xf]
        %v429 = vld [vmem:[%s1 + $0x38] sm:$0xf]
        %v430 = vld [vmem:[%s1 + $0x3c] sm:$0xf]
        %v432 = vlaneseq
        %v433 = vshrl.u32 %v432, 7
        %v434 = vsub.s32 0, %v433
        %v435 = vrot.slane %v280, %v434
        %v445 = vunpack.c.l.b16 %v407
        %v446 = vunpack.c.l.b16 %v408
        %v447 = vunpack.c.l.b16 %v409
        %v448 = vunpack.c.l.b16 %v410
        %v449 = vunpack.c.l.b16 %v411
        %v450 = vunpack.c.l.b16 %v412
        %v451 = vunpack.c.l.b16 %v413
        %v452 = vunpack.c.l.b16 %v414
        %v453 = vpack.c.b16 %v446, %v445
        %v454 = vpack.c.b16 %v448, %v447
        %v455 = vpack.c.b16 %v450, %v449
        %v456 = vpack.c.b16 %v452, %v451
        %v477 = vunpack.c.l.b16 %v415
        %v478 = vunpack.c.l.b16 %v416
        %v479 = vunpack.c.l.b16 %v417
        %v480 = vunpack.c.l.b16 %v418
        %v481 = vunpack.c.l.b16 %v419
        %v482 = vunpack.c.l.b16 %v420
        %v483 = vunpack.c.l.b16 %v421
        %v484 = vunpack.c.l.b16 %v422
        %v485 = vunpack.c.l.b16 %v423
        %v486 = vunpack.c.l.b16 %v424
        %v487 = vunpack.c.l.b16 %v425
        %v488 = vunpack.c.l.b16 %v426
        %v489 = vunpack.c.l.b16 %v427
        %v490 = vunpack.c.l.b16 %v428
        %v491 = vunpack.c.l.b16 %v429
        %v492 = vunpack.c.l.b16 %v430
        %v493 = vpack.c.b16 %v478, %v477
        %v494 = vpack.c.b16 %v480, %v479
        %v495 = vpack.c.b16 %v482, %v481
        %v496 = vpack.c.b16 %v484, %v483
        %v497 = vpack.c.b16 %v486, %v485
        %v498 = vpack.c.b16 %v488, %v487
        %v499 = vpack.c.b16 %v490, %v489
        %v500 = vpack.c.b16 %v492, %v491
        %509 = vmatprep.subr.bf16.mxu0 0
        %510 = vmatpush1.bf16.msra.mxu0 %v493
        %511 = vmatprep.subr.bf16.mxu0 0
        %512 = vmatpush1.bf16.msra.mxu0 %v494
        %513 = vmatprep.subr.bf16.mxu0 0
        %514 = vmatpush1.bf16.msra.mxu0 %v495
        %515 = vmatprep.subr.bf16.mxu0 0
        %516 = vmatpush1.bf16.msra.mxu0 %v496
        %517 = vmatprep.subr.bf16.mxu0 0
        %518 = vmatpush1.bf16.msra.mxu0 %v497
        %519 = vmatprep.subr.bf16.mxu0 0
        %520 = vmatpush1.bf16.msra.mxu0 %v498
        %521 = vmatprep.subr.bf16.mxu0 0
        %522 = vmatpush1.bf16.msra.mxu0 %v499
        %523 = vmatprep.subr.bf16.mxu0 0
        %524 = vmatpush1.bf16.msra.mxu0 %v500
        %525 = vmatprep.subr.bf16.mxu0 0
        %526 = vmatpush1.bf16.msra.mxu0 0
        %527 = vmatprep.subr.bf16.mxu0 0
        %528 = vmatpush1.bf16.msra.mxu0 0
        %529 = vmatprep.subr.bf16.mxu0 0
        %530 = vmatpush1.bf16.msra.mxu0 0
        %531 = vmatprep.subr.bf16.mxu0 0
        %532 = vmatpush1.bf16.msra.mxu0 0
        %533 = vmatprep.subr.bf16.mxu0 0
        %534 = vmatpush1.bf16.msra.mxu0 0
        %535 = vmatprep.subr.bf16.mxu0 0
        %536 = vmatpush1.bf16.msra.mxu0 0
        %537 = vmatprep.subr.bf16.mxu0 0
        %538 = vmatpush1.bf16.msra.mxu0 0
        %539 = vmatprep.subr.bf16.mxu0 0
        %540 = vmatpush1.bf16.msra.mxu0 0
        %541 = vmatprep.mubr.bf16.mxu0 0
        %542 = vmatmul.mubr.bf16.gmra.mrb[0].mxu0 %v453
        %v543 = vpop.f32.mrb[0].mxu0
        %v544 = vadd.f32 %v435, %v543
        %v545 = vpop.f32.mrb[0].mxu0
        %v546 = vpop.f32.mrb[0].mxu0
        %v547 = vadd.f32 %v435, %v546
        %v548 = vpop.f32.mrb[0].mxu0
        %549 = vmatprep.mubr.bf16.mxu0 0
        %550 = vmatmul.mubr.bf16.gmra.mrb[0].mxu0 %v454
        %v551 = vpop.f32.mrb[0].mxu0
        %v552 = vadd.f32 %v435, %v551
        %v553 = vpop.f32.mrb[0].mxu0
        %v554 = vpop.f32.mrb[0].mxu0
        %v555 = vadd.f32 %v435, %v554
        %v556 = vpop.f32.mrb[0].mxu0
        %557 = vmatprep.mubr.bf16.mxu0 0
        %558 = vmatmul.mubr.bf16.gmra.mrb[0].mxu0 %v455
        %v559 = vpop.f32.mrb[0].mxu0
        %v560 = vadd.f32 %v435, %v559
        %v561 = vpop.f32.mrb[0].mxu0
        %v562 = vpop.f32.mrb[0].mxu0
        %v563 = vadd.f32 %v435, %v562
        %v564 = vpop.f32.mrb[0].mxu0
        %565 = vmatprep.mubr.bf16.mxu0 0
        %566 = vmatmul.mubr.bf16.gmra.mrb[0].mxu0 %v456
        %v567 = vpop.f32.mrb[0].mxu0
        %v568 = vadd.f32 %v435, %v567
        %v569 = vpop.f32.mrb[0].mxu0
        %v570 = vpop.f32.mrb[0].mxu0
        %v571 = vadd.f32 %v435, %v570
        %v572 = vpop.f32.mrb[0].mxu0
        %573 = vdwg.mxu0
        %v574 = vmax.f32 %v544, 0.0
        %v575 = vmax.f32 %v547, 0.0
        %v576 = vmax.f32 %v552, 0.0
        %v577 = vmax.f32 %v555, 0.0
        %v578 = vmax.f32 %v560, 0.0
        %v579 = vmax.f32 %v563, 0.0
        %v580 = vmax.f32 %v568, 0.0
        %v581 = vmax.f32 %v571, 0.0
        %v582 = vpack.c.bf16 %v575, %v574
        %v583 = vpack.c.bf16 %v577, %v576
        %v584 = vpack.c.bf16 %v579, %v578
        %v585 = vpack.c.bf16 %v581, %v580
        %586 = vst.msk [vmem:[#allocation2 + $0x8] sm:$0xff] %vm404, %v582
        %587 = vst.msk [vmem:[#allocation2 + $0x10] sm:$0xff] %vm404, %v583
        %588 = vst.msk [vmem:[#allocation2 + $0x18] sm:$0xff] %vm404, %v584
        %589 = vst.msk [vmem:[#allocation2 + $0x20] sm:$0xff] %vm404, %v585
        %v590 = vld [vmem:[#allocation2] sm:$0xf8]
        %v591 = vld [vmem:[#allocation2 + $0x8] sm:$0xff]
        %v592 = vld [vmem:[#allocation2 + $0x10] sm:$0xff]
        %v593 = vld [vmem:[#allocation2 + $0x18] sm:$0xff]
        %v594 = vld [vmem:[#allocation2 + $0x20] sm:$0xf]
        %v595 = vsel %vm388, 1, 0
        %v596 = vsel %vm389, 1, 0
        %v597 = vsel %vm390, 1, 0
        %v598 = vsel %vm391, 1, 0
        %v599 = vsel %vm392, 1, 0
        %v600 = vsel %vm393, 1, 0
        %v601 = vsel %vm394, 1, 0
        %v602 = vsel %vm395, 1, 0
        %vm603 = vcmp.eq.s32.totalorder %v595, 1
        %vm604 = vcmp.eq.s32.totalorder %v596, 1
        %vm605 = vcmp.eq.s32.totalorder %v597, 1
        %vm606 = vcmp.eq.s32.totalorder %v598, 1
        %vm607 = vcmp.eq.s32.totalorder %v599, 1
        %vm608 = vcmp.eq.s32.totalorder %v600, 1
        %vm609 = vcmp.eq.s32.totalorder %v601, 1
        %vm610 = vcmp.eq.s32.totalorder %v602, 1
        %vm611 = vmpackc.low %vm603, %vm603
        %vm612 = vmpackc.low %vm604, %vm604
        %vm613 = vmpackc.low %vm605, %vm605
        %vm614 = vmpackc.low %vm606, %vm606
        %vm615 = vmpackc.low %vm607, %vm607
        %vm616 = vmpackc.low %vm608, %vm608
        %vm617 = vmpackc.low %vm609, %vm609
        %vm618 = vmpackc.low %vm610, %vm610
        %v619 = vsel %vm611, 65537, 0
        %v620 = vsel %vm612, 65537, 0
        %v621 = vsel %vm613, 65537, 0
        %v622 = vsel %vm614, 65537, 0
        %v623 = vsel %vm615, 65537, 0
        %v624 = vsel %vm616, 65537, 0
        %v625 = vsel %vm617, 65537, 0
        %v626 = vsel %vm618, 65537, 0
        %v627 = vunpack.c.l.b16 %v619
        %v628 = vunpack.c.l.b16 %v620
        %v629 = vunpack.c.l.b16 %v621
        %v630 = vunpack.c.l.b16 %v622
        %v631 = vunpack.c.l.b16 %v623
        %v632 = vunpack.c.l.b16 %v624
        %v633 = vunpack.c.l.b16 %v625
        %v634 = vunpack.c.l.b16 %v626
        %v635 = vpack.c.b16 %v628, %v627
        %v636 = vpack.c.b16 %v630, %v629
        %v637 = vpack.c.b16 %v632, %v631
        %v638 = vpack.c.b16 %v634, %v633
        %vm639 = vsmask.f32 3328
        %v641 = vshrl.u32 %v635, 16
        %v643 = vrot.slane %v641, 4
        %v644 = vshll.u32 %v635, 16
        %v646 = vrot.slane %v644, 5
        %v647 = vor.u32 %v643, %v646
        %v649 = vshrl.u32 %v636, 16
        %v651 = vrot.slane %v649, 4
        %v652 = vshll.u32 %v636, 16
        %v654 = vrot.slane %v652, 5
        %v655 = vor.u32 %v651, %v654
        %v656 = vsel %vm639, %v647, %v655
        %v658 = vshrl.u32 %v637, 16
        %v660 = vrot.slane %v658, 4
        %v661 = vshll.u32 %v637, 16
        %v663 = vrot.slane %v661, 5
        %v664 = vor.u32 %v660, %v663
        %v665 = vsel %vm639, %v655, %v664
        %v667 = vshrl.u32 %v638, 16
        %v669 = vrot.slane %v667, 4
        %v670 = vshll.u32 %v638, 16
        %v672 = vrot.slane %v670, 5
        %v673 = vor.u32 %v669, %v672
        %v674 = vsel %vm639, %v664, %v673
        %vm675 = vcmp.ne.s16.totalorder %v647, 0
        %vm676 = vcmp.ne.s16.totalorder %v656, 0
        %vm677 = vcmp.ne.s16.totalorder %v665, 0
        %vm678 = vcmp.ne.s16.totalorder %v674, 0
        %vm679 = vcmp.ne.s16.totalorder %v673, 0
        %v680 = vsel %vm675, %v590, 0
        %v681 = vsel %vm676, %v591, 0
        %v682 = vsel %vm677, %v592, 0
        %v683 = vsel %vm678, %v593, 0
        %v684 = vsel %vm679, %v594, 0
        %v685 = vld [vmem:[%s2] sm:$0x3]
        %v686 = vld [vmem:[#allocation2] sm:$0xf0]
        %v687 = vld [vmem:[%s2] sm:$0xc]
        %vm693 = vcmask 1043456
        %v694 = vrot.slane %v686, 4
        %v695 = vrot.slane %v591, 4
        %v696 = vsel %vm693, %v694, %v695
        %v697 = vrot.slane %v592, 4
        %v698 = vsel %vm693, %v695, %v697
        %v699 = vrot.slane %v593, 4
        %v700 = vsel %vm693, %v697, %v699
        %v701 = vrot.slane %v594, 4
        %v702 = vsel %vm693, %v699, %v701
        %v704 = vunpack.c.l.b16 %v687
        %v705 = vpack.c.b16 %v704, %v704
        %v706 = vrot.slane %v705, 2
        %v708 = vsel %vm404, %v696, 0
        %v711 = vsel %vm404, %v698, 0
        %v714 = vsel %vm404, %v700, 0
        %v717 = vsel %vm404, %v702, 0
        %vm719 = vcmask 1041408
        %v721 = vsel %vm719, %v706, 0
        %723 = vmatprep.subr.bf16.mxu0 0
        %724 = vmatpush1.bf16.msra.mxu0 %v721
        %725 = vmatprep.subr.bf16.mxu0 0
        %726 = vmatpush1.bf16.msra.mxu0 0
        %727 = vmatprep.subr.bf16.mxu0 0
        %728 = vmatpush1.bf16.msra.mxu0 0
        %729 = vmatprep.subr.bf16.mxu0 0
        %730 = vmatpush1.bf16.msra.mxu0 0
        %731 = vmatprep.subr.bf16.mxu0 0
        %732 = vmatpush1.bf16.msra.mxu0 0
        %733 = vmatprep.subr.bf16.mxu0 0
        %734 = vmatpush1.bf16.msra.mxu0 0
        %735 = vmatprep.subr.bf16.mxu0 0
        %736 = vmatpush1.bf16.msra.mxu0 0
        %737 = vmatprep.subr.bf16.mxu0 0
        %738 = vmatpush1.bf16.msra.mxu0 0
        %739 = vmatprep.subr.bf16.mxu0 0
        %740 = vmatpush1.bf16.msra.mxu0 0
        %741 = vmatprep.subr.bf16.mxu0 0
        %742 = vmatpush1.bf16.msra.mxu0 0
        %743 = vmatprep.subr.bf16.mxu0 0
        %744 = vmatpush1.bf16.msra.mxu0 0
        %745 = vmatprep.subr.bf16.mxu0 0
        %746 = vmatpush1.bf16.msra.mxu0 0
        %747 = vmatprep.subr.bf16.mxu0 0
        %748 = vmatpush1.bf16.msra.mxu0 0
        %749 = vmatprep.subr.bf16.mxu0 0
        %750 = vmatpush1.bf16.msra.mxu0 0
        %751 = vmatprep.subr.bf16.mxu0 0
        %752 = vmatpush1.bf16.msra.mxu0 0
        %753 = vmatprep.subr.bf16.mxu0 0
        %754 = vmatpush1.bf16.msra.mxu0 0
        %755 = vmatprep.mubr.bf16.mxu0 0
        %756 = vmatmul.mubr.bf16.gmra.mrb[0].mxu0 %v708
        %v757 = vpop.f32.mrb[0].mxu0
        %v758 = vadd.f32 0.0, %v757
        %v759 = vpop.f32.mrb[0].mxu0
        %v760 = vpop.f32.mrb[0].mxu0
        %v761 = vadd.f32 0.0, %v760
        %v762 = vpop.f32.mrb[0].mxu0
        %763 = vmatprep.mubr.bf16.mxu0 0
        %764 = vmatmul.mubr.bf16.gmra.mrb[0].mxu0 %v711
        %v765 = vpop.f32.mrb[0].mxu0
        %v766 = vadd.f32 0.0, %v765
        %v767 = vpop.f32.mrb[0].mxu0
        %v768 = vpop.f32.mrb[0].mxu0
        %v769 = vadd.f32 0.0, %v768
        %v770 = vpop.f32.mrb[0].mxu0
        %771 = vmatprep.mubr.bf16.mxu0 0
        %772 = vmatmul.mubr.bf16.gmra.mrb[0].mxu0 %v714
        %v773 = vpop.f32.mrb[0].mxu0
        %v774 = vadd.f32 0.0, %v773
        %v775 = vpop.f32.mrb[0].mxu0
        %v776 = vpop.f32.mrb[0].mxu0
        %v777 = vadd.f32 0.0, %v776
        %v778 = vpop.f32.mrb[0].mxu0
        %779 = vmatprep.mubr.bf16.mxu0 0
        %780 = vmatmul.mubr.bf16.gmra.mrb[0].mxu0 %v717
        %v781 = vpop.f32.mrb[0].mxu0
        %v782 = vadd.f32 0.0, %v781
        %v783 = vpop.f32.mrb[0].mxu0
        %v784 = vpop.f32.mrb[0].mxu0
        %v785 = vadd.f32 0.0, %v784
        %v786 = vpop.f32.mrb[0].mxu0
        %787 = vdwg.mxu0
        %vm788 = vsmask.f32 4352
        %v790 = vshrl.u32 %v680, 16
        %v792 = vrot.slane %v790, 3
        %v793 = vshll.u32 %v680, 16
        %v795 = vrot.slane %v793, 4
        %v796 = vor.u32 %v792, %v795
        %v798 = vshrl.u32 %v681, 16
        %v800 = vrot.slane %v798, 3
        %v801 = vshll.u32 %v681, 16
        %v803 = vrot.slane %v801, 4
        %v804 = vor.u32 %v800, %v803
        %v805 = vsel %vm788, %v796, %v804
        %v807 = vshrl.u32 %v682, 16
        %v809 = vrot.slane %v807, 3
        %v810 = vshll.u32 %v682, 16
        %v812 = vrot.slane %v810, 4
        %v813 = vor.u32 %v809, %v812
        %v814 = vsel %vm788, %v804, %v813
        %v816 = vshrl.u32 %v683, 16
        %v818 = vrot.slane %v816, 3
        %v819 = vshll.u32 %v683, 16
        %v821 = vrot.slane %v819, 4
        %v822 = vor.u32 %v818, %v821
        %v823 = vsel %vm788, %v813, %v822
        %v825 = vshrl.u32 %v684, 16
        %v827 = vrot.slane %v825, 3
        %v828 = vshll.u32 %v684, 16
        %v830 = vrot.slane %v828, 4
        %v831 = vor.u32 %v827, %v830
        %v832 = vsel %vm788, %v822, %v831
        %v834 = vsel %vm404, %v805, 0
        %v837 = vsel %vm404, %v814, 0
        %v840 = vsel %vm404, %v823, 0
        %v843 = vsel %vm404, %v832, 0
        %v846 = vsel %vm719, %v685, 0
        %848 = vmatprep.subr.bf16.mxu0 0
        %849 = vmatpush1.bf16.msra.mxu0 %v846
        %850 = vmatprep.subr.bf16.mxu0 0
        %851 = vmatpush1.bf16.msra.mxu0 0
        %852 = vmatprep.subr.bf16.mxu0 0
        %853 = vmatpush1.bf16.msra.mxu0 0
        %854 = vmatprep.subr.bf16.mxu0 0
        %855 = vmatpush1.bf16.msra.mxu0 0
        %856 = vmatprep.subr.bf16.mxu0 0
        %857 = vmatpush1.bf16.msra.mxu0 0
        %858 = vmatprep.subr.bf16.mxu0 0
        %859 = vmatpush1.bf16.msra.mxu0 0
        %860 = vmatprep.subr.bf16.mxu0 0
        %861 = vmatpush1.bf16.msra.mxu0 0
        %862 = vmatprep.subr.bf16.mxu0 0
        %863 = vmatpush1.bf16.msra.mxu0 0
        %864 = vmatprep.subr.bf16.mxu0 0
        %865 = vmatpush1.bf16.msra.mxu0 0
        %866 = vmatprep.subr.bf16.mxu0 0
        %867 = vmatpush1.bf16.msra.mxu0 0
        %868 = vmatprep.subr.bf16.mxu0 0
        %869 = vmatpush1.bf16.msra.mxu0 0
        %870 = vmatprep.subr.bf16.mxu0 0
        %871 = vmatpush1.bf16.msra.mxu0 0
        %872 = vmatprep.subr.bf16.mxu0 0
        %873 = vmatpush1.bf16.msra.mxu0 0
        %874 = vmatprep.subr.bf16.mxu0 0
        %875 = vmatpush1.bf16.msra.mxu0 0
        %876 = vmatprep.subr.bf16.mxu0 0
        %877 = vmatpush1.bf16.msra.mxu0 0
        %878 = vmatprep.subr.bf16.mxu0 0
        %879 = vmatpush1.bf16.msra.mxu0 0
        %880 = vmatprep.mubr.bf16.mxu0 0
        %881 = vmatmul.mubr.bf16.gmra.mrb[0].mxu0 %v834
        %v882 = vpop.f32.mrb[0].mxu0
        %v883 = vadd.f32 %v758, %v882
        %v884 = vpop.f32.mrb[0].mxu0
        %v885 = vpop.f32.mrb[0].mxu0
        %v886 = vadd.f32 %v761, %v885
        %v887 = vpop.f32.mrb[0].mxu0
        %888 = vmatprep.mubr.bf16.mxu0 0
        %889 = vmatmul.mubr.bf16.gmra.mrb[0].mxu0 %v837
        %v890 = vpop.f32.mrb[0].mxu0
        %v891 = vadd.f32 %v766, %v890
        %v892 = vpop.f32.mrb[0].mxu0
        %v893 = vpop.f32.mrb[0].mxu0
        %v894 = vadd.f32 %v769, %v893
        %v895 = vpop.f32.mrb[0].mxu0
        %896 = vmatprep.mubr.bf16.mxu0 0
        %897 = vmatmul.mubr.bf16.gmra.mrb[0].mxu0 %v840
        %v898 = vpop.f32.mrb[0].mxu0
        %v899 = vadd.f32 %v774, %v898
        %v900 = vpop.f32.mrb[0].mxu0
        %v901 = vpop.f32.mrb[0].mxu0
        %v902 = vadd.f32 %v777, %v901
        %v903 = vpop.f32.mrb[0].mxu0
        %904 = vmatprep.mubr.bf16.mxu0 0
        %905 = vmatmul.mubr.bf16.gmra.mrb[0].mxu0 %v843
        %v906 = vpop.f32.mrb[0].mxu0
        %v907 = vadd.f32 %v782, %v906
        %v908 = vpop.f32.mrb[0].mxu0
        %v909 = vpop.f32.mrb[0].mxu0
        %v910 = vadd.f32 %v785, %v909
        %v911 = vpop.f32.mrb[0].mxu0
        %912 = vdwg.mxu0
        %v913 = vld [vmem:[#allocation2 + $0x20] sm:$0x1f]
        %v914 = vsel %vm396, 1, 0
        %v915 = vsel %vm397, 1, 0
        %v916 = vsel %vm398, 1, 0
        %v917 = vsel %vm399, 1, 0
        %v918 = vsel %vm400, 1, 0
        %v919 = vsel %vm401, 1, 0
        %v920 = vsel %vm402, 1, 0
        %v921 = vsel %vm403, 1, 0
        %vm922 = vcmp.eq.s32.totalorder %v914, 1
        %vm923 = vcmp.eq.s32.totalorder %v915, 1
        %vm924 = vcmp.eq.s32.totalorder %v916, 1
        %vm925 = vcmp.eq.s32.totalorder %v917, 1
        %vm926 = vcmp.eq.s32.totalorder %v918, 1
        %vm927 = vcmp.eq.s32.totalorder %v919, 1
        %vm928 = vcmp.eq.s32.totalorder %v920, 1
        %vm929 = vcmp.eq.s32.totalorder %v921, 1
        %vm930 = vmpackc.low %vm922, %vm922
        %vm931 = vmpackc.low %vm923, %vm923
        %vm932 = vmpackc.low %vm924, %vm924
        %vm933 = vmpackc.low %vm925, %vm925
        %vm934 = vmpackc.low %vm926, %vm926
        %vm935 = vmpackc.low %vm927, %vm927
        %vm936 = vmpackc.low %vm928, %vm928
        %vm937 = vmpackc.low %vm929, %vm929
        %v938 = vsel %vm930, 65537, 0
        %v939 = vsel %vm931, 65537, 0
        %v940 = vsel %vm932, 65537, 0
        %v941 = vsel %vm933, 65537, 0
        %v942 = vsel %vm934, 65537, 0
        %v943 = vsel %vm935, 65537, 0
        %v944 = vsel %vm936, 65537, 0
        %v945 = vsel %vm937, 65537, 0
        %v946 = vunpack.c.l.b16 %v938
        %v947 = vunpack.c.l.b16 %v939
        %v948 = vunpack.c.l.b16 %v940
        %v949 = vunpack.c.l.b16 %v941
        %v950 = vunpack.c.l.b16 %v942
        %v951 = vunpack.c.l.b16 %v943
        %v952 = vunpack.c.l.b16 %v944
        %v953 = vunpack.c.l.b16 %v945
        %v954 = vpack.c.b16 %v947, %v946
        %v955 = vpack.c.b16 %v949, %v948
        %v956 = vpack.c.b16 %v951, %v950
        %v957 = vpack.c.b16 %v953, %v952
        %v959 = vshrl.u32 %v954, 16
        %v961 = vrot.slane %v959, 3
        %v962 = vshll.u32 %v954, 16
        %v964 = vrot.slane %v962, 4
        %v965 = vor.u32 %v961, %v964
        %v967 = vshrl.u32 %v955, 16
        %v969 = vrot.slane %v967, 3
        %v970 = vshll.u32 %v955, 16
        %v972 = vrot.slane %v970, 4
        %v973 = vor.u32 %v969, %v972
        %v974 = vsel %vm788, %v965, %v973
        %v976 = vshrl.u32 %v956, 16
        %v978 = vrot.slane %v976, 3
        %v979 = vshll.u32 %v956, 16
        %v981 = vrot.slane %v979, 4
        %v982 = vor.u32 %v978, %v981
        %v983 = vsel %vm788, %v973, %v982
        %v985 = vshrl.u32 %v957, 16
        %v987 = vrot.slane %v985, 3
        %v988 = vshll.u32 %v957, 16
        %v990 = vrot.slane %v988, 4
        %v991 = vor.u32 %v987, %v990
        %v992 = vsel %vm788, %v982, %v991
        %vm993 = vcmp.ne.s16.totalorder %v965, 0
        %vm994 = vcmp.ne.s16.totalorder %v974, 0
        %vm995 = vcmp.ne.s16.totalorder %v983, 0
        %vm996 = vcmp.ne.s16.totalorder %v992, 0
        %vm997 = vcmp.ne.s16.totalorder %v991, 0
        %v998 = vsel %vm993, %v686, 0
        %v999 = vsel %vm994, %v591, 0
        %v1000 = vsel %vm995, %v592, 0
        %v1001 = vsel %vm996, %v593, 0
        %v1002 = vsel %vm997, %v913, 0
        %v1003 = vld [vmem:[%s2 + $0x4] sm:$0x3]
        %v1005 = vshrl.u32 %v998, 16
        %v1007 = vrot.slane %v1005, 4
        %v1008 = vshll.u32 %v998, 16
        %v1010 = vrot.slane %v1008, 5
        %v1011 = vor.u32 %v1007, %v1010
        %v1013 = vshrl.u32 %v999, 16
        %v1015 = vrot.slane %v1013, 4
        %v1016 = vshll.u32 %v999, 16
        %v1018 = vrot.slane %v1016, 5
        %v1019 = vor.u32 %v1015, %v1018
        %v1020 = vsel %vm639, %v1011, %v1019
        %v1022 = vshrl.u32 %v1000, 16
        %v1024 = vrot.slane %v1022, 4
        %v1025 = vshll.u32 %v1000, 16
        %v1027 = vrot.slane %v1025, 5
        %v1028 = vor.u32 %v1024, %v1027
        %v1029 = vsel %vm639, %v1019, %v1028
        %v1031 = vshrl.u32 %v1001, 16
        %v1033 = vrot.slane %v1031, 4
        %v1034 = vshll.u32 %v1001, 16
        %v1036 = vrot.slane %v1034, 5
        %v1037 = vor.u32 %v1033, %v1036
        %v1038 = vsel %vm639, %v1028, %v1037
        %v1040 = vshrl.u32 %v1002, 16
        %v1042 = vrot.slane %v1040, 4
        %v1043 = vshll.u32 %v1002, 16
        %v1045 = vrot.slane %v1043, 5
        %v1046 = vor.u32 %v1042, %v1045
        %v1047 = vsel %vm639, %v1037, %v1046
        %v1049 = vsel %vm404, %v1020, 0
        %v1052 = vsel %vm404, %v1029, 0
        %v1055 = vsel %vm404, %v1038, 0
        %v1058 = vsel %vm404, %v1047, 0
        %v1061 = vsel %vm719, %v1003, 0
        %1063 = vmatprep.subr.bf16.mxu0 0
        %1064 = vmatpush1.bf16.msra.mxu0 %v1061
        %1065 = vmatprep.subr.bf16.mxu0 0
        %1066 = vmatpush1.bf16.msra.mxu0 0
        %1067 = vmatprep.subr.bf16.mxu0 0
        %1068 = vmatpush1.bf16.msra.mxu0 0
        %1069 = vmatprep.subr.bf16.mxu0 0
        %1070 = vmatpush1.bf16.msra.mxu0 0
        %1071 = vmatprep.subr.bf16.mxu0 0
        %1072 = vmatpush1.bf16.msra.mxu0 0
        %1073 = vmatprep.subr.bf16.mxu0 0
        %1074 = vmatpush1.bf16.msra.mxu0 0
        %1075 = vmatprep.subr.bf16.mxu0 0
        %1076 = vmatpush1.bf16.msra.mxu0 0
        %1077 = vmatprep.subr.bf16.mxu0 0
        %1078 = vmatpush1.bf16.msra.mxu0 0
        %1079 = vmatprep.subr.bf16.mxu0 0
        %1080 = vmatpush1.bf16.msra.mxu0 0
        %1081 = vmatprep.subr.bf16.mxu0 0
        %1082 = vmatpush1.bf16.msra.mxu0 0
        %1083 = vmatprep.subr.bf16.mxu0 0
        %1084 = vmatpush1.bf16.msra.mxu0 0
        %1085 = vmatprep.subr.bf16.mxu0 0
        %1086 = vmatpush1.bf16.msra.mxu0 0
        %1087 = vmatprep.subr.bf16.mxu0 0
        %1088 = vmatpush1.bf16.msra.mxu0 0
        %1089 = vmatprep.subr.bf16.mxu0 0
        %1090 = vmatpush1.bf16.msra.mxu0 0
        %1091 = vmatprep.subr.bf16.mxu0 0
        %1092 = vmatpush1.bf16.msra.mxu0 0
        %1093 = vmatprep.subr.bf16.mxu0 0
        %1094 = vmatpush1.bf16.msra.mxu0 0
        %1095 = vmatprep.mubr.bf16.mxu0 0
        %1096 = vmatmul.mubr.bf16.gmra.mrb[0].mxu0 %v1049
        %v1097 = vpop.f32.mrb[0].mxu0
        %v1098 = vadd.f32 0.0, %v1097
        %v1099 = vpop.f32.mrb[0].mxu0
        %v1100 = vpop.f32.mrb[0].mxu0
        %v1101 = vadd.f32 0.0, %v1100
        %v1102 = vpop.f32.mrb[0].mxu0
        %1103 = vmatprep.mubr.bf16.mxu0 0
        %1104 = vmatmul.mubr.bf16.gmra.mrb[0].mxu0 %v1052
        %v1105 = vpop.f32.mrb[0].mxu0
        %v1106 = vadd.f32 0.0, %v1105
        %v1107 = vpop.f32.mrb[0].mxu0
        %v1108 = vpop.f32.mrb[0].mxu0
        %v1109 = vadd.f32 0.0, %v1108
        %v1110 = vpop.f32.mrb[0].mxu0
        %1111 = vmatprep.mubr.bf16.mxu0 0
        %1112 = vmatmul.mubr.bf16.gmra.mrb[0].mxu0 %v1055
        %v1113 = vpop.f32.mrb[0].mxu0
        %v1114 = vadd.f32 0.0, %v1113
        %v1115 = vpop.f32.mrb[0].mxu0
        %v1116 = vpop.f32.mrb[0].mxu0
        %v1117 = vadd.f32 0.0, %v1116
        %v1118 = vpop.f32.mrb[0].mxu0
        %1119 = vmatprep.mubr.bf16.mxu0 0
        %1120 = vmatmul.mubr.bf16.gmra.mrb[0].mxu0 %v1058
        %v1121 = vpop.f32.mrb[0].mxu0
        %v1122 = vadd.f32 0.0, %v1121
        %v1123 = vpop.f32.mrb[0].mxu0
        %v1124 = vpop.f32.mrb[0].mxu0
        %v1125 = vadd.f32 0.0, %v1124
        %v1126 = vpop.f32.mrb[0].mxu0
        %1127 = vdwg.mxu0
        %v1128 = vadd.f32 %v883, %v1098
        %v1129 = vadd.f32 %v886, %v1101
        %v1130 = vadd.f32 %v891, %v1106
        %v1131 = vadd.f32 %v894, %v1109
        %v1132 = vadd.f32 %v899, %v1114
        %v1133 = vadd.f32 %v902, %v1117
        %v1134 = vadd.f32 %v907, %v1122
        %v1135 = vadd.f32 %v910, %v1125
        %v1136 = vld [vmem:[#allocation2] sm:$0x80]
        %v1137 = vld [vmem:[#allocation2 + $0x20] sm:$0xff]
        %vm1138 = vsmask.f32 7424
        %v1139 = vrot.slane %v644, 1
        %v1140 = vor.u32 %v641, %v1139
        %v1141 = vrot.slane %v652, 1
        %v1142 = vsel %vm1138, %v1140, %v1141
        %v1143 = vor.u32 %v649, %v1141
        %v1144 = vrot.slane %v661, 1
        %v1145 = vsel %vm1138, %v1143, %v1144
        %v1146 = vor.u32 %v658, %v1144
        %v1147 = vrot.slane %v670, 1
        %v1148 = vsel %vm1138, %v1146, %v1147
        %v1149 = vor.u32 %v667, %v1147
        %vm1150 = vcmp.ne.s16.totalorder %v1139, 0
        %vm1151 = vcmp.ne.s16.totalorder %v1142, 0
        %vm1152 = vcmp.ne.s16.totalorder %v1145, 0
        %vm1153 = vcmp.ne.s16.totalorder %v1148, 0
        %vm1154 = vcmp.ne.s16.totalorder %v1149, 0
        %v1155 = vsel %vm1150, %v1136, 0
        %v1156 = vsel %vm1151, %v591, 0
        %v1157 = vsel %vm1152, %v592, 0
        %v1158 = vsel %vm1153, %v593, 0
        %v1159 = vsel %vm1154, %v1137, 0
        %v1160 = vld [vmem:[%s2 + $0x4] sm:$0xc]
        %vm1161 = vsmask.f32 256
        %v1163 = vshrl.u32 %v1155, 16
        %v1165 = vrot.slane %v1163, 7
        %v1167 = vshrl.u32 %v1156, 16
        %v1169 = vrot.slane %v1167, 7
        %v1170 = vshll.u32 %v1156, 16
        %v1172 = vor.u32 %v1169, %v1170
        %v1173 = vsel %vm1161, %v1165, %v1172
        %v1175 = vshrl.u32 %v1157, 16
        %v1177 = vrot.slane %v1175, 7
        %v1178 = vshll.u32 %v1157, 16
        %v1180 = vor.u32 %v1177, %v1178
        %v1181 = vsel %vm1161, %v1169, %v1180
        %v1183 = vshrl.u32 %v1158, 16
        %v1185 = vrot.slane %v1183, 7
        %v1186 = vshll.u32 %v1158, 16
        %v1188 = vor.u32 %v1185, %v1186
        %v1189 = vsel %vm1161, %v1177, %v1188
        %v1191 = vshrl.u32 %v1159, 16
        %v1193 = vrot.slane %v1191, 7
        %v1194 = vshll.u32 %v1159, 16
        %v1196 = vor.u32 %v1193, %v1194
        %v1197 = vsel %vm1161, %v1185, %v1196
        %v1199 = vunpack.c.l.b16 %v1160
        %v1200 = vpack.c.b16 %v1199, %v1199
        %v1201 = vrot.slane %v1200, 2
        %v1203 = vsel %vm404, %v1173, 0
        %v1206 = vsel %vm404, %v1181, 0
        %v1209 = vsel %vm404, %v1189, 0
        %v1212 = vsel %vm404, %v1197, 0
        %v1215 = vsel %vm719, %v1201, 0
        %1217 = vmatprep.subr.bf16.mxu0 0
        %1218 = vmatpush1.bf16.msra.mxu0 %v1215
        %1219 = vmatprep.subr.bf16.mxu0 0
        %1220 = vmatpush1.bf16.msra.mxu0 0
        %1221 = vmatprep.subr.bf16.mxu0 0
        %1222 = vmatpush1.bf16.msra.mxu0 0
        %1223 = vmatprep.subr.bf16.mxu0 0
        %1224 = vmatpush1.bf16.msra.mxu0 0
        %1225 = vmatprep.subr.bf16.mxu0 0
        %1226 = vmatpush1.bf16.msra.mxu0 0
        %1227 = vmatprep.subr.bf16.mxu0 0
        %1228 = vmatpush1.bf16.msra.mxu0 0
        %1229 = vmatprep.subr.bf16.mxu0 0
        %1230 = vmatpush1.bf16.msra.mxu0 0
        %1231 = vmatprep.subr.bf16.mxu0 0
        %1232 = vmatpush1.bf16.msra.mxu0 0
        %1233 = vmatprep.subr.bf16.mxu0 0
        %1234 = vmatpush1.bf16.msra.mxu0 0
        %1235 = vmatprep.subr.bf16.mxu0 0
        %1236 = vmatpush1.bf16.msra.mxu0 0
        %1237 = vmatprep.subr.bf16.mxu0 0
        %1238 = vmatpush1.bf16.msra.mxu0 0
        %1239 = vmatprep.subr.bf16.mxu0 0
        %1240 = vmatpush1.bf16.msra.mxu0 0
        %1241 = vmatprep.subr.bf16.mxu0 0
        %1242 = vmatpush1.bf16.msra.mxu0 0
        %1243 = vmatprep.subr.bf16.mxu0 0
        %1244 = vmatpush1.bf16.msra.mxu0 0
        %1245 = vmatprep.subr.bf16.mxu0 0
        %1246 = vmatpush1.bf16.msra.mxu0 0
        %1247 = vmatprep.subr.bf16.mxu0 0
        %1248 = vmatpush1.bf16.msra.mxu0 0
        %1249 = vmatprep.mubr.bf16.mxu0 0
        %1250 = vmatmul.mubr.bf16.gmra.mrb[0].mxu0 %v1203
        %v1251 = vpop.f32.mrb[0].mxu0
        %v1252 = vadd.f32 0.0, %v1251
        %v1253 = vpop.f32.mrb[0].mxu0
        %v1254 = vpop.f32.mrb[0].mxu0
        %v1255 = vadd.f32 0.0, %v1254
        %v1256 = vpop.f32.mrb[0].mxu0
        %1257 = vmatprep.mubr.bf16.mxu0 0
        %1258 = vmatmul.mubr.bf16.gmra.mrb[0].mxu0 %v1206
        %v1259 = vpop.f32.mrb[0].mxu0
        %v1260 = vadd.f32 0.0, %v1259
        %v1261 = vpop.f32.mrb[0].mxu0
        %v1262 = vpop.f32.mrb[0].mxu0
        %v1263 = vadd.f32 0.0, %v1262
        %v1264 = vpop.f32.mrb[0].mxu0
        %1265 = vmatprep.mubr.bf16.mxu0 0
        %1266 = vmatmul.mubr.bf16.gmra.mrb[0].mxu0 %v1209
        %v1267 = vpop.f32.mrb[0].mxu0
        %v1268 = vadd.f32 0.0, %v1267
        %v1269 = vpop.f32.mrb[0].mxu0
        %v1270 = vpop.f32.mrb[0].mxu0
        %v1271 = vadd.f32 0.0, %v1270
        %v1272 = vpop.f32.mrb[0].mxu0
        %1273 = vmatprep.mubr.bf16.mxu0 0
        %1274 = vmatmul.mubr.bf16.gmra.mrb[0].mxu0 %v1212
        %v1275 = vpop.f32.mrb[0].mxu0
        %v1276 = vadd.f32 0.0, %v1275
        %v1277 = vpop.f32.mrb[0].mxu0
        %v1278 = vpop.f32.mrb[0].mxu0
        %v1279 = vadd.f32 0.0, %v1278
        %v1280 = vpop.f32.mrb[0].mxu0
        %1281 = vdwg.mxu0
        %v1282 = vadd.f32 %v1128, %v1252
        %v1283 = vadd.f32 %v1129, %v1255
        %v1284 = vadd.f32 %v1130, %v1260
        %v1285 = vadd.f32 %v1131, %v1263
        %v1286 = vadd.f32 %v1132, %v1268
        %v1287 = vadd.f32 %v1133, %v1271
        %v1288 = vadd.f32 %v1134, %v1276
        %v1289 = vadd.f32 %v1135, %v1279
        %v1290 = vld [vmem:[%s2 + $0x8] sm:$0x3]
        %v1292 = vsel %vm404, %v591, 0
        %v1295 = vsel %vm404, %v592, 0
        %v1298 = vsel %vm404, %v593, 0
        %v1301 = vsel %vm404, %v1137, 0
        %v1304 = vsel %vm719, %v1290, 0
        %1306 = vmatprep.subr.bf16.mxu0 0
        %1307 = vmatpush1.bf16.msra.mxu0 %v1304
        %1308 = vmatprep.subr.bf16.mxu0 0
        %1309 = vmatpush1.bf16.msra.mxu0 0
        %1310 = vmatprep.subr.bf16.mxu0 0
        %1311 = vmatpush1.bf16.msra.mxu0 0
        %1312 = vmatprep.subr.bf16.mxu0 0
        %1313 = vmatpush1.bf16.msra.mxu0 0
        %1314 = vmatprep.subr.bf16.mxu0 0
        %1315 = vmatpush1.bf16.msra.mxu0 0
        %1316 = vmatprep.subr.bf16.mxu0 0
        %1317 = vmatpush1.bf16.msra.mxu0 0
        %1318 = vmatprep.subr.bf16.mxu0 0
        %1319 = vmatpush1.bf16.msra.mxu0 0
        %1320 = vmatprep.subr.bf16.mxu0 0
        %1321 = vmatpush1.bf16.msra.mxu0 0
        %1322 = vmatprep.subr.bf16.mxu0 0
        %1323 = vmatpush1.bf16.msra.mxu0 0
        %1324 = vmatprep.subr.bf16.mxu0 0
        %1325 = vmatpush1.bf16.msra.mxu0 0
        %1326 = vmatprep.subr.bf16.mxu0 0
        %1327 = vmatpush1.bf16.msra.mxu0 0
        %1328 = vmatprep.subr.bf16.mxu0 0
        %1329 = vmatpush1.bf16.msra.mxu0 0
        %1330 = vmatprep.subr.bf16.mxu0 0
        %1331 = vmatpush1.bf16.msra.mxu0 0
        %1332 = vmatprep.subr.bf16.mxu0 0
        %1333 = vmatpush1.bf16.msra.mxu0 0
        %1334 = vmatprep.subr.bf16.mxu0 0
        %1335 = vmatpush1.bf16.msra.mxu0 0
        %1336 = vmatprep.subr.bf16.mxu0 0
        %1337 = vmatpush1.bf16.msra.mxu0 0
        %1338 = vmatprep.mubr.bf16.mxu0 0
        %1339 = vmatmul.mubr.bf16.gmra.mrb[0].mxu0 %v1292
        %v1340 = vpop.f32.mrb[0].mxu0
        %v1341 = vadd.f32 0.0, %v1340
        %v1342 = vpop.f32.mrb[0].mxu0
        %v1343 = vpop.f32.mrb[0].mxu0
        %v1344 = vadd.f32 0.0, %v1343
        %v1345 = vpop.f32.mrb[0].mxu0
        %1346 = vmatprep.mubr.bf16.mxu0 0
        %1347 = vmatmul.mubr.bf16.gmra.mrb[0].mxu0 %v1295
        %v1348 = vpop.f32.mrb[0].mxu0
        %v1349 = vadd.f32 0.0, %v1348
        %v1350 = vpop.f32.mrb[0].mxu0
        %v1351 = vpop.f32.mrb[0].mxu0
        %v1352 = vadd.f32 0.0, %v1351
        %v1353 = vpop.f32.mrb[0].mxu0
        %1354 = vmatprep.mubr.bf16.mxu0 0
        %1355 = vmatmul.mubr.bf16.gmra.mrb[0].mxu0 %v1298
        %v1356 = vpop.f32.mrb[0].mxu0
        %v1357 = vadd.f32 0.0, %v1356
        %v1358 = vpop.f32.mrb[0].mxu0
        %v1359 = vpop.f32.mrb[0].mxu0
        %v1360 = vadd.f32 0.0, %v1359
        %v1361 = vpop.f32.mrb[0].mxu0
        %1362 = vmatprep.mubr.bf16.mxu0 0
        %1363 = vmatmul.mubr.bf16.gmra.mrb[0].mxu0 %v1301
        %v1364 = vpop.f32.mrb[0].mxu0
        %v1365 = vadd.f32 0.0, %v1364
        %v1366 = vpop.f32.mrb[0].mxu0
        %v1367 = vpop.f32.mrb[0].mxu0
        %v1368 = vadd.f32 0.0, %v1367
        %v1369 = vpop.f32.mrb[0].mxu0
        %1370 = vdwg.mxu0
        %v1371 = vadd.f32 %v1282, %v1341
        %v1372 = vadd.f32 %v1283, %v1344
        %v1373 = vadd.f32 %v1284, %v1349
        %v1374 = vadd.f32 %v1285, %v1352
        %v1375 = vadd.f32 %v1286, %v1357
        %v1376 = vadd.f32 %v1287, %v1360
        %v1377 = vadd.f32 %v1288, %v1365
        %v1378 = vadd.f32 %v1289, %v1368
        %v1379 = vld [vmem:[#allocation2 + $0x8] sm:$0xff]
        %v1380 = vld [vmem:[#allocation2 + $0x10] sm:$0xff]
        %v1381 = vld [vmem:[#allocation2 + $0x18] sm:$0xff]
        %v1382 = vld [vmem:[#allocation2 + $0x20] sm:$0xff]
        %v1383 = vld [vmem:[#allocation2 + $0x28] sm:$0x1]
        %v1384 = vrot.slane %v959, 7
        %v1385 = vor.u32 %v1384, %v962
        %v1386 = vrot.slane %v967, 7
        %v1387 = vor.u32 %v1386, %v970
        %v1388 = vsel %vm1161, %v1384, %v1387
        %v1389 = vrot.slane %v976, 7
        %v1390 = vor.u32 %v1389, %v979
        %v1391 = vsel %vm1161, %v1386, %v1390
        %v1392 = vrot.slane %v985, 7
        %v1393 = vor.u32 %v1392, %v988
        %v1394 = vsel %vm1161, %v1389, %v1393
        %vm1395 = vcmp.ne.s16.totalorder %v1385, 0
        %vm1396 = vcmp.ne.s16.totalorder %v1388, 0
        %vm1397 = vcmp.ne.s16.totalorder %v1391, 0
        %vm1398 = vcmp.ne.s16.totalorder %v1394, 0
        %vm1399 = vcmp.ne.s16.totalorder %v1392, 0
        %v1400 = vsel %vm1395, %v1379, 0
        %v1401 = vsel %vm1396, %v1380, 0
        %v1402 = vsel %vm1397, %v1381, 0
        %v1403 = vsel %vm1398, %v1382, 0
        %v1404 = vsel %vm1399, %v1383, 0
        %v1405 = vld [vmem:[%s2 + $0x8] sm:$0xc]
        %v1407 = vshrl.u32 %v1400, 16
        %v1409 = vshll.u32 %v1400, 16
        %v1411 = vrot.slane %v1409, 1
        %v1412 = vor.u32 %v1407, %v1411
        %v1414 = vshll.u32 %v1401, 16
        %v1416 = vrot.slane %v1414, 1
        %v1417 = vsel %vm1138, %v1412, %v1416
        %v1418 = vshrl.u32 %v1401, 16
        %v1420 = vor.u32 %v1418, %v1416
        %v1422 = vshll.u32 %v1402, 16
        %v1424 = vrot.slane %v1422, 1
        %v1425 = vsel %vm1138, %v1420, %v1424
        %v1426 = vshrl.u32 %v1402, 16
        %v1428 = vor.u32 %v1426, %v1424
        %v1430 = vshll.u32 %v1403, 16
        %v1432 = vrot.slane %v1430, 1
        %v1433 = vsel %vm1138, %v1428, %v1432
        %v1434 = vshrl.u32 %v1403, 16
        %v1436 = vor.u32 %v1434, %v1432
        %v1438 = vshll.u32 %v1404, 16
        %v1440 = vrot.slane %v1438, 1
        %v1441 = vsel %vm1138, %v1436, %v1440
        %v1443 = vunpack.c.l.b16 %v1405
        %v1444 = vpack.c.b16 %v1443, %v1443
        %v1445 = vrot.slane %v1444, 2
        %v1447 = vsel %vm404, %v1417, 0
        %v1450 = vsel %vm404, %v1425, 0
        %v1453 = vsel %vm404, %v1433, 0
        %v1456 = vsel %vm404, %v1441, 0
        %v1459 = vsel %vm719, %v1445, 0
        %1461 = vmatprep.subr.bf16.mxu0 0
        %1462 = vmatpush1.bf16.msra.mxu0 %v1459
        %1463 = vmatprep.subr.bf16.mxu0 0
        %1464 = vmatpush1.bf16.msra.mxu0 0
        %1465 = vmatprep.subr.bf16.mxu0 0
        %1466 = vmatpush1.bf16.msra.mxu0 0
        %1467 = vmatprep.subr.bf16.mxu0 0
        %1468 = vmatpush1.bf16.msra.mxu0 0
        %1469 = vmatprep.subr.bf16.mxu0 0
        %1470 = vmatpush1.bf16.msra.mxu0 0
        %1471 = vmatprep.subr.bf16.mxu0 0
        %1472 = vmatpush1.bf16.msra.mxu0 0
        %1473 = vmatprep.subr.bf16.mxu0 0
        %1474 = vmatpush1.bf16.msra.mxu0 0
        %1475 = vmatprep.subr.bf16.mxu0 0
        %1476 = vmatpush1.bf16.msra.mxu0 0
        %1477 = vmatprep.subr.bf16.mxu0 0
        %1478 = vmatpush1.bf16.msra.mxu0 0
        %1479 = vmatprep.subr.bf16.mxu0 0
        %1480 = vmatpush1.bf16.msra.mxu0 0
        %1481 = vmatprep.subr.bf16.mxu0 0
        %1482 = vmatpush1.bf16.msra.mxu0 0
        %1483 = vmatprep.subr.bf16.mxu0 0
        %1484 = vmatpush1.bf16.msra.mxu0 0
        %1485 = vmatprep.subr.bf16.mxu0 0
        %1486 = vmatpush1.bf16.msra.mxu0 0
        %1487 = vmatprep.subr.bf16.mxu0 0
        %1488 = vmatpush1.bf16.msra.mxu0 0
        %1489 = vmatprep.subr.bf16.mxu0 0
        %1490 = vmatpush1.bf16.msra.mxu0 0
        %1491 = vmatprep.subr.bf16.mxu0 0
        %1492 = vmatpush1.bf16.msra.mxu0 0
        %1493 = vmatprep.mubr.bf16.mxu0 0
        %1494 = vmatmul.mubr.bf16.gmra.mrb[0].mxu0 %v1447
        %v1495 = vpop.f32.mrb[0].mxu0
        %v1496 = vadd.f32 0.0, %v1495
        %v1497 = vpop.f32.mrb[0].mxu0
        %v1498 = vpop.f32.mrb[0].mxu0
        %v1499 = vadd.f32 0.0, %v1498
        %v1500 = vpop.f32.mrb[0].mxu0
        %1501 = vmatprep.mubr.bf16.mxu0 0
        %1502 = vmatmul.mubr.bf16.gmra.mrb[0].mxu0 %v1450
        %v1503 = vpop.f32.mrb[0].mxu0
        %v1504 = vadd.f32 0.0, %v1503
        %v1505 = vpop.f32.mrb[0].mxu0
        %v1506 = vpop.f32.mrb[0].mxu0
        %v1507 = vadd.f32 0.0, %v1506
        %v1508 = vpop.f32.mrb[0].mxu0
        %1509 = vmatprep.mubr.bf16.mxu0 0
        %1510 = vmatmul.mubr.bf16.gmra.mrb[0].mxu0 %v1453
        %v1511 = vpop.f32.mrb[0].mxu0
        %v1512 = vadd.f32 0.0, %v1511
        %v1513 = vpop.f32.mrb[0].mxu0
        %v1514 = vpop.f32.mrb[0].mxu0
        %v1515 = vadd.f32 0.0, %v1514
        %v1516 = vpop.f32.mrb[0].mxu0
        %1517 = vmatprep.mubr.bf16.mxu0 0
        %1518 = vmatmul.mubr.bf16.gmra.mrb[0].mxu0 %v1456
        %v1519 = vpop.f32.mrb[0].mxu0
        %v1520 = vadd.f32 0.0, %v1519
        %v1521 = vpop.f32.mrb[0].mxu0
        %v1522 = vpop.f32.mrb[0].mxu0
        %v1523 = vadd.f32 0.0, %v1522
        %v1524 = vpop.f32.mrb[0].mxu0
        %1525 = vdwg.mxu0
        %v1526 = vadd.f32 %v1371, %v1496
        %v1527 = vadd.f32 %v1372, %v1499
        %v1528 = vadd.f32 %v1373, %v1504
        %v1529 = vadd.f32 %v1374, %v1507
        %v1530 = vadd.f32 %v1375, %v1512
        %v1531 = vadd.f32 %v1376, %v1515
        %v1532 = vadd.f32 %v1377, %v1520
        %v1533 = vadd.f32 %v1378, %v1523
        %v1534 = vld [vmem:[#allocation2 + $0x8] sm:$0xf8]
        %v1535 = vld [vmem:[#allocation2 + $0x28] sm:$0xf]
        %v1536 = vsel %vm675, %v1534, 0
        %v1537 = vsel %vm676, %v1380, 0
        %v1538 = vsel %vm677, %v1381, 0
        %v1539 = vsel %vm678, %v1382, 0
        %v1540 = vsel %vm679, %v1535, 0
        %v1541 = vld [vmem:[%s2 + $0xc] sm:$0x3]
        %v1543 = vshrl.u32 %v1536, 16
        %v1545 = vrot.slane %v1543, 3
        %v1546 = vshll.u32 %v1536, 16
        %v1548 = vrot.slane %v1546, 4
        %v1549 = vor.u32 %v1545, %v1548
        %v1551 = vshrl.u32 %v1537, 16
        %v1553 = vrot.slane %v1551, 3
        %v1554 = vshll.u32 %v1537, 16
        %v1556 = vrot.slane %v1554, 4
        %v1557 = vor.u32 %v1553, %v1556
        %v1558 = vsel %vm788, %v1549, %v1557
        %v1560 = vshrl.u32 %v1538, 16
        %v1562 = vrot.slane %v1560, 3
        %v1563 = vshll.u32 %v1538, 16
        %v1565 = vrot.slane %v1563, 4
        %v1566 = vor.u32 %v1562, %v1565
        %v1567 = vsel %vm788, %v1557, %v1566
        %v1569 = vshrl.u32 %v1539, 16
        %v1571 = vrot.slane %v1569, 3
        %v1572 = vshll.u32 %v1539, 16
        %v1574 = vrot.slane %v1572, 4
        %v1575 = vor.u32 %v1571, %v1574
        %v1576 = vsel %vm788, %v1566, %v1575
        %v1578 = vshrl.u32 %v1540, 16
        %v1580 = vrot.slane %v1578, 3
        %v1581 = vshll.u32 %v1540, 16
        %v1583 = vrot.slane %v1581, 4
        %v1584 = vor.u32 %v1580, %v1583
        %v1585 = vsel %vm788, %v1575, %v1584
        %v1587 = vsel %vm404, %v1558, 0
        %v1590 = vsel %vm404, %v1567, 0
        %v1593 = vsel %vm404, %v1576, 0
        %v1596 = vsel %vm404, %v1585, 0
        %v1599 = vsel %vm719, %v1541, 0
        %1601 = vmatprep.subr.bf16.mxu0 0
        %1602 = vmatpush1.bf16.msra.mxu0 %v1599
        %1603 = vmatprep.subr.bf16.mxu0 0
        %1604 = vmatpush1.bf16.msra.mxu0 0
        %1605 = vmatprep.subr.bf16.mxu0 0
        %1606 = vmatpush1.bf16.msra.mxu0 0
        %1607 = vmatprep.subr.bf16.mxu0 0
        %1608 = vmatpush1.bf16.msra.mxu0 0
        %1609 = vmatprep.subr.bf16.mxu0 0
        %1610 = vmatpush1.bf16.msra.mxu0 0
        %1611 = vmatprep.subr.bf16.mxu0 0
        %1612 = vmatpush1.bf16.msra.mxu0 0
        %1613 = vmatprep.subr.bf16.mxu0 0
        %1614 = vmatpush1.bf16.msra.mxu0 0
        %1615 = vmatprep.subr.bf16.mxu0 0
        %1616 = vmatpush1.bf16.msra.mxu0 0
        %1617 = vmatprep.subr.bf16.mxu0 0
        %1618 = vmatpush1.bf16.msra.mxu0 0
        %1619 = vmatprep.subr.bf16.mxu0 0
        %1620 = vmatpush1.bf16.msra.mxu0 0
        %1621 = vmatprep.subr.bf16.mxu0 0
        %1622 = vmatpush1.bf16.msra.mxu0 0
        %1623 = vmatprep.subr.bf16.mxu0 0
        %1624 = vmatpush1.bf16.msra.mxu0 0
        %1625 = vmatprep.subr.bf16.mxu0 0
        %1626 = vmatpush1.bf16.msra.mxu0 0
        %1627 = vmatprep.subr.bf16.mxu0 0
        %1628 = vmatpush1.bf16.msra.mxu0 0
        %1629 = vmatprep.subr.bf16.mxu0 0
        %1630 = vmatpush1.bf16.msra.mxu0 0
        %1631 = vmatprep.subr.bf16.mxu0 0
        %1632 = vmatpush1.bf16.msra.mxu0 0
        %1633 = vmatprep.mubr.bf16.mxu0 0
        %1634 = vmatmul.mubr.bf16.gmra.mrb[0].mxu0 %v1587
        %v1635 = vpop.f32.mrb[0].mxu0
        %v1636 = vadd.f32 0.0, %v1635
        %v1637 = vpop.f32.mrb[0].mxu0
        %v1638 = vpop.f32.mrb[0].mxu0
        %v1639 = vadd.f32 0.0, %v1638
        %v1640 = vpop.f32.mrb[0].mxu0
        %1641 = vmatprep.mubr.bf16.mxu0 0
        %1642 = vmatmul.mubr.bf16.gmra.mrb[0].mxu0 %v1590
        %v1643 = vpop.f32.mrb[0].mxu0
        %v1644 = vadd.f32 0.0, %v1643
        %v1645 = vpop.f32.mrb[0].mxu0
        %v1646 = vpop.f32.mrb[0].mxu0
        %v1647 = vadd.f32 0.0, %v1646
        %v1648 = vpop.f32.mrb[0].mxu0
        %1649 = vmatprep.mubr.bf16.mxu0 0
        %1650 = vmatmul.mubr.bf16.gmra.mrb[0].mxu0 %v1593
        %v1651 = vpop.f32.mrb[0].mxu0
        %v1652 = vadd.f32 0.0, %v1651
        %v1653 = vpop.f32.mrb[0].mxu0
        %v1654 = vpop.f32.mrb[0].mxu0
        %v1655 = vadd.f32 0.0, %v1654
        %v1656 = vpop.f32.mrb[0].mxu0
        %1657 = vmatprep.mubr.bf16.mxu0 0
        %1658 = vmatmul.mubr.bf16.gmra.mrb[0].mxu0 %v1596
        %v1659 = vpop.f32.mrb[0].mxu0
        %v1660 = vadd.f32 0.0, %v1659
        %v1661 = vpop.f32.mrb[0].mxu0
        %v1662 = vpop.f32.mrb[0].mxu0
        %v1663 = vadd.f32 0.0, %v1662
        %v1664 = vpop.f32.mrb[0].mxu0
        %1665 = vdwg.mxu0
        %v1666 = vadd.f32 %v1526, %v1636
        %v1667 = vadd.f32 %v1527, %v1639
        %v1668 = vadd.f32 %v1528, %v1644
        %v1669 = vadd.f32 %v1529, %v1647
        %v1670 = vadd.f32 %v1530, %v1652
        %v1671 = vadd.f32 %v1531, %v1655
        %v1672 = vadd.f32 %v1532, %v1660
        %v1673 = vadd.f32 %v1533, %v1663
        %v1674 = vld [vmem:[#allocation2 + $0x8] sm:$0xf0]
        %v1675 = vld [vmem:[%s2 + $0xc] sm:$0xc]
        %v1681 = vrot.slane %v1674, 4
        %v1682 = vrot.slane %v1380, 4
        %v1683 = vsel %vm693, %v1681, %v1682
        %v1684 = vrot.slane %v1381, 4
        %v1685 = vsel %vm693, %v1682, %v1684
        %v1686 = vrot.slane %v1382, 4
        %v1687 = vsel %vm693, %v1684, %v1686
        %v1688 = vrot.slane %v1535, 4
        %v1689 = vsel %vm693, %v1686, %v1688
        %v1691 = vunpack.c.l.b16 %v1675
        %v1692 = vpack.c.b16 %v1691, %v1691
        %v1693 = vrot.slane %v1692, 2
        %v1695 = vsel %vm404, %v1683, 0
        %v1698 = vsel %vm404, %v1685, 0
        %v1701 = vsel %vm404, %v1687, 0
        %v1704 = vsel %vm404, %v1689, 0
        %v1707 = vsel %vm719, %v1693, 0
        %1709 = vmatprep.subr.bf16.mxu0 0
        %1710 = vmatpush1.bf16.msra.mxu0 %v1707
        %1711 = vmatprep.subr.bf16.mxu0 0
        %1712 = vmatpush1.bf16.msra.mxu0 0
        %1713 = vmatprep.subr.bf16.mxu0 0
        %1714 = vmatpush1.bf16.msra.mxu0 0
        %1715 = vmatprep.subr.bf16.mxu0 0
        %1716 = vmatpush1.bf16.msra.mxu0 0
        %1717 = vmatprep.subr.bf16.mxu0 0
        %1718 = vmatpush1.bf16.msra.mxu0 0
        %1719 = vmatprep.subr.bf16.mxu0 0
        %1720 = vmatpush1.bf16.msra.mxu0 0
        %1721 = vmatprep.subr.bf16.mxu0 0
        %1722 = vmatpush1.bf16.msra.mxu0 0
        %1723 = vmatprep.subr.bf16.mxu0 0
        %1724 = vmatpush1.bf16.msra.mxu0 0
        %1725 = vmatprep.subr.bf16.mxu0 0
        %1726 = vmatpush1.bf16.msra.mxu0 0
        %1727 = vmatprep.subr.bf16.mxu0 0
        %1728 = vmatpush1.bf16.msra.mxu0 0
        %1729 = vmatprep.subr.bf16.mxu0 0
        %1730 = vmatpush1.bf16.msra.mxu0 0
        %1731 = vmatprep.subr.bf16.mxu0 0
        %1732 = vmatpush1.bf16.msra.mxu0 0
        %1733 = vmatprep.subr.bf16.mxu0 0
        %1734 = vmatpush1.bf16.msra.mxu0 0
        %1735 = vmatprep.subr.bf16.mxu0 0
        %1736 = vmatpush1.bf16.msra.mxu0 0
        %1737 = vmatprep.subr.bf16.mxu0 0
        %1738 = vmatpush1.bf16.msra.mxu0 0
        %1739 = vmatprep.subr.bf16.mxu0 0
        %1740 = vmatpush1.bf16.msra.mxu0 0
        %1741 = vmatprep.mubr.bf16.mxu0 0
        %1742 = vmatmul.mubr.bf16.gmra.mrb[0].mxu0 %v1695
        %v1743 = vpop.f32.mrb[0].mxu0
        %v1744 = vadd.f32 0.0, %v1743
        %v1745 = vpop.f32.mrb[0].mxu0
        %v1746 = vpop.f32.mrb[0].mxu0
        %v1747 = vadd.f32 0.0, %v1746
        %v1748 = vpop.f32.mrb[0].mxu0
        %1749 = vmatprep.mubr.bf16.mxu0 0
        %1750 = vmatmul.mubr.bf16.gmra.mrb[0].mxu0 %v1698
        %v1751 = vpop.f32.mrb[0].mxu0
        %v1752 = vadd.f32 0.0, %v1751
        %v1753 = vpop.f32.mrb[0].mxu0
        %v1754 = vpop.f32.mrb[0].mxu0
        %v1755 = vadd.f32 0.0, %v1754
        %v1756 = vpop.f32.mrb[0].mxu0
        %1757 = vmatprep.mubr.bf16.mxu0 0
        %1758 = vmatmul.mubr.bf16.gmra.mrb[0].mxu0 %v1701
        %v1759 = vpop.f32.mrb[0].mxu0
        %v1760 = vadd.f32 0.0, %v1759
        %v1761 = vpop.f32.mrb[0].mxu0
        %v1762 = vpop.f32.mrb[0].mxu0
        %v1763 = vadd.f32 0.0, %v1762
        %v1764 = vpop.f32.mrb[0].mxu0
        %1765 = vmatprep.mubr.bf16.mxu0 0
        %1766 = vmatmul.mubr.bf16.gmra.mrb[0].mxu0 %v1704
        %v1767 = vpop.f32.mrb[0].mxu0
        %v1768 = vadd.f32 0.0, %v1767
        %v1769 = vpop.f32.mrb[0].mxu0
        %v1770 = vpop.f32.mrb[0].mxu0
        %v1771 = vadd.f32 0.0, %v1770
        %v1772 = vpop.f32.mrb[0].mxu0
        %1773 = vdwg.mxu0
        %v1774 = vadd.f32 %v1666, %v1744
        %v1775 = vadd.f32 %v1667, %v1747
        %v1776 = vadd.f32 %v1668, %v1752
        %v1777 = vadd.f32 %v1669, %v1755
        %v1778 = vadd.f32 %v1670, %v1760
        %v1779 = vadd.f32 %v1671, %v1763
        %v1780 = vadd.f32 %v1672, %v1768
        %v1781 = vadd.f32 %v1673, %v1771
        %v1782 = vld [vmem:[#allocation2 + $0x28] sm:$0x1f]
        %v1783 = vsel %vm993, %v1674, 0
        %v1784 = vsel %vm994, %v1380, 0
        %v1785 = vsel %vm995, %v1381, 0
        %v1786 = vsel %vm996, %v1382, 0
        %v1787 = vsel %vm997, %v1782, 0
        %v1788 = vld [vmem:[%s2 + $0x10] sm:$0x3]
        %v1790 = vshrl.u32 %v1783, 16
        %v1792 = vrot.slane %v1790, 4
        %v1793 = vshll.u32 %v1783, 16
        %v1795 = vrot.slane %v1793, 5
        %v1796 = vor.u32 %v1792, %v1795
        %v1798 = vshrl.u32 %v1784, 16
        %v1800 = vrot.slane %v1798, 4
        %v1801 = vshll.u32 %v1784, 16
        %v1803 = vrot.slane %v1801, 5
        %v1804 = vor.u32 %v1800, %v1803
        %v1805 = vsel %vm639, %v1796, %v1804
        %v1807 = vshrl.u32 %v1785, 16
        %v1809 = vrot.slane %v1807, 4
        %v1810 = vshll.u32 %v1785, 16
        %v1812 = vrot.slane %v1810, 5
        %v1813 = vor.u32 %v1809, %v1812
        %v1814 = vsel %vm639, %v1804, %v1813
        %v1816 = vshrl.u32 %v1786, 16
        %v1818 = vrot.slane %v1816, 4
        %v1819 = vshll.u32 %v1786, 16
        %v1821 = vrot.slane %v1819, 5
        %v1822 = vor.u32 %v1818, %v1821
        %v1823 = vsel %vm639, %v1813, %v1822
        %v1825 = vshrl.u32 %v1787, 16
        %v1827 = vrot.slane %v1825, 4
        %v1828 = vshll.u32 %v1787, 16
        %v1830 = vrot.slane %v1828, 5
        %v1831 = vor.u32 %v1827, %v1830
        %v1832 = vsel %vm639, %v1822, %v1831
        %v1834 = vsel %vm404, %v1805, 0
        %v1837 = vsel %vm404, %v1814, 0
        %v1840 = vsel %vm404, %v1823, 0
        %v1843 = vsel %vm404, %v1832, 0
        %v1846 = vsel %vm719, %v1788, 0
        %1848 = vmatprep.subr.bf16.mxu0 0
        %1849 = vmatpush1.bf16.msra.mxu0 %v1846
        %1850 = vmatprep.subr.bf16.mxu0 0
        %1851 = vmatpush1.bf16.msra.mxu0 0
        %1852 = vmatprep.subr.bf16.mxu0 0
        %1853 = vmatpush1.bf16.msra.mxu0 0
        %1854 = vmatprep.subr.bf16.mxu0 0
        %1855 = vmatpush1.bf16.msra.mxu0 0
        %1856 = vmatprep.subr.bf16.mxu0 0
        %1857 = vmatpush1.bf16.msra.mxu0 0
        %1858 = vmatprep.subr.bf16.mxu0 0
        %1859 = vmatpush1.bf16.msra.mxu0 0
        %1860 = vmatprep.subr.bf16.mxu0 0
        %1861 = vmatpush1.bf16.msra.mxu0 0
        %1862 = vmatprep.subr.bf16.mxu0 0
        %1863 = vmatpush1.bf16.msra.mxu0 0
        %1864 = vmatprep.subr.bf16.mxu0 0
        %1865 = vmatpush1.bf16.msra.mxu0 0
        %1866 = vmatprep.subr.bf16.mxu0 0
        %1867 = vmatpush1.bf16.msra.mxu0 0
        %1868 = vmatprep.subr.bf16.mxu0 0
        %1869 = vmatpush1.bf16.msra.mxu0 0
        %1870 = vmatprep.subr.bf16.mxu0 0
        %1871 = vmatpush1.bf16.msra.mxu0 0
        %1872 = vmatprep.subr.bf16.mxu0 0
        %1873 = vmatpush1.bf16.msra.mxu0 0
        %1874 = vmatprep.subr.bf16.mxu0 0
        %1875 = vmatpush1.bf16.msra.mxu0 0
        %1876 = vmatprep.subr.bf16.mxu0 0
        %1877 = vmatpush1.bf16.msra.mxu0 0
        %1878 = vmatprep.subr.bf16.mxu0 0
        %1879 = vmatpush1.bf16.msra.mxu0 0
        %1880 = vmatprep.mubr.bf16.mxu0 0
        %1881 = vmatmul.mubr.bf16.gmra.mrb[0].mxu0 %v1834
        %v1882 = vpop.f32.mrb[0].mxu0
        %v1883 = vadd.f32 0.0, %v1882
        %v1884 = vpop.f32.mrb[0].mxu0
        %v1885 = vpop.f32.mrb[0].mxu0
        %v1886 = vadd.f32 0.0, %v1885
        %v1887 = vpop.f32.mrb[0].mxu0
        %1888 = vmatprep.mubr.bf16.mxu0 0
        %1889 = vmatmul.mubr.bf16.gmra.mrb[0].mxu0 %v1837
        %v1890 = vpop.f32.mrb[0].mxu0
        %v1891 = vadd.f32 0.0, %v1890
        %v1892 = vpop.f32.mrb[0].mxu0
        %v1893 = vpop.f32.mrb[0].mxu0
        %v1894 = vadd.f32 0.0, %v1893
        %v1895 = vpop.f32.mrb[0].mxu0
        %1896 = vmatprep.mubr.bf16.mxu0 0
        %1897 = vmatmul.mubr.bf16.gmra.mrb[0].mxu0 %v1840
        %v1898 = vpop.f32.mrb[0].mxu0
        %v1899 = vadd.f32 0.0, %v1898
        %v1900 = vpop.f32.mrb[0].mxu0
        %v1901 = vpop.f32.mrb[0].mxu0
        %v1902 = vadd.f32 0.0, %v1901
        %v1903 = vpop.f32.mrb[0].mxu0
        %1904 = vmatprep.mubr.bf16.mxu0 0
        %1905 = vmatmul.mubr.bf16.gmra.mrb[0].mxu0 %v1843
        %v1906 = vpop.f32.mrb[0].mxu0
        %v1907 = vadd.f32 0.0, %v1906
        %v1908 = vpop.f32.mrb[0].mxu0
        %v1909 = vpop.f32.mrb[0].mxu0
        %v1910 = vadd.f32 0.0, %v1909
        %v1911 = vpop.f32.mrb[0].mxu0
        %1912 = vdwg.mxu0
        %v1913 = vadd.f32 %v1774, %v1883
        %v1914 = vadd.f32 %v1775, %v1886
        %v1915 = vadd.f32 %v1776, %v1891
        %v1916 = vadd.f32 %v1777, %v1894
        %v1917 = vadd.f32 %v1778, %v1899
        %v1918 = vadd.f32 %v1779, %v1902
        %v1919 = vadd.f32 %v1780, %v1907
        %v1920 = vadd.f32 %v1781, %v1910
        %v1922 = vlaneseq
        %v1923 = vshrl.u32 %v1922, 7
        %v1924 = vsub.s32 0, %v1923
        %v1925 = vrot.slane %v281, %v1924
        %v1927 = vadd.f32 %v1913, %v1925
        %v1928 = vadd.f32 %v1914, %v1925
        %v1929 = vadd.f32 %v1915, %v1925
        %v1930 = vadd.f32 %v1916, %v1925
        %v1931 = vadd.f32 %v1917, %v1925
        %v1932 = vadd.f32 %v1918, %v1925
        %v1933 = vadd.f32 %v1919, %v1925
        %v1934 = vadd.f32 %v1920, %v1925
        %v1935 = vmax.f32 %v1927, 0.0
        %v1936 = vmax.f32 %v1928, 0.0
        %v1937 = vmax.f32 %v1929, 0.0
        %v1938 = vmax.f32 %v1930, 0.0
        %v1939 = vmax.f32 %v1931, 0.0
        %v1940 = vmax.f32 %v1932, 0.0
        %v1941 = vmax.f32 %v1933, 0.0
        %v1942 = vmax.f32 %v1934, 0.0
        %v1943 = vpack.c.bf16 %v1936, %v1935
        %v1944 = vpack.c.bf16 %v1938, %v1937
        %v1945 = vpack.c.bf16 %v1940, %v1939
        %v1946 = vpack.c.bf16 %v1942, %v1941
        %v1947 = vld [vmem:[%s3] sm:$0x3]
        %v1949 = vlaneseq
        %v1950 = vshrl.u32 %v1949, 7
        %v1951 = vsub.s32 0, %v1950
        %v1952 = vrot.slane %v282, %v1951
        %v1955 = vsel %vm404, %v1943, 0
        %v1958 = vsel %vm404, %v1944, 0
        %v1961 = vsel %vm404, %v1945, 0
        %v1964 = vsel %vm404, %v1946, 0
        %v1967 = vsel %vm719, %v1947, 0
        %1969 = vmatprep.subr.bf16.mxu0 0
        %1970 = vmatpush1.bf16.msra.mxu0 %v1967
        %1971 = vmatprep.subr.bf16.mxu0 0
        %1972 = vmatpush1.bf16.msra.mxu0 0
        %1973 = vmatprep.subr.bf16.mxu0 0
        %1974 = vmatpush1.bf16.msra.mxu0 0
        %1975 = vmatprep.subr.bf16.mxu0 0
        %1976 = vmatpush1.bf16.msra.mxu0 0
        %1977 = vmatprep.subr.bf16.mxu0 0
        %1978 = vmatpush1.bf16.msra.mxu0 0
        %1979 = vmatprep.subr.bf16.mxu0 0
        %1980 = vmatpush1.bf16.msra.mxu0 0
        %1981 = vmatprep.subr.bf16.mxu0 0
        %1982 = vmatpush1.bf16.msra.mxu0 0
        %1983 = vmatprep.subr.bf16.mxu0 0
        %1984 = vmatpush1.bf16.msra.mxu0 0
        %1985 = vmatprep.subr.bf16.mxu0 0
        %1986 = vmatpush1.bf16.msra.mxu0 0
        %1987 = vmatprep.subr.bf16.mxu0 0
        %1988 = vmatpush1.bf16.msra.mxu0 0
        %1989 = vmatprep.subr.bf16.mxu0 0
        %1990 = vmatpush1.bf16.msra.mxu0 0
        %1991 = vmatprep.subr.bf16.mxu0 0
        %1992 = vmatpush1.bf16.msra.mxu0 0
        %1993 = vmatprep.subr.bf16.mxu0 0
        %1994 = vmatpush1.bf16.msra.mxu0 0
        %1995 = vmatprep.subr.bf16.mxu0 0
        %1996 = vmatpush1.bf16.msra.mxu0 0
        %1997 = vmatprep.subr.bf16.mxu0 0
        %1998 = vmatpush1.bf16.msra.mxu0 0
        %1999 = vmatprep.subr.bf16.mxu0 0
        %2000 = vmatpush1.bf16.msra.mxu0 0
        %2001 = vmatprep.mubr.bf16.mxu0 0
        %2002 = vmatmul.mubr.bf16.gmra.mrb[0].mxu0 %v1955
        %v2003 = vpop.f32.mrb[0].mxu0
        %v2004 = vadd.f32 %v1952, %v2003
        %v2005 = vpop.f32.mrb[0].mxu0
        %v2006 = vpop.f32.mrb[0].mxu0
        %v2007 = vadd.f32 %v1952, %v2006
        %v2008 = vpop.f32.mrb[0].mxu0
        %2009 = vmatprep.mubr.bf16.mxu0 0
        %2010 = vmatmul.mubr.bf16.gmra.mrb[0].mxu0 %v1958
        %v2011 = vpop.f32.mrb[0].mxu0
        %v2012 = vadd.f32 %v1952, %v2011
        %v2013 = vpop.f32.mrb[0].mxu0
        %v2014 = vpop.f32.mrb[0].mxu0
        %v2015 = vadd.f32 %v1952, %v2014
        %v2016 = vpop.f32.mrb[0].mxu0
        %2017 = vmatprep.mubr.bf16.mxu0 0
        %2018 = vmatmul.mubr.bf16.gmra.mrb[0].mxu0 %v1961
        %v2019 = vpop.f32.mrb[0].mxu0
        %v2020 = vadd.f32 %v1952, %v2019
        %v2021 = vpop.f32.mrb[0].mxu0
        %v2022 = vpop.f32.mrb[0].mxu0
        %v2023 = vadd.f32 %v1952, %v2022
        %v2024 = vpop.f32.mrb[0].mxu0
        %2025 = vmatprep.mubr.bf16.mxu0 0
        %2026 = vmatmul.mubr.bf16.gmra.mrb[0].mxu0 %v1964
        %v2027 = vpop.f32.mrb[0].mxu0
        %v2028 = vadd.f32 %v1952, %v2027
        %v2029 = vpop.f32.mrb[0].mxu0
        %v2030 = vpop.f32.mrb[0].mxu0
        %v2031 = vadd.f32 %v1952, %v2030
        %v2032 = vpop.f32.mrb[0].mxu0
        %2033 = vdwg.mxu0
        %v2034 = vunpack.c.l.bf16 %v407
        %v2035 = vunpack.c.l.bf16 %v408
        %v2036 = vunpack.c.l.bf16 %v409
        %v2037 = vunpack.c.l.bf16 %v410
        %v2038 = vunpack.c.l.bf16 %v411
        %v2039 = vunpack.c.l.bf16 %v412
        %v2040 = vunpack.c.l.bf16 %v413
        %v2041 = vunpack.c.l.bf16 %v414
        %v2042 = vadd.f32 %v2004, %v2034
        %v2043 = vadd.f32 %v2007, %v2035
        %v2044 = vadd.f32 %v2012, %v2036
        %v2045 = vadd.f32 %v2015, %v2037
        %v2046 = vadd.f32 %v2020, %v2038
        %v2047 = vadd.f32 %v2023, %v2039
        %v2048 = vadd.f32 %v2028, %v2040
        %v2049 = vadd.f32 %v2031, %v2041
        %v2050 = vmax.f32 %v2042, 0.0
        %v2051 = vmax.f32 %v2043, 0.0
        %v2052 = vmax.f32 %v2044, 0.0
        %v2053 = vmax.f32 %v2045, 0.0
        %v2054 = vmax.f32 %v2046, 0.0
        %v2055 = vmax.f32 %v2047, 0.0
        %v2056 = vmax.f32 %v2048, 0.0
        %v2057 = vmax.f32 %v2049, 0.0
        %v2058 = vpack.c.bf16 %v2051, %v2050
        %v2059 = vpack.c.bf16 %v2053, %v2052
        %v2060 = vpack.c.bf16 %v2055, %v2054
        %v2061 = vpack.c.bf16 %v2057, %v2056
        %v2066 = vunpack.c.l.b16 %v2058
        %v2067 = vunpack.c.h.b16 %v2058
        %v2068 = vunpack.c.l.b16 %v2059
        %v2069 = vunpack.c.h.b16 %v2059
        %v2070 = vunpack.c.l.b16 %v2060
        %v2071 = vunpack.c.h.b16 %v2060
        %v2072 = vunpack.c.l.b16 %v2061
        %v2073 = vunpack.c.h.b16 %v2061
        %v2074 = vpack.c.b16 %v2066, %v2066
        %v2075 = vpack.c.b16 %v2067, %v2067
        %v2076 = vpack.c.b16 %v2068, %v2068
        %v2077 = vpack.c.b16 %v2069, %v2069
        %v2078 = vpack.c.b16 %v2070, %v2070
        %v2079 = vpack.c.b16 %v2071, %v2071
        %v2080 = vpack.c.b16 %v2072, %v2072
        %v2081 = vpack.c.b16 %v2073, %v2073
        %2090 = vst [vmem:[%s271] sm:$0xf] %v2074
        %2091 = vst [vmem:[%s271 + $0x4] sm:$0xf] %v2075
        %2092 = vst [vmem:[%s271 + $0x8] sm:$0xf] %v2076
        %2093 = vst [vmem:[%s271 + $0xc] sm:$0xf] %v2077
        %2094 = vst [vmem:[%s271 + $0x10] sm:$0xf] %v2078
        %2095 = vst [vmem:[%s271 + $0x14] sm:$0xf] %v2079
        %2096 = vst [vmem:[%s271 + $0x18] sm:$0xf] %v2080
        %2097 = vst [vmem:[%s271 + $0x1c] sm:$0xf] %v2081
        %s2098 = sand.u32 %s181, 1
        %s2099 = scalar_lea.sflag [#allocation4], %s2098
        %s2100 = sand.u32 %s181, 1
        %s2101 = smul.addr %s2100, 32
        %s2102 = scalar_lea.vmem [#allocation3], %s2101
        // Predicated region
        $region49: #{tpu_custom_call.1} parent=47 // pred_check
          %p2103 = pneg %p191
        $region50: #{tpu_custom_call.1} parent=47 // pred_check_branch
          %2105 = sbr.rel (%p2103) target = $region52
        $region51: #{tpu_custom_call.1} parent=47 // pred_region
          %s2107 = ssub.s32 512, 512
          %2108 = vsyncadd %s2099, %s2107
          %s2109 = smul.addr %s21, 8
          %s2110 = smul.addr %s2109, 64
          %s2111 = scalar_lea.hbm %s7, %s2110
          %s2112 = sshll.u32 %s2102, 4
          %s2113 = int_to_ptr.vmem [resolvable:$true] %s2112
          %2118 = dma.vmem_to_hbm [thread:$0]  %s2113, 512, %s2111, %s2099, 64, 64, 4
        $region52: #{tpu_custom_call.1} parent=47 // pred_fallthru
          _
      $region48: #{tpu_custom_call.1} parent=5 // pred_fallthru
        _
      %p2119 = scmp.le.s32.totalorder 2, %s16
      // Predicated region
      $region53: #{tpu_custom_call.1} parent=5 // pred_check
        %p2120 = pneg %p2119
      $region54: #{tpu_custom_call.1} parent=5 // pred_check_branch
        %2122 = sbr.rel (%p2120) target = $region56
      $region55: #{tpu_custom_call.1} parent=5 // pred_region
        %s2123 = ssub.s32 %s16, 2
        // Predicated region
        $region57: #{tpu_custom_call.1} parent=55 // pred_check
          %p2124 = pneg %p197
        $region58: #{tpu_custom_call.1} parent=55 // pred_check_branch
          %2126 = sbr.rel (%p2124) target = $region60
        $region59: #{tpu_custom_call.1} parent=55 // pred_region
          %s2127 = sand.u32 %s182, 1
          %s2128 = scalar_lea.sflag [#allocation4], %s2127
          %s2129 = sand.u32 %s182, 1
          %s2130 = smul.addr %s2129, 32
          %s2131 = scalar_lea.vmem [#allocation3], %s2130
          %2132 = dma.done %s2128, 512
        $region60: #{tpu_custom_call.1} parent=55 // pred_fallthru
          _
      $region56: #{tpu_custom_call.1} parent=5 // pred_fallthru
        _
    $region6: #{tpu_custom_call.1} parent=1 // loop_footer
      %s20 = sadd.s32 1, %s16
    $region7: #{tpu_custom_call.1} parent=1 // loop_footer_branch
      %15 = sbr.rel target = $region3
    $region8: #{tpu_custom_call.1} parent=1 // loop_exit
      _
    %2133 = vsyncpa [#allocation4], 1
    %s2134 = scalar_lea.sflag [#allocation4], 1
    %2135 = vsyncpa %s2134, 1

</llo_original>
